<compile_context>
chip_gen: v7x
topology: tpu7x:2x2x1
jax: 0.10.0
libtpu: 0.0.40
codegen_flags: <defaults>
</compile_context>

<pallas_src>
import functools
import math

import jax
import jax.numpy as jnp
from jax import lax
from jax.experimental import pallas as pl
from jax.experimental.pallas import tpu as pltpu


CONFIG = dict(
    image_size=16,
    patch_size=8,
    num_channels=4,
    hidden_size=32,
    num_hidden_layers=2,
    num_attention_heads=4,
    intermediate_size=64,
    layer_norm_eps=1e-12,
)
NUM_CLASSES = 10
EARLY_EXIT_THRESHOLDS = (0.9, 0.5)

_INV_SQRT2 = 1.0 / math.sqrt(2.0)


# ----------------------------- fused Pallas kernel -----------------------------

def _layernorm(x, g, b, eps):
    mu = jnp.mean(x, axis=-1, keepdims=True)
    xc = x - mu
    var = jnp.mean(xc * xc, axis=-1, keepdims=True)
    return xc * lax.rsqrt(var + eps) * g + b


def _softmax_lastdim(x):
    m = jnp.max(x, axis=-1, keepdims=True)
    p = jnp.exp(x - m)
    return p * pl.reciprocal(jnp.sum(p, axis=-1, keepdims=True), approx=True)


def _vit_sae_kernel(*refs, B, NP, H, nh, dh, L, NE, C, eps):
    """Whole ViT+SAE forward; everything stays in VMEM.  All intermediates 2-D."""
    S = NP + 1
    scale = 1.0 / math.sqrt(dh)

    it = iter(refs)
    patches_ref = next(it)        # [B*NP, C*P*P]
    patch_w_ref = next(it)        # [C*P*P, H]
    patch_b_ref = next(it)        # [1, H]
    cls_ref = next(it)            # [1, H]
    pos_ref = next(it)            # [S, H]
    layer_refs = [tuple(next(it) for _ in range(12)) for _ in range(L)]
    lnf_g_ref = next(it)          # [1, H]
    lnf_b_ref = next(it)          # [1, H]
    wex_ref = next(it)            # [H, NE*C]
    bex_ref = next(it)            # [1, NE*C]
    logits_ref = next(it)         # out: [B, NE*C]
    maxp_refs = [next(it) for _ in range(NE)]   # out: NE x [1, 1]

    # ---- patch embedding + [CLS] + positional embedding (fused) ----
    emb = jnp.dot(patches_ref[...], patch_w_ref[...],
                  preferred_element_type=jnp.float32) + patch_b_ref[...]  # [B*NP, H]
    pos = pos_ref[...]
    cls_row = cls_ref[...] + pos[0:1, :]
    rows = []
    for b in range(B):
        rows.append(cls_row)
        rows.append(emb[b * NP:(b + 1) * NP, :] + pos[1:S, :])
    h = jnp.concatenate(rows, axis=0)                                     # [B*S, H]

    # ---- transformer encoder layers (pre-LN ViT) ----
    for l in range(L):
        (ln1_g, ln1_b, wqkv, bqkv, wo, bo,
         ln2_g, ln2_b, wi, bi, wp, bp) = layer_refs[l]

        # fused LayerNorm -> single QKV projection ([B*S, H] x [H, 3H])
        hn = _layernorm(h, ln1_g[...], ln1_b[...], eps)
        qkv = jnp.dot(hn, wqkv[...], preferred_element_type=jnp.float32) + bqkv[...]

        # multi-head scaled-dot-product attention, heads handled in-kernel.
        # Static loops over (batch, head); all operands are tiny 2-D tiles.
        ctx_rows = []
        for b in range(B):
            r0 = b * S
            head_ctx = []
            for hd in range(nh):
                c0 = hd * dh
                q_bh = qkv[r0:r0 + S, c0:c0 + dh]
                k_bh = qkv[r0:r0 + S, H + c0:H + c0 + dh]
                v_bh = qkv[r0:r0 + S, 2 * H + c0:2 * H + c0 + dh]
                s = lax.dot_general(q_bh, k_bh, (((1,), (1,)), ((), ())),
                                    preferred_element_type=jnp.float32) * scale
                p = _softmax_lastdim(s)
                head_ctx.append(jnp.dot(p, v_bh,
                                        preferred_element_type=jnp.float32))
            ctx_rows.append(jnp.concatenate(head_ctx, axis=1))            # [S, H]
        ctx = jnp.concatenate(ctx_rows, axis=0)                           # [B*S, H]

        # attention output projection + residual (fused)
        h = h + jnp.dot(ctx, wo[...], preferred_element_type=jnp.float32) + bo[...]

        # fused LayerNorm -> MLP up (exact-erf GELU) -> MLP down + residual
        hn = _layernorm(h, ln2_g[...], ln2_b[...], eps)
        mid = jnp.dot(hn, wi[...], preferred_element_type=jnp.float32) + bi[...]
        mid = 0.5 * mid * (1.0 + lax.erf(mid * _INV_SQRT2))
        h = h + jnp.dot(mid, wp[...], preferred_element_type=jnp.float32) + bp[...]

    # ---- final LayerNorm + all early-exit heads (shared CLS token) ----
    h = _layernorm(h, lnf_g_ref[...], lnf_b_ref[...], eps)
    cls_tok = jnp.concatenate([h[b * S:b * S + 1, :] for b in range(B)], axis=0)
    logits_all = jnp.dot(cls_tok, wex_ref[...],
                         preferred_element_type=jnp.float32) + bex_ref[...]  # [B, NE*C]
    logits_ref[...] = logits_all.astype(logits_ref.dtype)

    # per exit: global max of softmax over the whole [B, C] block
    # (matches torch.max(F.softmax(exit_output, dim=-1)) in the reference module,
    # which takes the max over the full batch tensor).
    for e in range(NE):
        le = logits_all[:, e * C:(e + 1) * C]
        pe = _softmax_lastdim(le)
        maxp_refs[e][...] = jnp.max(pe)[None, None]


# ----------------------------- parameter setup -----------------------------

def init_params(key, cfg, num_classes, num_exits):
    H = cfg["hidden_size"]
    I = cfg["intermediate_size"]
    Cc = cfg["num_channels"]
    P = cfg["patch_size"]
    n_patches = (cfg["image_size"] // P) ** 2
    S = n_patches + 1

    def nrm(k, shape):
        return 0.02 * jax.random.normal(k, shape, dtype=jnp.float32)

    n_keys = 3 + 4 * cfg["num_hidden_layers"] + 1
    keys = iter(jax.random.split(key, n_keys))
    params = {
        "patch_w": nrm(next(keys), (Cc * P * P, H)),
        "patch_b": jnp.zeros((1, H), jnp.float32),
        "cls_token": nrm(next(keys), (1, H)),
        "pos_emb": nrm(next(keys), (S, H)),
        "layers": [],
        "lnf_g": jnp.ones((1, H), jnp.float32),
        "lnf_b": jnp.zeros((1, H), jnp.float32),
        "exit_b": jnp.zeros((1, num_exits * num_classes), jnp.float32),
    }
    for _ in range(cfg["num_hidden_layers"]):
        params["layers"].append({
            "ln1_g": jnp.ones((1, H), jnp.float32),
            "ln1_b": jnp.zeros((1, H), jnp.float32),
            "wqkv": nrm(next(keys), (H, 3 * H)),            # fused Q|K|V
            "bqkv": jnp.zeros((1, 3 * H), jnp.float32),
            "wo": nrm(next(keys), (H, H)),
            "bo": jnp.zeros((1, H), jnp.float32),
            "ln2_g": jnp.ones((1, H), jnp.float32),
            "ln2_b": jnp.zeros((1, H), jnp.float32),
            "wi": nrm(next(keys), (H, I)),
            "bi": jnp.zeros((1, I), jnp.float32),
            "wp": nrm(next(keys), (I, H)),
            "bp": jnp.zeros((1, H), jnp.float32),
        })
    params["exit_w"] = nrm(next(keys), (H, num_exits * num_classes))  # exits concatenated
    return params


# ----------------------------- forward -----------------------------

def make_forward(cfg, num_classes, thresholds):
    H = cfg["hidden_size"]
    P = cfg["patch_size"]
    Cc = cfg["num_channels"]
    nh = cfg["num_attention_heads"]
    dh = H // nh
    L = cfg["num_hidden_layers"]
    NE = len(thresholds)
    C = num_classes
    eps = cfg["layer_norm_eps"]

    @jax.jit
    def forward(params, x):
        B, _, Himg, Wimg = x.shape
        NP = (Himg // P) * (Wimg // P)

        # unfold NCHW -> patch-major rows, patch vector ordered (C, kh, kw)
        # (matches Conv2d(kernel=stride=P) weight flattening)
        patches = x.reshape(B, Cc, Himg // P, P, Wimg // P, P)
        patches = patches.transpose(0, 2, 4, 1, 3, 5).reshape(B * NP, Cc * P * P)

        operands = [patches, params["patch_w"], params["patch_b"],
                    params["cls_token"], params["pos_emb"]]
        for lp in params["layers"]:
            operands += [lp["ln1_g"], lp["ln1_b"], lp["wqkv"], lp["bqkv"],
                         lp["wo"], lp["bo"], lp["ln2_g"], lp["ln2_b"],
                         lp["wi"], lp["bi"], lp["wp"], lp["bp"]]
        operands += [params["lnf_g"], params["lnf_b"],
                     params["exit_w"], params["exit_b"]]

        kernel = functools.partial(
            _vit_sae_kernel, B=B, NP=NP, H=H, nh=nh, dh=dh,
            L=L, NE=NE, C=C, eps=eps)

        in_specs = [
            pl.BlockSpec(op.shape, lambda i, nd=op.ndim: (0,) * nd)
            for op in operands
        ]
        out_shapes = (
            jax.ShapeDtypeStruct((B, NE * C), jnp.float32),
            *[jax.ShapeDtypeStruct((1, 1), jnp.float32) for _ in range(NE)],
        )
        out_specs = (
            pl.BlockSpec((B, NE * C), lambda i: (0, 0)),
            *[pl.BlockSpec((1, 1), lambda i: (0, 0)) for _ in range(NE)],
        )

        outs = pl.pallas_call(
            kernel,
            out_shape=out_shapes,
            grid=(1,),
            in_specs=in_specs,
            out_specs=out_specs,
            compiler_params=pltpu.CompilerParams(
                dimension_semantics=("arbitrary",)),
        )(*operands)

        logits_flat = outs[0]                                # [B, NE*C]
        maxps = [outs[1 + e][0, 0] for e in range(NE)]

        # Sequential early-exit selection resolved on device (no host sync per
        # exit).  All exits share the CLS token, so computing every head and
        # selecting yields the same (logits, index) as the PyTorch early return.
        exit_logits = [logits_flat[:, e * C:(e + 1) * C] for e in range(NE)]
        idx = jnp.int32(NE)
        sel = exit_logits[-1]
        for e in reversed(range(NE)):
            take = maxps[e] > thresholds[e]
            idx = jnp.where(take, jnp.int32(e), idx)
            sel = jnp.where(take, exit_logits[e], sel)
        return sel, idx

    return forward


# ----------------------------- main -----------------------------

if __name__ == "__main__":
    key = jax.random.PRNGKey(0)
    pkey, xkey = jax.random.split(key)
    params = init_params(pkey, CONFIG, NUM_CLASSES, len(EARLY_EXIT_THRESHOLDS))

    B = 2
    x = jax.random.normal(
        xkey,
        (B, CONFIG["num_channels"], CONFIG["image_size"], CONFIG["image_size"]),
        dtype=jnp.float32,
    )

    forward = make_forward(CONFIG, NUM_CLASSES, EARLY_EXIT_THRESHOLDS)
    logits, exit_idx = forward(params, x)
    jax.block_until_ready((logits, exit_idx))
    exit_i = int(jax.device_get(exit_idx))   # single host sync, only at the end

    assert logits.shape == (B, NUM_CLASSES)
    assert 0 <= exit_i <= len(EARLY_EXIT_THRESHOLDS)
    print("KERNEL_OK")
</pallas_src>

<mosaic_0001>
module attributes {stable_mosaic.version = 11 : i64} {
  func.func @_vit_sae_kernel(%arg0: i32, %arg1: memref<8x256xf32, #tpu.memory_space<vmem>>, %arg2: memref<256x32xf32, #tpu.memory_space<vmem>>, %arg3: memref<1x32xf32, #tpu.memory_space<vmem>>, %arg4: memref<1x32xf32, #tpu.memory_space<vmem>>, %arg5: memref<5x32xf32, #tpu.memory_space<vmem>>, %arg6: memref<1x32xf32, #tpu.memory_space<vmem>>, %arg7: memref<1x32xf32, #tpu.memory_space<vmem>>, %arg8: memref<32x96xf32, #tpu.memory_space<vmem>>, %arg9: memref<1x96xf32, #tpu.memory_space<vmem>>, %arg10: memref<32x32xf32, #tpu.memory_space<vmem>>, %arg11: memref<1x32xf32, #tpu.memory_space<vmem>>, %arg12: memref<1x32xf32, #tpu.memory_space<vmem>>, %arg13: memref<1x32xf32, #tpu.memory_space<vmem>>, %arg14: memref<32x64xf32, #tpu.memory_space<vmem>>, %arg15: memref<1x64xf32, #tpu.memory_space<vmem>>, %arg16: memref<64x32xf32, #tpu.memory_space<vmem>>, %arg17: memref<1x32xf32, #tpu.memory_space<vmem>>, %arg18: memref<1x32xf32, #tpu.memory_space<vmem>>, %arg19: memref<1x32xf32, #tpu.memory_space<vmem>>, %arg20: memref<32x96xf32, #tpu.memory_space<vmem>>, %arg21: memref<1x96xf32, #tpu.memory_space<vmem>>, %arg22: memref<32x32xf32, #tpu.memory_space<vmem>>, %arg23: memref<1x32xf32, #tpu.memory_space<vmem>>, %arg24: memref<1x32xf32, #tpu.memory_space<vmem>>, %arg25: memref<1x32xf32, #tpu.memory_space<vmem>>, %arg26: memref<32x64xf32, #tpu.memory_space<vmem>>, %arg27: memref<1x64xf32, #tpu.memory_space<vmem>>, %arg28: memref<64x32xf32, #tpu.memory_space<vmem>>, %arg29: memref<1x32xf32, #tpu.memory_space<vmem>>, %arg30: memref<1x32xf32, #tpu.memory_space<vmem>>, %arg31: memref<1x32xf32, #tpu.memory_space<vmem>>, %arg32: memref<32x20xf32, #tpu.memory_space<vmem>>, %arg33: memref<1x20xf32, #tpu.memory_space<vmem>>, %arg34: memref<2x20xf32, #tpu.memory_space<vmem>>, %arg35: memref<1x1xf32, #tpu.memory_space<vmem>>, %arg36: memref<1x1xf32, #tpu.memory_space<vmem>>) attributes {dimension_semantics = [#tpu.dimension_semantics<arbitrary>], iteration_bounds = array<i64: 1>, scalar_prefetch = 0 : i64, scratch_operands = 0 : i64, tpu.core_type = #tpu.core_type<tc>, window_params = [{pipeline_mode = #tpu.pipeline_mode<synchronous>, transform_indices = @transform_0, window_bounds = array<i64: 8, 256>}, {pipeline_mode = #tpu.pipeline_mode<synchronous>, transform_indices = @transform_1, window_bounds = array<i64: 256, 32>}, {pipeline_mode = #tpu.pipeline_mode<synchronous>, transform_indices = @transform_2, window_bounds = array<i64: 1, 32>}, {pipeline_mode = #tpu.pipeline_mode<synchronous>, transform_indices = @transform_3, window_bounds = array<i64: 1, 32>}, {pipeline_mode = #tpu.pipeline_mode<synchronous>, transform_indices = @transform_4, window_bounds = array<i64: 5, 32>}, {pipeline_mode = #tpu.pipeline_mode<synchronous>, transform_indices = @transform_5, window_bounds = array<i64: 1, 32>}, {pipeline_mode = #tpu.pipeline_mode<synchronous>, transform_indices = @transform_6, window_bounds = array<i64: 1, 32>}, {pipeline_mode = #tpu.pipeline_mode<synchronous>, transform_indices = @transform_7, window_bounds = array<i64: 32, 96>}, {pipeline_mode = #tpu.pipeline_mode<synchronous>, transform_indices = @transform_8, window_bounds = array<i64: 1, 96>}, {pipeline_mode = #tpu.pipeline_mode<synchronous>, transform_indices = @transform_9, window_bounds = array<i64: 32, 32>}, {pipeline_mode = #tpu.pipeline_mode<synchronous>, transform_indices = @transform_10, window_bounds = array<i64: 1, 32>}, {pipeline_mode = #tpu.pipeline_mode<synchronous>, transform_indices = @transform_11, window_bounds = array<i64: 1, 32>}, {pipeline_mode = #tpu.pipeline_mode<synchronous>, transform_indices = @transform_12, window_bounds = array<i64: 1, 32>}, {pipeline_mode = #tpu.pipeline_mode<synchronous>, transform_indices = @transform_13, window_bounds = array<i64: 32, 64>}, {pipeline_mode = #tpu.pipeline_mode<synchronous>, transform_indices = @transform_14, window_bounds = array<i64: 1, 64>}, {pipeline_mode = #tpu.pipeline_mode<synchronous>, transform_indices = @transform_15, window_bounds = array<i64: 64, 32>}, {pipeline_mode = #tpu.pipeline_mode<synchronous>, transform_indices = @transform_16, window_bounds = array<i64: 1, 32>}, {pipeline_mode = #tpu.pipeline_mode<synchronous>, transform_indices = @transform_17, window_bounds = array<i64: 1, 32>}, {pipeline_mode = #tpu.pipeline_mode<synchronous>, transform_indices = @transform_18, window_bounds = array<i64: 1, 32>}, {pipeline_mode = #tpu.pipeline_mode<synchronous>, transform_indices = @transform_19, window_bounds = array<i64: 32, 96>}, {pipeline_mode = #tpu.pipeline_mode<synchronous>, transform_indices = @transform_20, window_bounds = array<i64: 1, 96>}, {pipeline_mode = #tpu.pipeline_mode<synchronous>, transform_indices = @transform_21, window_bounds = array<i64: 32, 32>}, {pipeline_mode = #tpu.pipeline_mode<synchronous>, transform_indices = @transform_22, window_bounds = array<i64: 1, 32>}, {pipeline_mode = #tpu.pipeline_mode<synchronous>, transform_indices = @transform_23, window_bounds = array<i64: 1, 32>}, {pipeline_mode = #tpu.pipeline_mode<synchronous>, transform_indices = @transform_24, window_bounds = array<i64: 1, 32>}, {pipeline_mode = #tpu.pipeline_mode<synchronous>, transform_indices = @transform_25, window_bounds = array<i64: 32, 64>}, {pipeline_mode = #tpu.pipeline_mode<synchronous>, transform_indices = @transform_26, window_bounds = array<i64: 1, 64>}, {pipeline_mode = #tpu.pipeline_mode<synchronous>, transform_indices = @transform_27, window_bounds = array<i64: 64, 32>}, {pipeline_mode = #tpu.pipeline_mode<synchronous>, transform_indices = @transform_28, window_bounds = array<i64: 1, 32>}, {pipeline_mode = #tpu.pipeline_mode<synchronous>, transform_indices = @transform_29, window_bounds = array<i64: 1, 32>}, {pipeline_mode = #tpu.pipeline_mode<synchronous>, transform_indices = @transform_30, window_bounds = array<i64: 1, 32>}, {pipeline_mode = #tpu.pipeline_mode<synchronous>, transform_indices = @transform_31, window_bounds = array<i64: 32, 20>}, {pipeline_mode = #tpu.pipeline_mode<synchronous>, transform_indices = @transform_32, window_bounds = array<i64: 1, 20>}, {pipeline_mode = #tpu.pipeline_mode<synchronous>, transform_indices = @transform_33, window_bounds = array<i64: 2, 20>}, {pipeline_mode = #tpu.pipeline_mode<synchronous>, transform_indices = @transform_34, window_bounds = array<i64: 1, 1>}, {pipeline_mode = #tpu.pipeline_mode<synchronous>, transform_indices = @transform_35, window_bounds = array<i64: 1, 1>}]} {
    %c0 = arith.constant 0 : index
    %c0_0 = arith.constant 0 : index
    %0 = vector.load %arg1[%c0, %c0_0] : memref<8x256xf32, #tpu.memory_space<vmem>>, vector<8x256xf32>
    %c0_1 = arith.constant 0 : index
    %c0_2 = arith.constant 0 : index
    %1 = vector.load %arg2[%c0_1, %c0_2] : memref<256x32xf32, #tpu.memory_space<vmem>>, vector<256x32xf32>
    %cst = arith.constant dense<0.000000e+00> : vector<8x32xf32>
    %2 = tpu.matmul %0, %1, %cst {dimension_numbers = #tpu.dot_dimension_numbers<[1], [0], [0], [1], [0, 0, 1, 1], [], []>} : vector<8x256xf32>, vector<256x32xf32>, vector<8x32xf32> -> vector<8x32xf32>
    %c0_3 = arith.constant 0 : index
    %c0_4 = arith.constant 0 : index
    %3 = vector.load %arg3[%c0_3, %c0_4] : memref<1x32xf32, #tpu.memory_space<vmem>>, vector<1x32xf32>
    %4 = vector.broadcast %3 : vector<1x32xf32> to vector<8x32xf32>
    %5 = arith.addf %2, %4 : vector<8x32xf32>
    %c0_5 = arith.constant 0 : index
    %c0_6 = arith.constant 0 : index
    %6 = vector.load %arg5[%c0_5, %c0_6] : memref<5x32xf32, #tpu.memory_space<vmem>>, vector<5x32xf32>
    %c0_7 = arith.constant 0 : index
    %c0_8 = arith.constant 0 : index
    %7 = vector.load %arg4[%c0_7, %c0_8] : memref<1x32xf32, #tpu.memory_space<vmem>>, vector<1x32xf32>
    %8 = vector.extract_strided_slice %6 {offsets = [0, 0], sizes = [1, 32], strides = [1, 1]} : vector<5x32xf32> to vector<1x32xf32>
    %9 = arith.addf %7, %8 : vector<1x32xf32>
    %10 = vector.extract_strided_slice %5 {offsets = [0, 0], sizes = [4, 32], strides = [1, 1]} : vector<8x32xf32> to vector<4x32xf32>
    %11 = vector.extract_strided_slice %6 {offsets = [1, 0], sizes = [4, 32], strides = [1, 1]} : vector<5x32xf32> to vector<4x32xf32>
    %12 = arith.addf %10, %11 : vector<4x32xf32>
    %13 = vector.extract_strided_slice %5 {offsets = [4, 0], sizes = [4, 32], strides = [1, 1]} : vector<8x32xf32> to vector<4x32xf32>
    %14 = vector.extract_strided_slice %6 {offsets = [1, 0], sizes = [4, 32], strides = [1, 1]} : vector<5x32xf32> to vector<4x32xf32>
    %15 = arith.addf %13, %14 : vector<4x32xf32>
    %16 = tpu.concatenate %9, %12, %9, %15 in 0 : vector<1x32xf32>, vector<4x32xf32>, vector<1x32xf32>, vector<4x32xf32> -> vector<10x32xf32>
    %c0_9 = arith.constant 0 : index
    %c0_10 = arith.constant 0 : index
    %17 = vector.load %arg6[%c0_9, %c0_10] : memref<1x32xf32, #tpu.memory_space<vmem>>, vector<1x32xf32>
    %c0_11 = arith.constant 0 : index
    %c0_12 = arith.constant 0 : index
    %18 = vector.load %arg7[%c0_11, %c0_12] : memref<1x32xf32, #tpu.memory_space<vmem>>, vector<1x32xf32>
    %cst_13 = arith.constant dense<0.000000e+00> : vector<10xf32>
    %19 = vector.multi_reduction <add>, %16, %cst_13 [1] : vector<10x32xf32> to vector<10xf32>
    %20 = vector.shape_cast %19 : vector<10xf32> to vector<10x1xf32>
    %cst_14 = arith.constant 3.200000e+01 : f32
    %21 = vector.broadcast %cst_14 : f32 to vector<10x1xf32>
    %22 = arith.divf %20, %21 : vector<10x1xf32>
    %23 = vector.broadcast %22 : vector<10x1xf32> to vector<10x32xf32>
    %24 = arith.subf %16, %23 : vector<10x32xf32>
    %25 = arith.mulf %24, %24 : vector<10x32xf32>
    %cst_15 = arith.constant dense<0.000000e+00> : vector<10xf32>
    %26 = vector.multi_reduction <add>, %25, %cst_15 [1] : vector<10x32xf32> to vector<10xf32>
    %27 = vector.shape_cast %26 : vector<10xf32> to vector<10x1xf32>
    %cst_16 = arith.constant 3.200000e+01 : f32
    %28 = vector.broadcast %cst_16 : f32 to vector<10x1xf32>
    %29 = arith.divf %27, %28 : vector<10x1xf32>
    %cst_17 = arith.constant 9.99999996E-13 : f32
    %30 = vector.broadcast %cst_17 : f32 to vector<10x1xf32>
    %31 = arith.addf %29, %30 : vector<10x1xf32>
    %32 = math.rsqrt %31 : vector<10x1xf32>
    %33 = vector.broadcast %32 : vector<10x1xf32> to vector<10x32xf32>
    %34 = arith.mulf %24, %33 : vector<10x32xf32>
    %35 = vector.broadcast %17 : vector<1x32xf32> to vector<10x32xf32>
    %36 = arith.mulf %34, %35 : vector<10x32xf32>
    %37 = vector.broadcast %18 : vector<1x32xf32> to vector<10x32xf32>
    %38 = arith.addf %36, %37 : vector<10x32xf32>
    %c0_18 = arith.constant 0 : index
    %c0_19 = arith.constant 0 : index
    %39 = vector.load %arg8[%c0_18, %c0_19] : memref<32x96xf32, #tpu.memory_space<vmem>>, vector<32x96xf32>
    %cst_20 = arith.constant dense<0.000000e+00> : vector<10x96xf32>
    %40 = tpu.matmul %38, %39, %cst_20 {dimension_numbers = #tpu.dot_dimension_numbers<[1], [0], [0], [1], [0, 0, 1, 1], [], []>} : vector<10x32xf32>, vector<32x96xf32>, vector<10x96xf32> -> vector<10x96xf32>
    %c0_21 = arith.constant 0 : index
    %c0_22 = arith.constant 0 : index
    %41 = vector.load %arg9[%c0_21, %c0_22] : memref<1x96xf32, #tpu.memory_space<vmem>>, vector<1x96xf32>
    %42 = vector.broadcast %41 : vector<1x96xf32> to vector<10x96xf32>
    %43 = arith.addf %40, %42 : vector<10x96xf32>
    %44 = vector.extract_strided_slice %43 {offsets = [0, 0], sizes = [5, 8], strides = [1, 1]} : vector<10x96xf32> to vector<5x8xf32>
    %45 = vector.extract_strided_slice %43 {offsets = [0, 32], sizes = [5, 8], strides = [1, 1]} : vector<10x96xf32> to vector<5x8xf32>
    %46 = vector.extract_strided_slice %43 {offsets = [0, 64], sizes = [5, 8], strides = [1, 1]} : vector<10x96xf32> to vector<5x8xf32>
    %cst_23 = arith.constant dense<0.000000e+00> : vector<5x5xf32>
    %47 = tpu.matmul %44, %45, %cst_23 {dimension_numbers = #tpu.dot_dimension_numbers<[1], [1], [0], [0], [0, 0, 1, 0], [], []>} : vector<5x8xf32>, vector<5x8xf32>, vector<5x5xf32> -> vector<5x5xf32>
    %cst_24 = arith.constant 0.353553385 : f32
    %48 = vector.broadcast %cst_24 : f32 to vector<5x5xf32>
    %49 = arith.mulf %47, %48 : vector<5x5xf32>
    %cst_25 = arith.constant dense<0xFF800000> : vector<5xf32>
    %50 = vector.multi_reduction <maximumf>, %49, %cst_25 [1] : vector<5x5xf32> to vector<5xf32>
    %51 = vector.shape_cast %50 : vector<5xf32> to vector<5x1xf32>
    %52 = vector.broadcast %51 : vector<5x1xf32> to vector<5x5xf32>
    %53 = arith.subf %49, %52 : vector<5x5xf32>
    %54 = math.exp %53 : vector<5x5xf32>
    %cst_26 = arith.constant dense<0.000000e+00> : vector<5xf32>
    %55 = vector.multi_reduction <add>, %54, %cst_26 [1] : vector<5x5xf32> to vector<5xf32>
    %56 = vector.shape_cast %55 : vector<5xf32> to vector<5x1xf32>
    %57 = tpu.reciprocal %56 {approx = true} : vector<5x1xf32> -> vector<5x1xf32>
    %58 = vector.broadcast %57 : vector<5x1xf32> to vector<5x5xf32>
    %59 = arith.mulf %54, %58 : vector<5x5xf32>
    %cst_27 = arith.constant dense<0.000000e+00> : vector<5x8xf32>
    %60 = tpu.matmul %59, %46, %cst_27 {dimension_numbers = #tpu.dot_dimension_numbers<[1], [0], [0], [1], [0, 0, 1, 1], [], []>} : vector<5x5xf32>, vector<5x8xf32>, vector<5x8xf32> -> vector<5x8xf32>
    %61 = vector.extract_strided_slice %43 {offsets = [0, 8], sizes = [5, 8], strides = [1, 1]} : vector<10x96xf32> to vector<5x8xf32>
    %62 = vector.extract_strided_slice %43 {offsets = [0, 40], sizes = [5, 8], strides = [1, 1]} : vector<10x96xf32> to vector<5x8xf32>
    %63 = vector.extract_strided_slice %43 {offsets = [0, 72], sizes = [5, 8], strides = [1, 1]} : vector<10x96xf32> to vector<5x8xf32>
    %cst_28 = arith.constant dense<0.000000e+00> : vector<5x5xf32>
    %64 = tpu.matmul %61, %62, %cst_28 {dimension_numbers = #tpu.dot_dimension_numbers<[1], [1], [0], [0], [0, 0, 1, 0], [], []>} : vector<5x8xf32>, vector<5x8xf32>, vector<5x5xf32> -> vector<5x5xf32>
    %cst_29 = arith.constant 0.353553385 : f32
    %65 = vector.broadcast %cst_29 : f32 to vector<5x5xf32>
    %66 = arith.mulf %64, %65 : vector<5x5xf32>
    %cst_30 = arith.constant dense<0xFF800000> : vector<5xf32>
    %67 = vector.multi_reduction <maximumf>, %66, %cst_30 [1] : vector<5x5xf32> to vector<5xf32>
    %68 = vector.shape_cast %67 : vector<5xf32> to vector<5x1xf32>
    %69 = vector.broadcast %68 : vector<5x1xf32> to vector<5x5xf32>
    %70 = arith.subf %66, %69 : vector<5x5xf32>
    %71 = math.exp %70 : vector<5x5xf32>
    %cst_31 = arith.constant dense<0.000000e+00> : vector<5xf32>
    %72 = vector.multi_reduction <add>, %71, %cst_31 [1] : vector<5x5xf32> to vector<5xf32>
    %73 = vector.shape_cast %72 : vector<5xf32> to vector<5x1xf32>
    %74 = tpu.reciprocal %73 {approx = true} : vector<5x1xf32> -> vector<5x1xf32>
    %75 = vector.broadcast %74 : vector<5x1xf32> to vector<5x5xf32>
    %76 = arith.mulf %71, %75 : vector<5x5xf32>
    %cst_32 = arith.constant dense<0.000000e+00> : vector<5x8xf32>
    %77 = tpu.matmul %76, %63, %cst_32 {dimension_numbers = #tpu.dot_dimension_numbers<[1], [0], [0], [1], [0, 0, 1, 1], [], []>} : vector<5x5xf32>, vector<5x8xf32>, vector<5x8xf32> -> vector<5x8xf32>
    %78 = vector.extract_strided_slice %43 {offsets = [0, 16], sizes = [5, 8], strides = [1, 1]} : vector<10x96xf32> to vector<5x8xf32>
    %79 = vector.extract_strided_slice %43 {offsets = [0, 48], sizes = [5, 8], strides = [1, 1]} : vector<10x96xf32> to vector<5x8xf32>
    %80 = vector.extract_strided_slice %43 {offsets = [0, 80], sizes = [5, 8], strides = [1, 1]} : vector<10x96xf32> to vector<5x8xf32>
    %cst_33 = arith.constant dense<0.000000e+00> : vector<5x5xf32>
    %81 = tpu.matmul %78, %79, %cst_33 {dimension_numbers = #tpu.dot_dimension_numbers<[1], [1], [0], [0], [0, 0, 1, 0], [], []>} : vector<5x8xf32>, vector<5x8xf32>, vector<5x5xf32> -> vector<5x5xf32>
    %cst_34 = arith.constant 0.353553385 : f32
    %82 = vector.broadcast %cst_34 : f32 to vector<5x5xf32>
    %83 = arith.mulf %81, %82 : vector<5x5xf32>
    %cst_35 = arith.constant dense<0xFF800000> : vector<5xf32>
    %84 = vector.multi_reduction <maximumf>, %83, %cst_35 [1] : vector<5x5xf32> to vector<5xf32>
    %85 = vector.shape_cast %84 : vector<5xf32> to vector<5x1xf32>
    %86 = vector.broadcast %85 : vector<5x1xf32> to vector<5x5xf32>
    %87 = arith.subf %83, %86 : vector<5x5xf32>
    %88 = math.exp %87 : vector<5x5xf32>
    %cst_36 = arith.constant dense<0.000000e+00> : vector<5xf32>
    %89 = vector.multi_reduction <add>, %88, %cst_36 [1] : vector<5x5xf32> to vector<5xf32>
    %90 = vector.shape_cast %89 : vector<5xf32> to vector<5x1xf32>
    %91 = tpu.reciprocal %90 {approx = true} : vector<5x1xf32> -> vector<5x1xf32>
    %92 = vector.broadcast %91 : vector<5x1xf32> to vector<5x5xf32>
    %93 = arith.mulf %88, %92 : vector<5x5xf32>
    %cst_37 = arith.constant dense<0.000000e+00> : vector<5x8xf32>
    %94 = tpu.matmul %93, %80, %cst_37 {dimension_numbers = #tpu.dot_dimension_numbers<[1], [0], [0], [1], [0, 0, 1, 1], [], []>} : vector<5x5xf32>, vector<5x8xf32>, vector<5x8xf32> -> vector<5x8xf32>
    %95 = vector.extract_strided_slice %43 {offsets = [0, 24], sizes = [5, 8], strides = [1, 1]} : vector<10x96xf32> to vector<5x8xf32>
    %96 = vector.extract_strided_slice %43 {offsets = [0, 56], sizes = [5, 8], strides = [1, 1]} : vector<10x96xf32> to vector<5x8xf32>
    %97 = vector.extract_strided_slice %43 {offsets = [0, 88], sizes = [5, 8], strides = [1, 1]} : vector<10x96xf32> to vector<5x8xf32>
    %cst_38 = arith.constant dense<0.000000e+00> : vector<5x5xf32>
    %98 = tpu.matmul %95, %96, %cst_38 {dimension_numbers = #tpu.dot_dimension_numbers<[1], [1], [0], [0], [0, 0, 1, 0], [], []>} : vector<5x8xf32>, vector<5x8xf32>, vector<5x5xf32> -> vector<5x5xf32>
    %cst_39 = arith.constant 0.353553385 : f32
    %99 = vector.broadcast %cst_39 : f32 to vector<5x5xf32>
    %100 = arith.mulf %98, %99 : vector<5x5xf32>
    %cst_40 = arith.constant dense<0xFF800000> : vector<5xf32>
    %101 = vector.multi_reduction <maximumf>, %100, %cst_40 [1] : vector<5x5xf32> to vector<5xf32>
    %102 = vector.shape_cast %101 : vector<5xf32> to vector<5x1xf32>
    %103 = vector.broadcast %102 : vector<5x1xf32> to vector<5x5xf32>
    %104 = arith.subf %100, %103 : vector<5x5xf32>
    %105 = math.exp %104 : vector<5x5xf32>
    %cst_41 = arith.constant dense<0.000000e+00> : vector<5xf32>
    %106 = vector.multi_reduction <add>, %105, %cst_41 [1] : vector<5x5xf32> to vector<5xf32>
    %107 = vector.shape_cast %106 : vector<5xf32> to vector<5x1xf32>
    %108 = tpu.reciprocal %107 {approx = true} : vector<5x1xf32> -> vector<5x1xf32>
    %109 = vector.broadcast %108 : vector<5x1xf32> to vector<5x5xf32>
    %110 = arith.mulf %105, %109 : vector<5x5xf32>
    %cst_42 = arith.constant dense<0.000000e+00> : vector<5x8xf32>
    %111 = tpu.matmul %110, %97, %cst_42 {dimension_numbers = #tpu.dot_dimension_numbers<[1], [0], [0], [1], [0, 0, 1, 1], [], []>} : vector<5x5xf32>, vector<5x8xf32>, vector<5x8xf32> -> vector<5x8xf32>
    %112 = tpu.concatenate %60, %77, %94, %111 in 1 : vector<5x8xf32>, vector<5x8xf32>, vector<5x8xf32>, vector<5x8xf32> -> vector<5x32xf32>
    %113 = vector.extract_strided_slice %43 {offsets = [5, 0], sizes = [5, 8], strides = [1, 1]} : vector<10x96xf32> to vector<5x8xf32>
    %114 = vector.extract_strided_slice %43 {offsets = [5, 32], sizes = [5, 8], strides = [1, 1]} : vector<10x96xf32> to vector<5x8xf32>
    %115 = vector.extract_strided_slice %43 {offsets = [5, 64], sizes = [5, 8], strides = [1, 1]} : vector<10x96xf32> to vector<5x8xf32>
    %cst_43 = arith.constant dense<0.000000e+00> : vector<5x5xf32>
    %116 = tpu.matmul %113, %114, %cst_43 {dimension_numbers = #tpu.dot_dimension_numbers<[1], [1], [0], [0], [0, 0, 1, 0], [], []>} : vector<5x8xf32>, vector<5x8xf32>, vector<5x5xf32> -> vector<5x5xf32>
    %cst_44 = arith.constant 0.353553385 : f32
    %117 = vector.broadcast %cst_44 : f32 to vector<5x5xf32>
    %118 = arith.mulf %116, %117 : vector<5x5xf32>
    %cst_45 = arith.constant dense<0xFF800000> : vector<5xf32>
    %119 = vector.multi_reduction <maximumf>, %118, %cst_45 [1] : vector<5x5xf32> to vector<5xf32>
    %120 = vector.shape_cast %119 : vector<5xf32> to vector<5x1xf32>
    %121 = vector.broadcast %120 : vector<5x1xf32> to vector<5x5xf32>
    %122 = arith.subf %118, %121 : vector<5x5xf32>
    %123 = math.exp %122 : vector<5x5xf32>
    %cst_46 = arith.constant dense<0.000000e+00> : vector<5xf32>
    %124 = vector.multi_reduction <add>, %123, %cst_46 [1] : vector<5x5xf32> to vector<5xf32>
    %125 = vector.shape_cast %124 : vector<5xf32> to vector<5x1xf32>
    %126 = tpu.reciprocal %125 {approx = true} : vector<5x1xf32> -> vector<5x1xf32>
    %127 = vector.broadcast %126 : vector<5x1xf32> to vector<5x5xf32>
    %128 = arith.mulf %123, %127 : vector<5x5xf32>
    %cst_47 = arith.constant dense<0.000000e+00> : vector<5x8xf32>
    %129 = tpu.matmul %128, %115, %cst_47 {dimension_numbers = #tpu.dot_dimension_numbers<[1], [0], [0], [1], [0, 0, 1, 1], [], []>} : vector<5x5xf32>, vector<5x8xf32>, vector<5x8xf32> -> vector<5x8xf32>
    %130 = vector.extract_strided_slice %43 {offsets = [5, 8], sizes = [5, 8], strides = [1, 1]} : vector<10x96xf32> to vector<5x8xf32>
    %131 = vector.extract_strided_slice %43 {offsets = [5, 40], sizes = [5, 8], strides = [1, 1]} : vector<10x96xf32> to vector<5x8xf32>
    %132 = vector.extract_strided_slice %43 {offsets = [5, 72], sizes = [5, 8], strides = [1, 1]} : vector<10x96xf32> to vector<5x8xf32>
    %cst_48 = arith.constant dense<0.000000e+00> : vector<5x5xf32>
    %133 = tpu.matmul %130, %131, %cst_48 {dimension_numbers = #tpu.dot_dimension_numbers<[1], [1], [0], [0], [0, 0, 1, 0], [], []>} : vector<5x8xf32>, vector<5x8xf32>, vector<5x5xf32> -> vector<5x5xf32>
    %cst_49 = arith.constant 0.353553385 : f32
    %134 = vector.broadcast %cst_49 : f32 to vector<5x5xf32>
    %135 = arith.mulf %133, %134 : vector<5x5xf32>
    %cst_50 = arith.constant dense<0xFF800000> : vector<5xf32>
    %136 = vector.multi_reduction <maximumf>, %135, %cst_50 [1] : vector<5x5xf32> to vector<5xf32>
    %137 = vector.shape_cast %136 : vector<5xf32> to vector<5x1xf32>
    %138 = vector.broadcast %137 : vector<5x1xf32> to vector<5x5xf32>
    %139 = arith.subf %135, %138 : vector<5x5xf32>
    %140 = math.exp %139 : vector<5x5xf32>
    %cst_51 = arith.constant dense<0.000000e+00> : vector<5xf32>
    %141 = vector.multi_reduction <add>, %140, %cst_51 [1] : vector<5x5xf32> to vector<5xf32>
    %142 = vector.shape_cast %141 : vector<5xf32> to vector<5x1xf32>
    %143 = tpu.reciprocal %142 {approx = true} : vector<5x1xf32> -> vector<5x1xf32>
    %144 = vector.broadcast %143 : vector<5x1xf32> to vector<5x5xf32>
    %145 = arith.mulf %140, %144 : vector<5x5xf32>
    %cst_52 = arith.constant dense<0.000000e+00> : vector<5x8xf32>
    %146 = tpu.matmul %145, %132, %cst_52 {dimension_numbers = #tpu.dot_dimension_numbers<[1], [0], [0], [1], [0, 0, 1, 1], [], []>} : vector<5x5xf32>, vector<5x8xf32>, vector<5x8xf32> -> vector<5x8xf32>
    %147 = vector.extract_strided_slice %43 {offsets = [5, 16], sizes = [5, 8], strides = [1, 1]} : vector<10x96xf32> to vector<5x8xf32>
    %148 = vector.extract_strided_slice %43 {offsets = [5, 48], sizes = [5, 8], strides = [1, 1]} : vector<10x96xf32> to vector<5x8xf32>
    %149 = vector.extract_strided_slice %43 {offsets = [5, 80], sizes = [5, 8], strides = [1, 1]} : vector<10x96xf32> to vector<5x8xf32>
    %cst_53 = arith.constant dense<0.000000e+00> : vector<5x5xf32>
    %150 = tpu.matmul %147, %148, %cst_53 {dimension_numbers = #tpu.dot_dimension_numbers<[1], [1], [0], [0], [0, 0, 1, 0], [], []>} : vector<5x8xf32>, vector<5x8xf32>, vector<5x5xf32> -> vector<5x5xf32>
    %cst_54 = arith.constant 0.353553385 : f32
    %151 = vector.broadcast %cst_54 : f32 to vector<5x5xf32>
    %152 = arith.mulf %150, %151 : vector<5x5xf32>
    %cst_55 = arith.constant dense<0xFF800000> : vector<5xf32>
    %153 = vector.multi_reduction <maximumf>, %152, %cst_55 [1] : vector<5x5xf32> to vector<5xf32>
    %154 = vector.shape_cast %153 : vector<5xf32> to vector<5x1xf32>
    %155 = vector.broadcast %154 : vector<5x1xf32> to vector<5x5xf32>
    %156 = arith.subf %152, %155 : vector<5x5xf32>
    %157 = math.exp %156 : vector<5x5xf32>
    %cst_56 = arith.constant dense<0.000000e+00> : vector<5xf32>
    %158 = vector.multi_reduction <add>, %157, %cst_56 [1] : vector<5x5xf32> to vector<5xf32>
    %159 = vector.shape_cast %158 : vector<5xf32> to vector<5x1xf32>
    %160 = tpu.reciprocal %159 {approx = true} : vector<5x1xf32> -> vector<5x1xf32>
    %161 = vector.broadcast %160 : vector<5x1xf32> to vector<5x5xf32>
    %162 = arith.mulf %157, %161 : vector<5x5xf32>
    %cst_57 = arith.constant dense<0.000000e+00> : vector<5x8xf32>
    %163 = tpu.matmul %162, %149, %cst_57 {dimension_numbers = #tpu.dot_dimension_numbers<[1], [0], [0], [1], [0, 0, 1, 1], [], []>} : vector<5x5xf32>, vector<5x8xf32>, vector<5x8xf32> -> vector<5x8xf32>
    %164 = vector.extract_strided_slice %43 {offsets = [5, 24], sizes = [5, 8], strides = [1, 1]} : vector<10x96xf32> to vector<5x8xf32>
    %165 = vector.extract_strided_slice %43 {offsets = [5, 56], sizes = [5, 8], strides = [1, 1]} : vector<10x96xf32> to vector<5x8xf32>
    %166 = vector.extract_strided_slice %43 {offsets = [5, 88], sizes = [5, 8], strides = [1, 1]} : vector<10x96xf32> to vector<5x8xf32>
    %cst_58 = arith.constant dense<0.000000e+00> : vector<5x5xf32>
    %167 = tpu.matmul %164, %165, %cst_58 {dimension_numbers = #tpu.dot_dimension_numbers<[1], [1], [0], [0], [0, 0, 1, 0], [], []>} : vector<5x8xf32>, vector<5x8xf32>, vector<5x5xf32> -> vector<5x5xf32>
    %cst_59 = arith.constant 0.353553385 : f32
    %168 = vector.broadcast %cst_59 : f32 to vector<5x5xf32>
    %169 = arith.mulf %167, %168 : vector<5x5xf32>
    %cst_60 = arith.constant dense<0xFF800000> : vector<5xf32>
    %170 = vector.multi_reduction <maximumf>, %169, %cst_60 [1] : vector<5x5xf32> to vector<5xf32>
    %171 = vector.shape_cast %170 : vector<5xf32> to vector<5x1xf32>
    %172 = vector.broadcast %171 : vector<5x1xf32> to vector<5x5xf32>
    %173 = arith.subf %169, %172 : vector<5x5xf32>
    %174 = math.exp %173 : vector<5x5xf32>
    %cst_61 = arith.constant dense<0.000000e+00> : vector<5xf32>
    %175 = vector.multi_reduction <add>, %174, %cst_61 [1] : vector<5x5xf32> to vector<5xf32>
    %176 = vector.shape_cast %175 : vector<5xf32> to vector<5x1xf32>
    %177 = tpu.reciprocal %176 {approx = true} : vector<5x1xf32> -> vector<5x1xf32>
    %178 = vector.broadcast %177 : vector<5x1xf32> to vector<5x5xf32>
    %179 = arith.mulf %174, %178 : vector<5x5xf32>
    %cst_62 = arith.constant dense<0.000000e+00> : vector<5x8xf32>
    %180 = tpu.matmul %179, %166, %cst_62 {dimension_numbers = #tpu.dot_dimension_numbers<[1], [0], [0], [1], [0, 0, 1, 1], [], []>} : vector<5x5xf32>, vector<5x8xf32>, vector<5x8xf32> -> vector<5x8xf32>
    %181 = tpu.concatenate %129, %146, %163, %180 in 1 : vector<5x8xf32>, vector<5x8xf32>, vector<5x8xf32>, vector<5x8xf32> -> vector<5x32xf32>
    %182 = tpu.concatenate %112, %181 in 0 : vector<5x32xf32>, vector<5x32xf32> -> vector<10x32xf32>
    %c0_63 = arith.constant 0 : index
    %c0_64 = arith.constant 0 : index
    %183 = vector.load %arg10[%c0_63, %c0_64] : memref<32x32xf32, #tpu.memory_space<vmem>>, vector<32x32xf32>
    %cst_65 = arith.constant dense<0.000000e+00> : vector<10x32xf32>
    %184 = tpu.matmul %182, %183, %cst_65 {dimension_numbers = #tpu.dot_dimension_numbers<[1], [0], [0], [1], [0, 0, 1, 1], [], []>} : vector<10x32xf32>, vector<32x32xf32>, vector<10x32xf32> -> vector<10x32xf32>
    %185 = arith.addf %16, %184 : vector<10x32xf32>
    %c0_66 = arith.constant 0 : index
    %c0_67 = arith.constant 0 : index
    %186 = vector.load %arg11[%c0_66, %c0_67] : memref<1x32xf32, #tpu.memory_space<vmem>>, vector<1x32xf32>
    %187 = vector.broadcast %186 : vector<1x32xf32> to vector<10x32xf32>
    %188 = arith.addf %185, %187 : vector<10x32xf32>
    %c0_68 = arith.constant 0 : index
    %c0_69 = arith.constant 0 : index
    %189 = vector.load %arg12[%c0_68, %c0_69] : memref<1x32xf32, #tpu.memory_space<vmem>>, vector<1x32xf32>
    %c0_70 = arith.constant 0 : index
    %c0_71 = arith.constant 0 : index
    %190 = vector.load %arg13[%c0_70, %c0_71] : memref<1x32xf32, #tpu.memory_space<vmem>>, vector<1x32xf32>
    %cst_72 = arith.constant dense<0.000000e+00> : vector<10xf32>
    %191 = vector.multi_reduction <add>, %188, %cst_72 [1] : vector<10x32xf32> to vector<10xf32>
    %192 = vector.shape_cast %191 : vector<10xf32> to vector<10x1xf32>
    %cst_73 = arith.constant 3.200000e+01 : f32
    %193 = vector.broadcast %cst_73 : f32 to vector<10x1xf32>
    %194 = arith.divf %192, %193 : vector<10x1xf32>
    %195 = vector.broadcast %194 : vector<10x1xf32> to vector<10x32xf32>
    %196 = arith.subf %188, %195 : vector<10x32xf32>
    %197 = arith.mulf %196, %196 : vector<10x32xf32>
    %cst_74 = arith.constant dense<0.000000e+00> : vector<10xf32>
    %198 = vector.multi_reduction <add>, %197, %cst_74 [1] : vector<10x32xf32> to vector<10xf32>
    %199 = vector.shape_cast %198 : vector<10xf32> to vector<10x1xf32>
    %cst_75 = arith.constant 3.200000e+01 : f32
    %200 = vector.broadcast %cst_75 : f32 to vector<10x1xf32>
    %201 = arith.divf %199, %200 : vector<10x1xf32>
    %cst_76 = arith.constant 9.99999996E-13 : f32
    %202 = vector.broadcast %cst_76 : f32 to vector<10x1xf32>
    %203 = arith.addf %201, %202 : vector<10x1xf32>
    %204 = math.rsqrt %203 : vector<10x1xf32>
    %205 = vector.broadcast %204 : vector<10x1xf32> to vector<10x32xf32>
    %206 = arith.mulf %196, %205 : vector<10x32xf32>
    %207 = vector.broadcast %189 : vector<1x32xf32> to vector<10x32xf32>
    %208 = arith.mulf %206, %207 : vector<10x32xf32>
    %209 = vector.broadcast %190 : vector<1x32xf32> to vector<10x32xf32>
    %210 = arith.addf %208, %209 : vector<10x32xf32>
    %c0_77 = arith.constant 0 : index
    %c0_78 = arith.constant 0 : index
    %211 = vector.load %arg14[%c0_77, %c0_78] : memref<32x64xf32, #tpu.memory_space<vmem>>, vector<32x64xf32>
    %cst_79 = arith.constant dense<0.000000e+00> : vector<10x64xf32>
    %212 = tpu.matmul %210, %211, %cst_79 {dimension_numbers = #tpu.dot_dimension_numbers<[1], [0], [0], [1], [0, 0, 1, 1], [], []>} : vector<10x32xf32>, vector<32x64xf32>, vector<10x64xf32> -> vector<10x64xf32>
    %c0_80 = arith.constant 0 : index
    %c0_81 = arith.constant 0 : index
    %213 = vector.load %arg15[%c0_80, %c0_81] : memref<1x64xf32, #tpu.memory_space<vmem>>, vector<1x64xf32>
    %214 = vector.broadcast %213 : vector<1x64xf32> to vector<10x64xf32>
    %215 = arith.addf %212, %214 : vector<10x64xf32>
    %cst_82 = arith.constant 5.000000e-01 : f32
    %216 = vector.broadcast %cst_82 : f32 to vector<10x64xf32>
    %217 = arith.mulf %216, %215 : vector<10x64xf32>
    %cst_83 = arith.constant 0.707106769 : f32
    %218 = vector.broadcast %cst_83 : f32 to vector<10x64xf32>
    %219 = arith.mulf %215, %218 : vector<10x64xf32>
    %220 = math.erf %219 : vector<10x64xf32>
    %cst_84 = arith.constant 1.000000e+00 : f32
    %221 = vector.broadcast %cst_84 : f32 to vector<10x64xf32>
    %222 = arith.addf %221, %220 : vector<10x64xf32>
    %223 = arith.mulf %217, %222 : vector<10x64xf32>
    %c0_85 = arith.constant 0 : index
    %c0_86 = arith.constant 0 : index
    %224 = vector.load %arg16[%c0_85, %c0_86] : memref<64x32xf32, #tpu.memory_space<vmem>>, vector<64x32xf32>
    %cst_87 = arith.constant dense<0.000000e+00> : vector<10x32xf32>
    %225 = tpu.matmul %223, %224, %cst_87 {dimension_numbers = #tpu.dot_dimension_numbers<[1], [0], [0], [1], [0, 0, 1, 1], [], []>} : vector<10x64xf32>, vector<64x32xf32>, vector<10x32xf32> -> vector<10x32xf32>
    %226 = arith.addf %188, %225 : vector<10x32xf32>
    %c0_88 = arith.constant 0 : index
    %c0_89 = arith.constant 0 : index
    %227 = vector.load %arg17[%c0_88, %c0_89] : memref<1x32xf32, #tpu.memory_space<vmem>>, vector<1x32xf32>
    %228 = vector.broadcast %227 : vector<1x32xf32> to vector<10x32xf32>
    %229 = arith.addf %226, %228 : vector<10x32xf32>
    %c0_90 = arith.constant 0 : index
    %c0_91 = arith.constant 0 : index
    %230 = vector.load %arg18[%c0_90, %c0_91] : memref<1x32xf32, #tpu.memory_space<vmem>>, vector<1x32xf32>
    %c0_92 = arith.constant 0 : index
    %c0_93 = arith.constant 0 : index
    %231 = vector.load %arg19[%c0_92, %c0_93] : memref<1x32xf32, #tpu.memory_space<vmem>>, vector<1x32xf32>
    %cst_94 = arith.constant dense<0.000000e+00> : vector<10xf32>
    %232 = vector.multi_reduction <add>, %229, %cst_94 [1] : vector<10x32xf32> to vector<10xf32>
    %233 = vector.shape_cast %232 : vector<10xf32> to vector<10x1xf32>
    %cst_95 = arith.constant 3.200000e+01 : f32
    %234 = vector.broadcast %cst_95 : f32 to vector<10x1xf32>
    %235 = arith.divf %233, %234 : vector<10x1xf32>
    %236 = vector.broadcast %235 : vector<10x1xf32> to vector<10x32xf32>
    %237 = arith.subf %229, %236 : vector<10x32xf32>
    %238 = arith.mulf %237, %237 : vector<10x32xf32>
    %cst_96 = arith.constant dense<0.000000e+00> : vector<10xf32>
    %239 = vector.multi_reduction <add>, %238, %cst_96 [1] : vector<10x32xf32> to vector<10xf32>
    %240 = vector.shape_cast %239 : vector<10xf32> to vector<10x1xf32>
    %cst_97 = arith.constant 3.200000e+01 : f32
    %241 = vector.broadcast %cst_97 : f32 to vector<10x1xf32>
    %242 = arith.divf %240, %241 : vector<10x1xf32>
    %cst_98 = arith.constant 9.99999996E-13 : f32
    %243 = vector.broadcast %cst_98 : f32 to vector<10x1xf32>
    %244 = arith.addf %242, %243 : vector<10x1xf32>
    %245 = math.rsqrt %244 : vector<10x1xf32>
    %246 = vector.broadcast %245 : vector<10x1xf32> to vector<10x32xf32>
    %247 = arith.mulf %237, %246 : vector<10x32xf32>
    %248 = vector.broadcast %230 : vector<1x32xf32> to vector<10x32xf32>
    %249 = arith.mulf %247, %248 : vector<10x32xf32>
    %250 = vector.broadcast %231 : vector<1x32xf32> to vector<10x32xf32>
    %251 = arith.addf %249, %250 : vector<10x32xf32>
    %c0_99 = arith.constant 0 : index
    %c0_100 = arith.constant 0 : index
    %252 = vector.load %arg20[%c0_99, %c0_100] : memref<32x96xf32, #tpu.memory_space<vmem>>, vector<32x96xf32>
    %cst_101 = arith.constant dense<0.000000e+00> : vector<10x96xf32>
    %253 = tpu.matmul %251, %252, %cst_101 {dimension_numbers = #tpu.dot_dimension_numbers<[1], [0], [0], [1], [0, 0, 1, 1], [], []>} : vector<10x32xf32>, vector<32x96xf32>, vector<10x96xf32> -> vector<10x96xf32>
    %c0_102 = arith.constant 0 : index
    %c0_103 = arith.constant 0 : index
    %254 = vector.load %arg21[%c0_102, %c0_103] : memref<1x96xf32, #tpu.memory_space<vmem>>, vector<1x96xf32>
    %255 = vector.broadcast %254 : vector<1x96xf32> to vector<10x96xf32>
    %256 = arith.addf %253, %255 : vector<10x96xf32>
    %257 = vector.extract_strided_slice %256 {offsets = [0, 0], sizes = [5, 8], strides = [1, 1]} : vector<10x96xf32> to vector<5x8xf32>
    %258 = vector.extract_strided_slice %256 {offsets = [0, 32], sizes = [5, 8], strides = [1, 1]} : vector<10x96xf32> to vector<5x8xf32>
    %259 = vector.extract_strided_slice %256 {offsets = [0, 64], sizes = [5, 8], strides = [1, 1]} : vector<10x96xf32> to vector<5x8xf32>
    %cst_104 = arith.constant dense<0.000000e+00> : vector<5x5xf32>
    %260 = tpu.matmul %257, %258, %cst_104 {dimension_numbers = #tpu.dot_dimension_numbers<[1], [1], [0], [0], [0, 0, 1, 0], [], []>} : vector<5x8xf32>, vector<5x8xf32>, vector<5x5xf32> -> vector<5x5xf32>
    %cst_105 = arith.constant 0.353553385 : f32
    %261 = vector.broadcast %cst_105 : f32 to vector<5x5xf32>
    %262 = arith.mulf %260, %261 : vector<5x5xf32>
    %cst_106 = arith.constant dense<0xFF800000> : vector<5xf32>
    %263 = vector.multi_reduction <maximumf>, %262, %cst_106 [1] : vector<5x5xf32> to vector<5xf32>
    %264 = vector.shape_cast %263 : vector<5xf32> to vector<5x1xf32>
    %265 = vector.broadcast %264 : vector<5x1xf32> to vector<5x5xf32>
    %266 = arith.subf %262, %265 : vector<5x5xf32>
    %267 = math.exp %266 : vector<5x5xf32>
    %cst_107 = arith.constant dense<0.000000e+00> : vector<5xf32>
    %268 = vector.multi_reduction <add>, %267, %cst_107 [1] : vector<5x5xf32> to vector<5xf32>
    %269 = vector.shape_cast %268 : vector<5xf32> to vector<5x1xf32>
    %270 = tpu.reciprocal %269 {approx = true} : vector<5x1xf32> -> vector<5x1xf32>
    %271 = vector.broadcast %270 : vector<5x1xf32> to vector<5x5xf32>
    %272 = arith.mulf %267, %271 : vector<5x5xf32>
    %cst_108 = arith.constant dense<0.000000e+00> : vector<5x8xf32>
    %273 = tpu.matmul %272, %259, %cst_108 {dimension_numbers = #tpu.dot_dimension_numbers<[1], [0], [0], [1], [0, 0, 1, 1], [], []>} : vector<5x5xf32>, vector<5x8xf32>, vector<5x8xf32> -> vector<5x8xf32>
    %274 = vector.extract_strided_slice %256 {offsets = [0, 8], sizes = [5, 8], strides = [1, 1]} : vector<10x96xf32> to vector<5x8xf32>
    %275 = vector.extract_strided_slice %256 {offsets = [0, 40], sizes = [5, 8], strides = [1, 1]} : vector<10x96xf32> to vector<5x8xf32>
    %276 = vector.extract_strided_slice %256 {offsets = [0, 72], sizes = [5, 8], strides = [1, 1]} : vector<10x96xf32> to vector<5x8xf32>
    %cst_109 = arith.constant dense<0.000000e+00> : vector<5x5xf32>
    %277 = tpu.matmul %274, %275, %cst_109 {dimension_numbers = #tpu.dot_dimension_numbers<[1], [1], [0], [0], [0, 0, 1, 0], [], []>} : vector<5x8xf32>, vector<5x8xf32>, vector<5x5xf32> -> vector<5x5xf32>
    %cst_110 = arith.constant 0.353553385 : f32
    %278 = vector.broadcast %cst_110 : f32 to vector<5x5xf32>
    %279 = arith.mulf %277, %278 : vector<5x5xf32>
    %cst_111 = arith.constant dense<0xFF800000> : vector<5xf32>
    %280 = vector.multi_reduction <maximumf>, %279, %cst_111 [1] : vector<5x5xf32> to vector<5xf32>
    %281 = vector.shape_cast %280 : vector<5xf32> to vector<5x1xf32>
    %282 = vector.broadcast %281 : vector<5x1xf32> to vector<5x5xf32>
    %283 = arith.subf %279, %282 : vector<5x5xf32>
    %284 = math.exp %283 : vector<5x5xf32>
    %cst_112 = arith.constant dense<0.000000e+00> : vector<5xf32>
    %285 = vector.multi_reduction <add>, %284, %cst_112 [1] : vector<5x5xf32> to vector<5xf32>
    %286 = vector.shape_cast %285 : vector<5xf32> to vector<5x1xf32>
    %287 = tpu.reciprocal %286 {approx = true} : vector<5x1xf32> -> vector<5x1xf32>
    %288 = vector.broadcast %287 : vector<5x1xf32> to vector<5x5xf32>
    %289 = arith.mulf %284, %288 : vector<5x5xf32>
    %cst_113 = arith.constant dense<0.000000e+00> : vector<5x8xf32>
    %290 = tpu.matmul %289, %276, %cst_113 {dimension_numbers = #tpu.dot_dimension_numbers<[1], [0], [0], [1], [0, 0, 1, 1], [], []>} : vector<5x5xf32>, vector<5x8xf32>, vector<5x8xf32> -> vector<5x8xf32>
    %291 = vector.extract_strided_slice %256 {offsets = [0, 16], sizes = [5, 8], strides = [1, 1]} : vector<10x96xf32> to vector<5x8xf32>
    %292 = vector.extract_strided_slice %256 {offsets = [0, 48], sizes = [5, 8], strides = [1, 1]} : vector<10x96xf32> to vector<5x8xf32>
    %293 = vector.extract_strided_slice %256 {offsets = [0, 80], sizes = [5, 8], strides = [1, 1]} : vector<10x96xf32> to vector<5x8xf32>
    %cst_114 = arith.constant dense<0.000000e+00> : vector<5x5xf32>
    %294 = tpu.matmul %291, %292, %cst_114 {dimension_numbers = #tpu.dot_dimension_numbers<[1], [1], [0], [0], [0, 0, 1, 0], [], []>} : vector<5x8xf32>, vector<5x8xf32>, vector<5x5xf32> -> vector<5x5xf32>
    %cst_115 = arith.constant 0.353553385 : f32
    %295 = vector.broadcast %cst_115 : f32 to vector<5x5xf32>
    %296 = arith.mulf %294, %295 : vector<5x5xf32>
    %cst_116 = arith.constant dense<0xFF800000> : vector<5xf32>
    %297 = vector.multi_reduction <maximumf>, %296, %cst_116 [1] : vector<5x5xf32> to vector<5xf32>
    %298 = vector.shape_cast %297 : vector<5xf32> to vector<5x1xf32>
    %299 = vector.broadcast %298 : vector<5x1xf32> to vector<5x5xf32>
    %300 = arith.subf %296, %299 : vector<5x5xf32>
    %301 = math.exp %300 : vector<5x5xf32>
    %cst_117 = arith.constant dense<0.000000e+00> : vector<5xf32>
    %302 = vector.multi_reduction <add>, %301, %cst_117 [1] : vector<5x5xf32> to vector<5xf32>
    %303 = vector.shape_cast %302 : vector<5xf32> to vector<5x1xf32>
    %304 = tpu.reciprocal %303 {approx = true} : vector<5x1xf32> -> vector<5x1xf32>
    %305 = vector.broadcast %304 : vector<5x1xf32> to vector<5x5xf32>
    %306 = arith.mulf %301, %305 : vector<5x5xf32>
    %cst_118 = arith.constant dense<0.000000e+00> : vector<5x8xf32>
    %307 = tpu.matmul %306, %293, %cst_118 {dimension_numbers = #tpu.dot_dimension_numbers<[1], [0], [0], [1], [0, 0, 1, 1], [], []>} : vector<5x5xf32>, vector<5x8xf32>, vector<5x8xf32> -> vector<5x8xf32>
    %308 = vector.extract_strided_slice %256 {offsets = [0, 24], sizes = [5, 8], strides = [1, 1]} : vector<10x96xf32> to vector<5x8xf32>
    %309 = vector.extract_strided_slice %256 {offsets = [0, 56], sizes = [5, 8], strides = [1, 1]} : vector<10x96xf32> to vector<5x8xf32>
    %310 = vector.extract_strided_slice %256 {offsets = [0, 88], sizes = [5, 8], strides = [1, 1]} : vector<10x96xf32> to vector<5x8xf32>
    %cst_119 = arith.constant dense<0.000000e+00> : vector<5x5xf32>
    %311 = tpu.matmul %308, %309, %cst_119 {dimension_numbers = #tpu.dot_dimension_numbers<[1], [1], [0], [0], [0, 0, 1, 0], [], []>} : vector<5x8xf32>, vector<5x8xf32>, vector<5x5xf32> -> vector<5x5xf32>
    %cst_120 = arith.constant 0.353553385 : f32
    %312 = vector.broadcast %cst_120 : f32 to vector<5x5xf32>
    %313 = arith.mulf %311, %312 : vector<5x5xf32>
    %cst_121 = arith.constant dense<0xFF800000> : vector<5xf32>
    %314 = vector.multi_reduction <maximumf>, %313, %cst_121 [1] : vector<5x5xf32> to vector<5xf32>
    %315 = vector.shape_cast %314 : vector<5xf32> to vector<5x1xf32>
    %316 = vector.broadcast %315 : vector<5x1xf32> to vector<5x5xf32>
    %317 = arith.subf %313, %316 : vector<5x5xf32>
    %318 = math.exp %317 : vector<5x5xf32>
    %cst_122 = arith.constant dense<0.000000e+00> : vector<5xf32>
    %319 = vector.multi_reduction <add>, %318, %cst_122 [1] : vector<5x5xf32> to vector<5xf32>
    %320 = vector.shape_cast %319 : vector<5xf32> to vector<5x1xf32>
    %321 = tpu.reciprocal %320 {approx = true} : vector<5x1xf32> -> vector<5x1xf32>
    %322 = vector.broadcast %321 : vector<5x1xf32> to vector<5x5xf32>
    %323 = arith.mulf %318, %322 : vector<5x5xf32>
    %cst_123 = arith.constant dense<0.000000e+00> : vector<5x8xf32>
    %324 = tpu.matmul %323, %310, %cst_123 {dimension_numbers = #tpu.dot_dimension_numbers<[1], [0], [0], [1], [0, 0, 1, 1], [], []>} : vector<5x5xf32>, vector<5x8xf32>, vector<5x8xf32> -> vector<5x8xf32>
    %325 = tpu.concatenate %273, %290, %307, %324 in 1 : vector<5x8xf32>, vector<5x8xf32>, vector<5x8xf32>, vector<5x8xf32> -> vector<5x32xf32>
    %326 = vector.extract_strided_slice %256 {offsets = [5, 0], sizes = [5, 8], strides = [1, 1]} : vector<10x96xf32> to vector<5x8xf32>
    %327 = vector.extract_strided_slice %256 {offsets = [5, 32], sizes = [5, 8], strides = [1, 1]} : vector<10x96xf32> to vector<5x8xf32>
    %328 = vector.extract_strided_slice %256 {offsets = [5, 64], sizes = [5, 8], strides = [1, 1]} : vector<10x96xf32> to vector<5x8xf32>
    %cst_124 = arith.constant dense<0.000000e+00> : vector<5x5xf32>
    %329 = tpu.matmul %326, %327, %cst_124 {dimension_numbers = #tpu.dot_dimension_numbers<[1], [1], [0], [0], [0, 0, 1, 0], [], []>} : vector<5x8xf32>, vector<5x8xf32>, vector<5x5xf32> -> vector<5x5xf32>
    %cst_125 = arith.constant 0.353553385 : f32
    %330 = vector.broadcast %cst_125 : f32 to vector<5x5xf32>
    %331 = arith.mulf %329, %330 : vector<5x5xf32>
    %cst_126 = arith.constant dense<0xFF800000> : vector<5xf32>
    %332 = vector.multi_reduction <maximumf>, %331, %cst_126 [1] : vector<5x5xf32> to vector<5xf32>
    %333 = vector.shape_cast %332 : vector<5xf32> to vector<5x1xf32>
    %334 = vector.broadcast %333 : vector<5x1xf32> to vector<5x5xf32>
    %335 = arith.subf %331, %334 : vector<5x5xf32>
    %336 = math.exp %335 : vector<5x5xf32>
    %cst_127 = arith.constant dense<0.000000e+00> : vector<5xf32>
    %337 = vector.multi_reduction <add>, %336, %cst_127 [1] : vector<5x5xf32> to vector<5xf32>
    %338 = vector.shape_cast %337 : vector<5xf32> to vector<5x1xf32>
    %339 = tpu.reciprocal %338 {approx = true} : vector<5x1xf32> -> vector<5x1xf32>
    %340 = vector.broadcast %339 : vector<5x1xf32> to vector<5x5xf32>
    %341 = arith.mulf %336, %340 : vector<5x5xf32>
    %cst_128 = arith.constant dense<0.000000e+00> : vector<5x8xf32>
    %342 = tpu.matmul %341, %328, %cst_128 {dimension_numbers = #tpu.dot_dimension_numbers<[1], [0], [0], [1], [0, 0, 1, 1], [], []>} : vector<5x5xf32>, vector<5x8xf32>, vector<5x8xf32> -> vector<5x8xf32>
    %343 = vector.extract_strided_slice %256 {offsets = [5, 8], sizes = [5, 8], strides = [1, 1]} : vector<10x96xf32> to vector<5x8xf32>
    %344 = vector.extract_strided_slice %256 {offsets = [5, 40], sizes = [5, 8], strides = [1, 1]} : vector<10x96xf32> to vector<5x8xf32>
    %345 = vector.extract_strided_slice %256 {offsets = [5, 72], sizes = [5, 8], strides = [1, 1]} : vector<10x96xf32> to vector<5x8xf32>
    %cst_129 = arith.constant dense<0.000000e+00> : vector<5x5xf32>
    %346 = tpu.matmul %343, %344, %cst_129 {dimension_numbers = #tpu.dot_dimension_numbers<[1], [1], [0], [0], [0, 0, 1, 0], [], []>} : vector<5x8xf32>, vector<5x8xf32>, vector<5x5xf32> -> vector<5x5xf32>
    %cst_130 = arith.constant 0.353553385 : f32
    %347 = vector.broadcast %cst_130 : f32 to vector<5x5xf32>
    %348 = arith.mulf %346, %347 : vector<5x5xf32>
    %cst_131 = arith.constant dense<0xFF800000> : vector<5xf32>
    %349 = vector.multi_reduction <maximumf>, %348, %cst_131 [1] : vector<5x5xf32> to vector<5xf32>
    %350 = vector.shape_cast %349 : vector<5xf32> to vector<5x1xf32>
    %351 = vector.broadcast %350 : vector<5x1xf32> to vector<5x5xf32>
    %352 = arith.subf %348, %351 : vector<5x5xf32>
    %353 = math.exp %352 : vector<5x5xf32>
    %cst_132 = arith.constant dense<0.000000e+00> : vector<5xf32>
    %354 = vector.multi_reduction <add>, %353, %cst_132 [1] : vector<5x5xf32> to vector<5xf32>
    %355 = vector.shape_cast %354 : vector<5xf32> to vector<5x1xf32>
    %356 = tpu.reciprocal %355 {approx = true} : vector<5x1xf32> -> vector<5x1xf32>
    %357 = vector.broadcast %356 : vector<5x1xf32> to vector<5x5xf32>
    %358 = arith.mulf %353, %357 : vector<5x5xf32>
    %cst_133 = arith.constant dense<0.000000e+00> : vector<5x8xf32>
    %359 = tpu.matmul %358, %345, %cst_133 {dimension_numbers = #tpu.dot_dimension_numbers<[1], [0], [0], [1], [0, 0, 1, 1], [], []>} : vector<5x5xf32>, vector<5x8xf32>, vector<5x8xf32> -> vector<5x8xf32>
    %360 = vector.extract_strided_slice %256 {offsets = [5, 16], sizes = [5, 8], strides = [1, 1]} : vector<10x96xf32> to vector<5x8xf32>
    %361 = vector.extract_strided_slice %256 {offsets = [5, 48], sizes = [5, 8], strides = [1, 1]} : vector<10x96xf32> to vector<5x8xf32>
    %362 = vector.extract_strided_slice %256 {offsets = [5, 80], sizes = [5, 8], strides = [1, 1]} : vector<10x96xf32> to vector<5x8xf32>
    %cst_134 = arith.constant dense<0.000000e+00> : vector<5x5xf32>
    %363 = tpu.matmul %360, %361, %cst_134 {dimension_numbers = #tpu.dot_dimension_numbers<[1], [1], [0], [0], [0, 0, 1, 0], [], []>} : vector<5x8xf32>, vector<5x8xf32>, vector<5x5xf32> -> vector<5x5xf32>
    %cst_135 = arith.constant 0.353553385 : f32
    %364 = vector.broadcast %cst_135 : f32 to vector<5x5xf32>
    %365 = arith.mulf %363, %364 : vector<5x5xf32>
    %cst_136 = arith.constant dense<0xFF800000> : vector<5xf32>
    %366 = vector.multi_reduction <maximumf>, %365, %cst_136 [1] : vector<5x5xf32> to vector<5xf32>
    %367 = vector.shape_cast %366 : vector<5xf32> to vector<5x1xf32>
    %368 = vector.broadcast %367 : vector<5x1xf32> to vector<5x5xf32>
    %369 = arith.subf %365, %368 : vector<5x5xf32>
    %370 = math.exp %369 : vector<5x5xf32>
    %cst_137 = arith.constant dense<0.000000e+00> : vector<5xf32>
    %371 = vector.multi_reduction <add>, %370, %cst_137 [1] : vector<5x5xf32> to vector<5xf32>
    %372 = vector.shape_cast %371 : vector<5xf32> to vector<5x1xf32>
    %373 = tpu.reciprocal %372 {approx = true} : vector<5x1xf32> -> vector<5x1xf32>
    %374 = vector.broadcast %373 : vector<5x1xf32> to vector<5x5xf32>
    %375 = arith.mulf %370, %374 : vector<5x5xf32>
    %cst_138 = arith.constant dense<0.000000e+00> : vector<5x8xf32>
    %376 = tpu.matmul %375, %362, %cst_138 {dimension_numbers = #tpu.dot_dimension_numbers<[1], [0], [0], [1], [0, 0, 1, 1], [], []>} : vector<5x5xf32>, vector<5x8xf32>, vector<5x8xf32> -> vector<5x8xf32>
    %377 = vector.extract_strided_slice %256 {offsets = [5, 24], sizes = [5, 8], strides = [1, 1]} : vector<10x96xf32> to vector<5x8xf32>
    %378 = vector.extract_strided_slice %256 {offsets = [5, 56], sizes = [5, 8], strides = [1, 1]} : vector<10x96xf32> to vector<5x8xf32>
    %379 = vector.extract_strided_slice %256 {offsets = [5, 88], sizes = [5, 8], strides = [1, 1]} : vector<10x96xf32> to vector<5x8xf32>
    %cst_139 = arith.constant dense<0.000000e+00> : vector<5x5xf32>
    %380 = tpu.matmul %377, %378, %cst_139 {dimension_numbers = #tpu.dot_dimension_numbers<[1], [1], [0], [0], [0, 0, 1, 0], [], []>} : vector<5x8xf32>, vector<5x8xf32>, vector<5x5xf32> -> vector<5x5xf32>
    %cst_140 = arith.constant 0.353553385 : f32
    %381 = vector.broadcast %cst_140 : f32 to vector<5x5xf32>
    %382 = arith.mulf %380, %381 : vector<5x5xf32>
    %cst_141 = arith.constant dense<0xFF800000> : vector<5xf32>
    %383 = vector.multi_reduction <maximumf>, %382, %cst_141 [1] : vector<5x5xf32> to vector<5xf32>
    %384 = vector.shape_cast %383 : vector<5xf32> to vector<5x1xf32>
    %385 = vector.broadcast %384 : vector<5x1xf32> to vector<5x5xf32>
    %386 = arith.subf %382, %385 : vector<5x5xf32>
    %387 = math.exp %386 : vector<5x5xf32>
    %cst_142 = arith.constant dense<0.000000e+00> : vector<5xf32>
    %388 = vector.multi_reduction <add>, %387, %cst_142 [1] : vector<5x5xf32> to vector<5xf32>
    %389 = vector.shape_cast %388 : vector<5xf32> to vector<5x1xf32>
    %390 = tpu.reciprocal %389 {approx = true} : vector<5x1xf32> -> vector<5x1xf32>
    %391 = vector.broadcast %390 : vector<5x1xf32> to vector<5x5xf32>
    %392 = arith.mulf %387, %391 : vector<5x5xf32>
    %cst_143 = arith.constant dense<0.000000e+00> : vector<5x8xf32>
    %393 = tpu.matmul %392, %379, %cst_143 {dimension_numbers = #tpu.dot_dimension_numbers<[1], [0], [0], [1], [0, 0, 1, 1], [], []>} : vector<5x5xf32>, vector<5x8xf32>, vector<5x8xf32> -> vector<5x8xf32>
    %394 = tpu.concatenate %342, %359, %376, %393 in 1 : vector<5x8xf32>, vector<5x8xf32>, vector<5x8xf32>, vector<5x8xf32> -> vector<5x32xf32>
    %395 = tpu.concatenate %325, %394 in 0 : vector<5x32xf32>, vector<5x32xf32> -> vector<10x32xf32>
    %c0_144 = arith.constant 0 : index
    %c0_145 = arith.constant 0 : index
    %396 = vector.load %arg22[%c0_144, %c0_145] : memref<32x32xf32, #tpu.memory_space<vmem>>, vector<32x32xf32>
    %cst_146 = arith.constant dense<0.000000e+00> : vector<10x32xf32>
    %397 = tpu.matmul %395, %396, %cst_146 {dimension_numbers = #tpu.dot_dimension_numbers<[1], [0], [0], [1], [0, 0, 1, 1], [], []>} : vector<10x32xf32>, vector<32x32xf32>, vector<10x32xf32> -> vector<10x32xf32>
    %398 = arith.addf %229, %397 : vector<10x32xf32>
    %c0_147 = arith.constant 0 : index
    %c0_148 = arith.constant 0 : index
    %399 = vector.load %arg23[%c0_147, %c0_148] : memref<1x32xf32, #tpu.memory_space<vmem>>, vector<1x32xf32>
    %400 = vector.broadcast %399 : vector<1x32xf32> to vector<10x32xf32>
    %401 = arith.addf %398, %400 : vector<10x32xf32>
    %c0_149 = arith.constant 0 : index
    %c0_150 = arith.constant 0 : index
    %402 = vector.load %arg24[%c0_149, %c0_150] : memref<1x32xf32, #tpu.memory_space<vmem>>, vector<1x32xf32>
    %c0_151 = arith.constant 0 : index
    %c0_152 = arith.constant 0 : index
    %403 = vector.load %arg25[%c0_151, %c0_152] : memref<1x32xf32, #tpu.memory_space<vmem>>, vector<1x32xf32>
    %cst_153 = arith.constant dense<0.000000e+00> : vector<10xf32>
    %404 = vector.multi_reduction <add>, %401, %cst_153 [1] : vector<10x32xf32> to vector<10xf32>
    %405 = vector.shape_cast %404 : vector<10xf32> to vector<10x1xf32>
    %cst_154 = arith.constant 3.200000e+01 : f32
    %406 = vector.broadcast %cst_154 : f32 to vector<10x1xf32>
    %407 = arith.divf %405, %406 : vector<10x1xf32>
    %408 = vector.broadcast %407 : vector<10x1xf32> to vector<10x32xf32>
    %409 = arith.subf %401, %408 : vector<10x32xf32>
    %410 = arith.mulf %409, %409 : vector<10x32xf32>
    %cst_155 = arith.constant dense<0.000000e+00> : vector<10xf32>
    %411 = vector.multi_reduction <add>, %410, %cst_155 [1] : vector<10x32xf32> to vector<10xf32>
    %412 = vector.shape_cast %411 : vector<10xf32> to vector<10x1xf32>
    %cst_156 = arith.constant 3.200000e+01 : f32
    %413 = vector.broadcast %cst_156 : f32 to vector<10x1xf32>
    %414 = arith.divf %412, %413 : vector<10x1xf32>
    %cst_157 = arith.constant 9.99999996E-13 : f32
    %415 = vector.broadcast %cst_157 : f32 to vector<10x1xf32>
    %416 = arith.addf %414, %415 : vector<10x1xf32>
    %417 = math.rsqrt %416 : vector<10x1xf32>
    %418 = vector.broadcast %417 : vector<10x1xf32> to vector<10x32xf32>
    %419 = arith.mulf %409, %418 : vector<10x32xf32>
    %420 = vector.broadcast %402 : vector<1x32xf32> to vector<10x32xf32>
    %421 = arith.mulf %419, %420 : vector<10x32xf32>
    %422 = vector.broadcast %403 : vector<1x32xf32> to vector<10x32xf32>
    %423 = arith.addf %421, %422 : vector<10x32xf32>
    %c0_158 = arith.constant 0 : index
    %c0_159 = arith.constant 0 : index
    %424 = vector.load %arg26[%c0_158, %c0_159] : memref<32x64xf32, #tpu.memory_space<vmem>>, vector<32x64xf32>
    %cst_160 = arith.constant dense<0.000000e+00> : vector<10x64xf32>
    %425 = tpu.matmul %423, %424, %cst_160 {dimension_numbers = #tpu.dot_dimension_numbers<[1], [0], [0], [1], [0, 0, 1, 1], [], []>} : vector<10x32xf32>, vector<32x64xf32>, vector<10x64xf32> -> vector<10x64xf32>
    %c0_161 = arith.constant 0 : index
    %c0_162 = arith.constant 0 : index
    %426 = vector.load %arg27[%c0_161, %c0_162] : memref<1x64xf32, #tpu.memory_space<vmem>>, vector<1x64xf32>
    %427 = vector.broadcast %426 : vector<1x64xf32> to vector<10x64xf32>
    %428 = arith.addf %425, %427 : vector<10x64xf32>
    %cst_163 = arith.constant 5.000000e-01 : f32
    %429 = vector.broadcast %cst_163 : f32 to vector<10x64xf32>
    %430 = arith.mulf %429, %428 : vector<10x64xf32>
    %cst_164 = arith.constant 0.707106769 : f32
    %431 = vector.broadcast %cst_164 : f32 to vector<10x64xf32>
    %432 = arith.mulf %428, %431 : vector<10x64xf32>
    %433 = math.erf %432 : vector<10x64xf32>
    %cst_165 = arith.constant 1.000000e+00 : f32
    %434 = vector.broadcast %cst_165 : f32 to vector<10x64xf32>
    %435 = arith.addf %434, %433 : vector<10x64xf32>
    %436 = arith.mulf %430, %435 : vector<10x64xf32>
    %c0_166 = arith.constant 0 : index
    %c0_167 = arith.constant 0 : index
    %437 = vector.load %arg28[%c0_166, %c0_167] : memref<64x32xf32, #tpu.memory_space<vmem>>, vector<64x32xf32>
    %cst_168 = arith.constant dense<0.000000e+00> : vector<10x32xf32>
    %438 = tpu.matmul %436, %437, %cst_168 {dimension_numbers = #tpu.dot_dimension_numbers<[1], [0], [0], [1], [0, 0, 1, 1], [], []>} : vector<10x64xf32>, vector<64x32xf32>, vector<10x32xf32> -> vector<10x32xf32>
    %439 = arith.addf %401, %438 : vector<10x32xf32>
    %c0_169 = arith.constant 0 : index
    %c0_170 = arith.constant 0 : index
    %440 = vector.load %arg29[%c0_169, %c0_170] : memref<1x32xf32, #tpu.memory_space<vmem>>, vector<1x32xf32>
    %441 = vector.broadcast %440 : vector<1x32xf32> to vector<10x32xf32>
    %442 = arith.addf %439, %441 : vector<10x32xf32>
    %c0_171 = arith.constant 0 : index
    %c0_172 = arith.constant 0 : index
    %443 = vector.load %arg30[%c0_171, %c0_172] : memref<1x32xf32, #tpu.memory_space<vmem>>, vector<1x32xf32>
    %c0_173 = arith.constant 0 : index
    %c0_174 = arith.constant 0 : index
    %444 = vector.load %arg31[%c0_173, %c0_174] : memref<1x32xf32, #tpu.memory_space<vmem>>, vector<1x32xf32>
    %cst_175 = arith.constant dense<0.000000e+00> : vector<10xf32>
    %445 = vector.multi_reduction <add>, %442, %cst_175 [1] : vector<10x32xf32> to vector<10xf32>
    %446 = vector.shape_cast %445 : vector<10xf32> to vector<10x1xf32>
    %cst_176 = arith.constant 3.200000e+01 : f32
    %447 = vector.broadcast %cst_176 : f32 to vector<10x1xf32>
    %448 = arith.divf %446, %447 : vector<10x1xf32>
    %449 = vector.broadcast %448 : vector<10x1xf32> to vector<10x32xf32>
    %450 = arith.subf %442, %449 : vector<10x32xf32>
    %451 = arith.mulf %450, %450 : vector<10x32xf32>
    %cst_177 = arith.constant dense<0.000000e+00> : vector<10xf32>
    %452 = vector.multi_reduction <add>, %451, %cst_177 [1] : vector<10x32xf32> to vector<10xf32>
    %453 = vector.shape_cast %452 : vector<10xf32> to vector<10x1xf32>
    %cst_178 = arith.constant 3.200000e+01 : f32
    %454 = vector.broadcast %cst_178 : f32 to vector<10x1xf32>
    %455 = arith.divf %453, %454 : vector<10x1xf32>
    %cst_179 = arith.constant 9.99999996E-13 : f32
    %456 = vector.broadcast %cst_179 : f32 to vector<10x1xf32>
    %457 = arith.addf %455, %456 : vector<10x1xf32>
    %458 = math.rsqrt %457 : vector<10x1xf32>
    %459 = vector.broadcast %458 : vector<10x1xf32> to vector<10x32xf32>
    %460 = arith.mulf %450, %459 : vector<10x32xf32>
    %461 = vector.broadcast %443 : vector<1x32xf32> to vector<10x32xf32>
    %462 = arith.mulf %460, %461 : vector<10x32xf32>
    %463 = vector.broadcast %444 : vector<1x32xf32> to vector<10x32xf32>
    %464 = arith.addf %462, %463 : vector<10x32xf32>
    %465 = vector.extract_strided_slice %464 {offsets = [0, 0], sizes = [1, 32], strides = [1, 1]} : vector<10x32xf32> to vector<1x32xf32>
    %466 = vector.extract_strided_slice %464 {offsets = [5, 0], sizes = [1, 32], strides = [1, 1]} : vector<10x32xf32> to vector<1x32xf32>
    %467 = tpu.concatenate %465, %466 in 0 : vector<1x32xf32>, vector<1x32xf32> -> vector<2x32xf32>
    %c0_180 = arith.constant 0 : index
    %c0_181 = arith.constant 0 : index
    %468 = vector.load %arg32[%c0_180, %c0_181] : memref<32x20xf32, #tpu.memory_space<vmem>>, vector<32x20xf32>
    %cst_182 = arith.constant dense<0.000000e+00> : vector<2x20xf32>
    %469 = tpu.matmul %467, %468, %cst_182 {dimension_numbers = #tpu.dot_dimension_numbers<[1], [0], [0], [1], [0, 0, 1, 1], [], []>} : vector<2x32xf32>, vector<32x20xf32>, vector<2x20xf32> -> vector<2x20xf32>
    %c0_183 = arith.constant 0 : index
    %c0_184 = arith.constant 0 : index
    %470 = vector.load %arg33[%c0_183, %c0_184] : memref<1x20xf32, #tpu.memory_space<vmem>>, vector<1x20xf32>
    %471 = vector.broadcast %470 : vector<1x20xf32> to vector<2x20xf32>
    %472 = arith.addf %469, %471 : vector<2x20xf32>
    %c0_185 = arith.constant 0 : index
    %c0_186 = arith.constant 0 : index
    %473 = vector.load %arg34[%c0_185, %c0_186] : memref<2x20xf32, #tpu.memory_space<vmem>>, vector<2x20xf32>
    tpu.vector_store %arg34[%c0_185, %c0_186], %472 {strides = array<i32>} : memref<2x20xf32, #tpu.memory_space<vmem>>, vector<2x20xf32>,
    %474 = vector.extract_strided_slice %472 {offsets = [0, 0], sizes = [2, 10], strides = [1, 1]} : vector<2x20xf32> to vector<2x10xf32>
    %cst_187 = arith.constant dense<0xFF800000> : vector<2xf32>
    %475 = vector.multi_reduction <maximumf>, %474, %cst_187 [1] : vector<2x10xf32> to vector<2xf32>
    %476 = vector.shape_cast %475 : vector<2xf32> to vector<2x1xf32>
    %477 = vector.broadcast %476 : vector<2x1xf32> to vector<2x10xf32>
    %478 = arith.subf %474, %477 : vector<2x10xf32>
    %479 = math.exp %478 : vector<2x10xf32>
    %cst_188 = arith.constant dense<0.000000e+00> : vector<2xf32>
    %480 = vector.multi_reduction <add>, %479, %cst_188 [1] : vector<2x10xf32> to vector<2xf32>
    %481 = vector.shape_cast %480 : vector<2xf32> to vector<2x1xf32>
    %482 = tpu.reciprocal %481 {approx = true} : vector<2x1xf32> -> vector<2x1xf32>
    %483 = vector.broadcast %482 : vector<2x1xf32> to vector<2x10xf32>
    %484 = arith.mulf %479, %483 : vector<2x10xf32>
    %485 = vector.shape_cast %484 : vector<2x10xf32> to vector<1x2x10xf32>
    %cst_189 = arith.constant dense<0xFF800000> : vector<1xf32>
    %486 = vector.multi_reduction <maximumf>, %485, %cst_189 [1, 2] : vector<1x2x10xf32> to vector<1xf32>
    %487 = vector.shape_cast %486 : vector<1xf32> to vector<1x1x1xf32>
    %488 = vector.extract %487[0, 0, 0] : f32 from vector<1x1x1xf32>
    %489 = vector.broadcast %488 : f32 to vector<1x1xf32>
    %c0_190 = arith.constant 0 : index
    %c0_191 = arith.constant 0 : index
    %490 = vector.load %arg35[%c0_190, %c0_191] : memref<1x1xf32, #tpu.memory_space<vmem>>, vector<1x1xf32>
    tpu.vector_store %arg35[%c0_190, %c0_191], %489 {strides = array<i32>} : memref<1x1xf32, #tpu.memory_space<vmem>>, vector<1x1xf32>,
    %491 = vector.extract_strided_slice %472 {offsets = [0, 10], sizes = [2, 10], strides = [1, 1]} : vector<2x20xf32> to vector<2x10xf32>
    %cst_192 = arith.constant dense<0xFF800000> : vector<2xf32>
    %492 = vector.multi_reduction <maximumf>, %491, %cst_192 [1] : vector<2x10xf32> to vector<2xf32>
    %493 = vector.shape_cast %492 : vector<2xf32> to vector<2x1xf32>
    %494 = vector.broadcast %493 : vector<2x1xf32> to vector<2x10xf32>
    %495 = arith.subf %491, %494 : vector<2x10xf32>
    %496 = math.exp %495 : vector<2x10xf32>
    %cst_193 = arith.constant dense<0.000000e+00> : vector<2xf32>
    %497 = vector.multi_reduction <add>, %496, %cst_193 [1] : vector<2x10xf32> to vector<2xf32>
    %498 = vector.shape_cast %497 : vector<2xf32> to vector<2x1xf32>
    %499 = tpu.reciprocal %498 {approx = true} : vector<2x1xf32> -> vector<2x1xf32>
    %500 = vector.broadcast %499 : vector<2x1xf32> to vector<2x10xf32>
    %501 = arith.mulf %496, %500 : vector<2x10xf32>
    %502 = vector.shape_cast %501 : vector<2x10xf32> to vector<1x2x10xf32>
    %cst_194 = arith.constant dense<0xFF800000> : vector<1xf32>
    %503 = vector.multi_reduction <maximumf>, %502, %cst_194 [1, 2] : vector<1x2x10xf32> to vector<1xf32>
    %504 = vector.shape_cast %503 : vector<1xf32> to vector<1x1x1xf32>
    %505 = vector.extract %504[0, 0, 0] : f32 from vector<1x1x1xf32>
    %506 = vector.broadcast %505 : f32 to vector<1x1xf32>
    %c0_195 = arith.constant 0 : index
    %c0_196 = arith.constant 0 : index
    %507 = vector.load %arg36[%c0_195, %c0_196] : memref<1x1xf32, #tpu.memory_space<vmem>>, vector<1x1xf32>
    tpu.vector_store %arg36[%c0_195, %c0_196], %506 {strides = array<i32>} : memref<1x1xf32, #tpu.memory_space<vmem>>, vector<1x1xf32>,
    return
  }
  func.func @transform_0(%arg0: i32) -> (i32, i32) {
    %c0_i32 = arith.constant 0 : i32
    %c0_i32_0 = arith.constant 0 : i32
    %c0_i32_1 = arith.constant 0 : i32
    return %c0_i32, %c0_i32_0 : i32, i32
  }
  func.func @transform_1(%arg0: i32) -> (i32, i32) {
    %c0_i32 = arith.constant 0 : i32
    %c0_i32_0 = arith.constant 0 : i32
    %c0_i32_1 = arith.constant 0 : i32
    return %c0_i32, %c0_i32_0 : i32, i32
  }
  func.func @transform_2(%arg0: i32) -> (i32, i32) {
    %c0_i32 = arith.constant 0 : i32
    %c0_i32_0 = arith.constant 0 : i32
    %c0_i32_1 = arith.constant 0 : i32
    return %c0_i32, %c0_i32_0 : i32, i32
  }
  func.func @transform_3(%arg0: i32) -> (i32, i32) {
    %c0_i32 = arith.constant 0 : i32
    %c0_i32_0 = arith.constant 0 : i32
    %c0_i32_1 = arith.constant 0 : i32
    return %c0_i32, %c0_i32_0 : i32, i32
  }
  func.func @transform_4(%arg0: i32) -> (i32, i32) {
    %c0_i32 = arith.constant 0 : i32
    %c0_i32_0 = arith.constant 0 : i32
    %c0_i32_1 = arith.constant 0 : i32
    return %c0_i32, %c0_i32_0 : i32, i32
  }
  func.func @transform_5(%arg0: i32) -> (i32, i32) {
    %c0_i32 = arith.constant 0 : i32
    %c0_i32_0 = arith.constant 0 : i32
    %c0_i32_1 = arith.constant 0 : i32
    return %c0_i32, %c0_i32_0 : i32, i32
  }
  func.func @transform_6(%arg0: i32) -> (i32, i32) {
    %c0_i32 = arith.constant 0 : i32
    %c0_i32_0 = arith.constant 0 : i32
    %c0_i32_1 = arith.constant 0 : i32
    return %c0_i32, %c0_i32_0 : i32, i32
  }
  func.func @transform_7(%arg0: i32) -> (i32, i32) {
    %c0_i32 = arith.constant 0 : i32
    %c0_i32_0 = arith.constant 0 : i32
    %c0_i32_1 = arith.constant 0 : i32
    return %c0_i32, %c0_i32_0 : i32, i32
  }
  func.func @transform_8(%arg0: i32) -> (i32, i32) {
    %c0_i32 = arith.constant 0 : i32
    %c0_i32_0 = arith.constant 0 : i32
    %c0_i32_1 = arith.constant 0 : i32
    return %c0_i32, %c0_i32_0 : i32, i32
  }
  func.func @transform_9(%arg0: i32) -> (i32, i32) {
    %c0_i32 = arith.constant 0 : i32
    %c0_i32_0 = arith.constant 0 : i32
    %c0_i32_1 = arith.constant 0 : i32
    return %c0_i32, %c0_i32_0 : i32, i32
  }
  func.func @transform_10(%arg0: i32) -> (i32, i32) {
    %c0_i32 = arith.constant 0 : i32
    %c0_i32_0 = arith.constant 0 : i32
    %c0_i32_1 = arith.constant 0 : i32
    return %c0_i32, %c0_i32_0 : i32, i32
  }
  func.func @transform_11(%arg0: i32) -> (i32, i32) {
    %c0_i32 = arith.constant 0 : i32
    %c0_i32_0 = arith.constant 0 : i32
    %c0_i32_1 = arith.constant 0 : i32
    return %c0_i32, %c0_i32_0 : i32, i32
  }
  func.func @transform_12(%arg0: i32) -> (i32, i32) {
    %c0_i32 = arith.constant 0 : i32
    %c0_i32_0 = arith.constant 0 : i32
    %c0_i32_1 = arith.constant 0 : i32
    return %c0_i32, %c0_i32_0 : i32, i32
  }
  func.func @transform_13(%arg0: i32) -> (i32, i32) {
    %c0_i32 = arith.constant 0 : i32
    %c0_i32_0 = arith.constant 0 : i32
    %c0_i32_1 = arith.constant 0 : i32
    return %c0_i32, %c0_i32_0 : i32, i32
  }
  func.func @transform_14(%arg0: i32) -> (i32, i32) {
    %c0_i32 = arith.constant 0 : i32
    %c0_i32_0 = arith.constant 0 : i32
    %c0_i32_1 = arith.constant 0 : i32
    return %c0_i32, %c0_i32_0 : i32, i32
  }
  func.func @transform_15(%arg0: i32) -> (i32, i32) {
    %c0_i32 = arith.constant 0 : i32
    %c0_i32_0 = arith.constant 0 : i32
    %c0_i32_1 = arith.constant 0 : i32
    return %c0_i32, %c0_i32_0 : i32, i32
  }
  func.func @transform_16(%arg0: i32) -> (i32, i32) {
    %c0_i32 = arith.constant 0 : i32
    %c0_i32_0 = arith.constant 0 : i32
    %c0_i32_1 = arith.constant 0 : i32
    return %c0_i32, %c0_i32_0 : i32, i32
  }
  func.func @transform_17(%arg0: i32) -> (i32, i32) {
    %c0_i32 = arith.constant 0 : i32
    %c0_i32_0 = arith.constant 0 : i32
    %c0_i32_1 = arith.constant 0 : i32
    return %c0_i32, %c0_i32_0 : i32, i32
  }
  func.func @transform_18(%arg0: i32) -> (i32, i32) {
    %c0_i32 = arith.constant 0 : i32
    %c0_i32_0 = arith.constant 0 : i32
    %c0_i32_1 = arith.constant 0 : i32
    return %c0_i32, %c0_i32_0 : i32, i32
  }
  func.func @transform_19(%arg0: i32) -> (i32, i32) {
    %c0_i32 = arith.constant 0 : i32
    %c0_i32_0 = arith.constant 0 : i32
    %c0_i32_1 = arith.constant 0 : i32
    return %c0_i32, %c0_i32_0 : i32, i32
  }
  func.func @transform_20(%arg0: i32) -> (i32, i32) {
    %c0_i32 = arith.constant 0 : i32
    %c0_i32_0 = arith.constant 0 : i32
    %c0_i32_1 = arith.constant 0 : i32
    return %c0_i32, %c0_i32_0 : i32, i32
  }
  func.func @transform_21(%arg0: i32) -> (i32, i32) {
    %c0_i32 = arith.constant 0 : i32
    %c0_i32_0 = arith.constant 0 : i32
    %c0_i32_1 = arith.constant 0 : i32
    return %c0_i32, %c0_i32_0 : i32, i32
  }
  func.func @transform_22(%arg0: i32) -> (i32, i32) {
    %c0_i32 = arith.constant 0 : i32
    %c0_i32_0 = arith.constant 0 : i32
    %c0_i32_1 = arith.constant 0 : i32
    return %c0_i32, %c0_i32_0 : i32, i32
  }
  func.func @transform_23(%arg0: i32) -> (i32, i32) {
    %c0_i32 = arith.constant 0 : i32
    %c0_i32_0 = arith.constant 0 : i32
    %c0_i32_1 = arith.constant 0 : i32
    return %c0_i32, %c0_i32_0 : i32, i32
  }
  func.func @transform_24(%arg0: i32) -> (i32, i32) {
    %c0_i32 = arith.constant 0 : i32
    %c0_i32_0 = arith.constant 0 : i32
    %c0_i32_1 = arith.constant 0 : i32
    return %c0_i32, %c0_i32_0 : i32, i32
  }
  func.func @transform_25(%arg0: i32) -> (i32, i32) {
    %c0_i32 = arith.constant 0 : i32
    %c0_i32_0 = arith.constant 0 : i32
    %c0_i32_1 = arith.constant 0 : i32
    return %c0_i32, %c0_i32_0 : i32, i32
  }
  func.func @transform_26(%arg0: i32) -> (i32, i32) {
    %c0_i32 = arith.constant 0 : i32
    %c0_i32_0 = arith.constant 0 : i32
    %c0_i32_1 = arith.constant 0 : i32
    return %c0_i32, %c0_i32_0 : i32, i32
  }
  func.func @transform_27(%arg0: i32) -> (i32, i32) {
    %c0_i32 = arith.constant 0 : i32
    %c0_i32_0 = arith.constant 0 : i32
    %c0_i32_1 = arith.constant 0 : i32
    return %c0_i32, %c0_i32_0 : i32, i32
  }
  func.func @transform_28(%arg0: i32) -> (i32, i32) {
    %c0_i32 = arith.constant 0 : i32
    %c0_i32_0 = arith.constant 0 : i32
    %c0_i32_1 = arith.constant 0 : i32
    return %c0_i32, %c0_i32_0 : i32, i32
  }
  func.func @transform_29(%arg0: i32) -> (i32, i32) {
    %c0_i32 = arith.constant 0 : i32
    %c0_i32_0 = arith.constant 0 : i32
    %c0_i32_1 = arith.constant 0 : i32
    return %c0_i32, %c0_i32_0 : i32, i32
  }
  func.func @transform_30(%arg0: i32) -> (i32, i32) {
    %c0_i32 = arith.constant 0 : i32
    %c0_i32_0 = arith.constant 0 : i32
    %c0_i32_1 = arith.constant 0 : i32
    return %c0_i32, %c0_i32_0 : i32, i32
  }
  func.func @transform_31(%arg0: i32) -> (i32, i32) {
    %c0_i32 = arith.constant 0 : i32
    %c0_i32_0 = arith.constant 0 : i32
    %c0_i32_1 = arith.constant 0 : i32
    return %c0_i32, %c0_i32_0 : i32, i32
  }
  func.func @transform_32(%arg0: i32) -> (i32, i32) {
    %c0_i32 = arith.constant 0 : i32
    %c0_i32_0 = arith.constant 0 : i32
    %c0_i32_1 = arith.constant 0 : i32
    return %c0_i32, %c0_i32_0 : i32, i32
  }
  func.func @transform_33(%arg0: i32) -> (i32, i32) {
    %c0_i32 = arith.constant 0 : i32
    %c0_i32_0 = arith.constant 0 : i32
    %c0_i32_1 = arith.constant 0 : i32
    return %c0_i32, %c0_i32_0 : i32, i32
  }
  func.func @transform_34(%arg0: i32) -> (i32, i32) {
    %c0_i32 = arith.constant 0 : i32
    %c0_i32_0 = arith.constant 0 : i32
    %c0_i32_1 = arith.constant 0 : i32
    return %c0_i32, %c0_i32_0 : i32, i32
  }
  func.func @transform_35(%arg0: i32) -> (i32, i32) {
    %c0_i32 = arith.constant 0 : i32
    %c0_i32_0 = arith.constant 0 : i32
    %c0_i32_1 = arith.constant 0 : i32
    return %c0_i32, %c0_i32_0 : i32, i32
  }
}

</mosaic_0001>

<llo_original>
// kernel: forward.1
$region0: #{forward.1}
  #allocation0 [shape = 'u32[]', space=smem, size = 0x4, offset = 0x4, fixed_abs, tag = 'smem constant byte address 0x4 - core index']
  #allocation1 [shape = 'u32[144,128]{1,0:T(1,128)}', space=vmem, size = 0x12000, scoped, tag = 'internal scratch']
  %s0 = inlined_call_operand.smem [shape: u32[36], index: -1, kind: input, shape index: {}]
  %s1 = sld [smem:[%s0]]
  %s2 = scalar_lea.smem %s0, 1
  %s3 = sld [smem:[%s2]]
  %s4 = scalar_lea.smem %s0, 2
  %s5 = sld [smem:[%s4]]
  %s6 = scalar_lea.smem %s0, 3
  %s7 = sld [smem:[%s6]]
  %s8 = scalar_lea.smem %s0, 4
  %s9 = sld [smem:[%s8]]
  %s10 = scalar_lea.smem %s0, 5
  %s11 = sld [smem:[%s10]]
  %s12 = scalar_lea.smem %s0, 6
  %s13 = sld [smem:[%s12]]
  %s14 = scalar_lea.smem %s0, 7
  %s15 = sld [smem:[%s14]]
  %s16 = scalar_lea.smem %s0, 8
  %s17 = sld [smem:[%s16]]
  %s18 = scalar_lea.smem %s0, 9
  %s19 = sld [smem:[%s18]]
  %s20 = scalar_lea.smem %s0, 10
  %s21 = sld [smem:[%s20]]
  %s22 = scalar_lea.smem %s0, 11
  %s23 = sld [smem:[%s22]]
  %s24 = scalar_lea.smem %s0, 12
  %s25 = sld [smem:[%s24]]
  %s26 = scalar_lea.smem %s0, 13
  %s27 = sld [smem:[%s26]]
  %s28 = scalar_lea.smem %s0, 14
  %s29 = sld [smem:[%s28]]
  %s30 = scalar_lea.smem %s0, 15
  %s31 = sld [smem:[%s30]]
  %s32 = scalar_lea.smem %s0, 16
  %s33 = sld [smem:[%s32]]
  %s34 = scalar_lea.smem %s0, 17
  %s35 = sld [smem:[%s34]]
  %s36 = scalar_lea.smem %s0, 18
  %s37 = sld [smem:[%s36]]
  %s38 = scalar_lea.smem %s0, 19
  %s39 = sld [smem:[%s38]]
  %s40 = scalar_lea.smem %s0, 20
  %s41 = sld [smem:[%s40]]
  %s42 = scalar_lea.smem %s0, 21
  %s43 = sld [smem:[%s42]]
  %s44 = scalar_lea.smem %s0, 22
  %s45 = sld [smem:[%s44]]
  %s46 = scalar_lea.smem %s0, 23
  %s47 = sld [smem:[%s46]]
  %s48 = scalar_lea.smem %s0, 24
  %s49 = sld [smem:[%s48]]
  %s50 = scalar_lea.smem %s0, 25
  %s51 = sld [smem:[%s50]]
  %s52 = scalar_lea.smem %s0, 26
  %s53 = sld [smem:[%s52]]
  %s54 = scalar_lea.smem %s0, 27
  %s55 = sld [smem:[%s54]]
  %s56 = scalar_lea.smem %s0, 28
  %s57 = sld [smem:[%s56]]
  %s58 = scalar_lea.smem %s0, 29
  %s59 = sld [smem:[%s58]]
  %s60 = scalar_lea.smem %s0, 30
  %s61 = sld [smem:[%s60]]
  %s62 = scalar_lea.smem %s0, 31
  %s63 = sld [smem:[%s62]]
  %s64 = scalar_lea.smem %s0, 32
  %s65 = sld [smem:[%s64]]
  %s66 = scalar_lea.smem %s0, 33
  %s67 = sld [smem:[%s66]]
  %s68 = scalar_lea.smem %s0, 34
  %s69 = sld [smem:[%s68]]
  %s70 = scalar_lea.smem %s0, 35
  %s71 = sld [smem:[%s70]]
  %72 = xla_tuple %s67, %s69, %s71
  %s73 = sld [smem:[#allocation0]]
  $region158: #{forward.1} parent=0
    _
  %s75 = ssub.s32 1, %s73
  %s76 = scalar_select 0, %s75, %s73
  $region1: #{forward.1} parent=0
    #allocation2 [shape = 'u8[512]{0}', space=vmem, size = 0x400, scoped, tag = 'output window, operand 1, single buffered']
    #allocation3 [shape = 's32[1]{0}', space=sflag, size = 0x4, scoped, tag = 'scoped memory for forward.1']
    #allocation4 [shape = 'u8[512]{0}', space=vmem, size = 0x400, scoped, tag = 'output window, operand 2, single buffered']
    #allocation5 [shape = 's32[1]{0}', space=sflag, size = 0x4, scoped, tag = 'scoped memory for forward.1']
    %77 = vsyncpa [#allocation3], 0
    %78 = vsyncpa [#allocation5], 0
    // Predicated region
    $region2: #{forward.1} parent=1 // pred_check
      _
    $region3: #{forward.1} parent=1 // pred_check_branch
      %80 = sbr.rel (0) target = $region5
    $region4: #{forward.1} parent=1 // pred_region
      _
    $region5: #{forward.1} parent=1 // pred_fallthru
      _
    // Predicated region
    $region6: #{forward.1} parent=1 // pred_check
      _
    $region7: #{forward.1} parent=1 // pred_check_branch
      %82 = sbr.rel (0) target = $region9
    $region8: #{forward.1} parent=1 // pred_region
      _
    $region9: #{forward.1} parent=1 // pred_fallthru
      _
    // Predicated region
    $region10: #{forward.1} parent=1 // pred_check
      _
    $region11: #{forward.1} parent=1 // pred_check_branch
      %84 = sbr.rel (0) target = $region13
    $region12: #{forward.1} parent=1 // pred_region
      _
    $region13: #{forward.1} parent=1 // pred_fallthru
      _
    // Predicated region
    $region14: #{forward.1} parent=1 // pred_check
      _
    $region15: #{forward.1} parent=1 // pred_check_branch
      %86 = sbr.rel (0) target = $region17
    $region16: #{forward.1} parent=1 // pred_region
      _
    $region17: #{forward.1} parent=1 // pred_fallthru
      _
    // Predicated region
    $region18: #{forward.1} parent=1 // pred_check
      _
    $region19: #{forward.1} parent=1 // pred_check_branch
      %88 = sbr.rel (0) target = $region21
    $region20: #{forward.1} parent=1 // pred_region
      _
    $region21: #{forward.1} parent=1 // pred_fallthru
      _
    // Predicated region
    $region22: #{forward.1} parent=1 // pred_check
      _
    $region23: #{forward.1} parent=1 // pred_check_branch
      %90 = sbr.rel (0) target = $region25
    $region24: #{forward.1} parent=1 // pred_region
      _
    $region25: #{forward.1} parent=1 // pred_fallthru
      _
    // Predicated region
    $region26: #{forward.1} parent=1 // pred_check
      _
    $region27: #{forward.1} parent=1 // pred_check_branch
      %92 = sbr.rel (0) target = $region29
    $region28: #{forward.1} parent=1 // pred_region
      _
    $region29: #{forward.1} parent=1 // pred_fallthru
      _
    // Predicated region
    $region30: #{forward.1} parent=1 // pred_check
      _
    $region31: #{forward.1} parent=1 // pred_check_branch
      %94 = sbr.rel (0) target = $region33
    $region32: #{forward.1} parent=1 // pred_region
      _
    $region33: #{forward.1} parent=1 // pred_fallthru
      _
    // Predicated region
    $region34: #{forward.1} parent=1 // pred_check
      _
    $region35: #{forward.1} parent=1 // pred_check_branch
      %96 = sbr.rel (0) target = $region37
    $region36: #{forward.1} parent=1 // pred_region
      _
    $region37: #{forward.1} parent=1 // pred_fallthru
      _
    // Predicated region
    $region38: #{forward.1} parent=1 // pred_check
      _
    $region39: #{forward.1} parent=1 // pred_check_branch
      %98 = sbr.rel (0) target = $region41
    $region40: #{forward.1} parent=1 // pred_region
      _
    $region41: #{forward.1} parent=1 // pred_fallthru
      _
    // Predicated region
    $region42: #{forward.1} parent=1 // pred_check
      _
    $region43: #{forward.1} parent=1 // pred_check_branch
      %100 = sbr.rel (0) target = $region45
    $region44: #{forward.1} parent=1 // pred_region
      _
    $region45: #{forward.1} parent=1 // pred_fallthru
      _
    // Predicated region
    $region46: #{forward.1} parent=1 // pred_check
      _
    $region47: #{forward.1} parent=1 // pred_check_branch
      %102 = sbr.rel (0) target = $region49
    $region48: #{forward.1} parent=1 // pred_region
      _
    $region49: #{forward.1} parent=1 // pred_fallthru
      _
    // Predicated region
    $region50: #{forward.1} parent=1 // pred_check
      _
    $region51: #{forward.1} parent=1 // pred_check_branch
      %104 = sbr.rel (0) target = $region53
    $region52: #{forward.1} parent=1 // pred_region
      _
    $region53: #{forward.1} parent=1 // pred_fallthru
      _
    // Predicated region
    $region54: #{forward.1} parent=1 // pred_check
      _
    $region55: #{forward.1} parent=1 // pred_check_branch
      %106 = sbr.rel (0) target = $region57
    $region56: #{forward.1} parent=1 // pred_region
      _
    $region57: #{forward.1} parent=1 // pred_fallthru
      _
    // Predicated region
    $region58: #{forward.1} parent=1 // pred_check
      _
    $region59: #{forward.1} parent=1 // pred_check_branch
      %108 = sbr.rel (0) target = $region61
    $region60: #{forward.1} parent=1 // pred_region
      _
    $region61: #{forward.1} parent=1 // pred_fallthru
      _
    // Predicated region
    $region62: #{forward.1} parent=1 // pred_check
      _
    $region63: #{forward.1} parent=1 // pred_check_branch
      %110 = sbr.rel (0) target = $region65
    $region64: #{forward.1} parent=1 // pred_region
      _
    $region65: #{forward.1} parent=1 // pred_fallthru
      _
    // Predicated region
    $region66: #{forward.1} parent=1 // pred_check
      _
    $region67: #{forward.1} parent=1 // pred_check_branch
      %112 = sbr.rel (0) target = $region69
    $region68: #{forward.1} parent=1 // pred_region
      _
    $region69: #{forward.1} parent=1 // pred_fallthru
      _
    // Predicated region
    $region70: #{forward.1} parent=1 // pred_check
      _
    $region71: #{forward.1} parent=1 // pred_check_branch
      %114 = sbr.rel (0) target = $region73
    $region72: #{forward.1} parent=1 // pred_region
      _
    $region73: #{forward.1} parent=1 // pred_fallthru
      _
    // Predicated region
    $region74: #{forward.1} parent=1 // pred_check
      _
    $region75: #{forward.1} parent=1 // pred_check_branch
      %116 = sbr.rel (0) target = $region77
    $region76: #{forward.1} parent=1 // pred_region
      _
    $region77: #{forward.1} parent=1 // pred_fallthru
      _
    // Predicated region
    $region78: #{forward.1} parent=1 // pred_check
      _
    $region79: #{forward.1} parent=1 // pred_check_branch
      %118 = sbr.rel (0) target = $region81
    $region80: #{forward.1} parent=1 // pred_region
      _
    $region81: #{forward.1} parent=1 // pred_fallthru
      _
    // Predicated region
    $region82: #{forward.1} parent=1 // pred_check
      _
    $region83: #{forward.1} parent=1 // pred_check_branch
      %120 = sbr.rel (0) target = $region85
    $region84: #{forward.1} parent=1 // pred_region
      _
    $region85: #{forward.1} parent=1 // pred_fallthru
      _
    // Predicated region
    $region86: #{forward.1} parent=1 // pred_check
      _
    $region87: #{forward.1} parent=1 // pred_check_branch
      %122 = sbr.rel (0) target = $region89
    $region88: #{forward.1} parent=1 // pred_region
      _
    $region89: #{forward.1} parent=1 // pred_fallthru
      _
    // Predicated region
    $region90: #{forward.1} parent=1 // pred_check
      _
    $region91: #{forward.1} parent=1 // pred_check_branch
      %124 = sbr.rel (0) target = $region93
    $region92: #{forward.1} parent=1 // pred_region
      _
    $region93: #{forward.1} parent=1 // pred_fallthru
      _
    // Predicated region
    $region94: #{forward.1} parent=1 // pred_check
      _
    $region95: #{forward.1} parent=1 // pred_check_branch
      %126 = sbr.rel (0) target = $region97
    $region96: #{forward.1} parent=1 // pred_region
      _
    $region97: #{forward.1} parent=1 // pred_fallthru
      _
    // Predicated region
    $region98: #{forward.1} parent=1 // pred_check
      _
    $region99: #{forward.1} parent=1 // pred_check_branch
      %128 = sbr.rel (0) target = $region101
    $region100: #{forward.1} parent=1 // pred_region
      _
    $region101: #{forward.1} parent=1 // pred_fallthru
      _
    // Predicated region
    $region102: #{forward.1} parent=1 // pred_check
      _
    $region103: #{forward.1} parent=1 // pred_check_branch
      %130 = sbr.rel (0) target = $region105
    $region104: #{forward.1} parent=1 // pred_region
      _
    $region105: #{forward.1} parent=1 // pred_fallthru
      _
    // Predicated region
    $region106: #{forward.1} parent=1 // pred_check
      _
    $region107: #{forward.1} parent=1 // pred_check_branch
      %132 = sbr.rel (0) target = $region109
    $region108: #{forward.1} parent=1 // pred_region
      _
    $region109: #{forward.1} parent=1 // pred_fallthru
      _
    // Predicated region
    $region110: #{forward.1} parent=1 // pred_check
      _
    $region111: #{forward.1} parent=1 // pred_check_branch
      %134 = sbr.rel (0) target = $region113
    $region112: #{forward.1} parent=1 // pred_region
      _
    $region113: #{forward.1} parent=1 // pred_fallthru
      _
    // Predicated region
    $region114: #{forward.1} parent=1 // pred_check
      _
    $region115: #{forward.1} parent=1 // pred_check_branch
      %136 = sbr.rel (0) target = $region117
    $region116: #{forward.1} parent=1 // pred_region
      _
    $region117: #{forward.1} parent=1 // pred_fallthru
      _
    // Predicated region
    $region118: #{forward.1} parent=1 // pred_check
      _
    $region119: #{forward.1} parent=1 // pred_check_branch
      %138 = sbr.rel (0) target = $region121
    $region120: #{forward.1} parent=1 // pred_region
      _
    $region121: #{forward.1} parent=1 // pred_fallthru
      _
    // Predicated region
    $region122: #{forward.1} parent=1 // pred_check
      _
    $region123: #{forward.1} parent=1 // pred_check_branch
      %140 = sbr.rel (0) target = $region125
    $region124: #{forward.1} parent=1 // pred_region
      _
    $region125: #{forward.1} parent=1 // pred_fallthru
      _
    // Predicated region
    $region126: #{forward.1} parent=1 // pred_check
      _
    $region127: #{forward.1} parent=1 // pred_check_branch
      %142 = sbr.rel (0) target = $region129
    $region128: #{forward.1} parent=1 // pred_region
      _
    $region129: #{forward.1} parent=1 // pred_fallthru
      _
    // Predicated region
    $region130: #{forward.1} parent=1 // pred_check
      _
    $region131: #{forward.1} parent=1 // pred_check_branch
      %144 = sbr.rel (0) target = $region133
    $region132: #{forward.1} parent=1 // pred_region
      _
    $region133: #{forward.1} parent=1 // pred_fallthru
      _
    %v145 = vld [vmem:[%s1] sm:$0xff]
    %v146 = vld [vmem:[%s1 + $0x8] sm:$0xff]
    %v147 = vld [vmem:[%s3] sm:$0xff]
    %v148 = vld [vmem:[%s3 + $0x8] sm:$0xff]
    %v149 = vld [vmem:[%s3 + $0x10] sm:$0xff]
    %v150 = vld [vmem:[%s3 + $0x18] sm:$0xff]
    %v151 = vld [vmem:[%s3 + $0x20] sm:$0xff]
    %v152 = vld [vmem:[%s3 + $0x28] sm:$0xff]
    %v153 = vld [vmem:[%s3 + $0x30] sm:$0xff]
    %v154 = vld [vmem:[%s3 + $0x38] sm:$0xff]
    %v155 = vld [vmem:[%s3 + $0x40] sm:$0xff]
    %v156 = vld [vmem:[%s3 + $0x48] sm:$0xff]
    %v157 = vld [vmem:[%s3 + $0x50] sm:$0xff]
    %v158 = vld [vmem:[%s3 + $0x58] sm:$0xff]
    %v159 = vld [vmem:[%s3 + $0x60] sm:$0xff]
    %v160 = vld [vmem:[%s3 + $0x68] sm:$0xff]
    %v161 = vld [vmem:[%s3 + $0x70] sm:$0xff]
    %v162 = vld [vmem:[%s3 + $0x78] sm:$0xff]
    %v163 = vld [vmem:[%s3 + $0x80] sm:$0xff]
    %v164 = vld [vmem:[%s3 + $0x88] sm:$0xff]
    %v165 = vld [vmem:[%s3 + $0x90] sm:$0xff]
    %v166 = vld [vmem:[%s3 + $0x98] sm:$0xff]
    %v167 = vld [vmem:[%s3 + $0xa0] sm:$0xff]
    %v168 = vld [vmem:[%s3 + $0xa8] sm:$0xff]
    %v169 = vld [vmem:[%s3 + $0xb0] sm:$0xff]
    %v170 = vld [vmem:[%s3 + $0xb8] sm:$0xff]
    %v171 = vld [vmem:[%s3 + $0xc0] sm:$0xff]
    %v172 = vld [vmem:[%s3 + $0xc8] sm:$0xff]
    %v173 = vld [vmem:[%s3 + $0xd0] sm:$0xff]
    %v174 = vld [vmem:[%s3 + $0xd8] sm:$0xff]
    %v175 = vld [vmem:[%s3 + $0xe0] sm:$0xff]
    %v176 = vld [vmem:[%s3 + $0xe8] sm:$0xff]
    %v177 = vld [vmem:[%s3 + $0xf0] sm:$0xff]
    %v178 = vld [vmem:[%s3 + $0xf8] sm:$0xff]
    %v179 = vld [vmem:[%s5] sm:$0x1]
    %v181 = vlaneseq
    %v182 = vshrl.u32 %v181, 7
    %v183 = vsub.s32 0, %v182
    %v184 = vrot.slane %v179, %v183
    %186 = vmatprep.subr.mxu0 0.0
    %187 = vmatpush1.msra.mxu0 %v147
    %188 = vmatprep.subr.mxu0 0.0
    %189 = vmatpush1.msra.mxu0 %v148
    %190 = vmatprep.subr.mxu0 0.0
    %191 = vmatpush1.msra.mxu0 %v149
    %192 = vmatprep.subr.mxu0 0.0
    %193 = vmatpush1.msra.mxu0 %v150
    %194 = vmatprep.subr.mxu0 0.0
    %195 = vmatpush1.msra.mxu0 %v151
    %196 = vmatprep.subr.mxu0 0.0
    %197 = vmatpush1.msra.mxu0 %v152
    %198 = vmatprep.subr.mxu0 0.0
    %199 = vmatpush1.msra.mxu0 %v153
    %200 = vmatprep.subr.mxu0 0.0
    %201 = vmatpush1.msra.mxu0 %v154
    %202 = vmatprep.subr.mxu0 0.0
    %203 = vmatpush1.msra.mxu0 %v155
    %204 = vmatprep.subr.mxu0 0.0
    %205 = vmatpush1.msra.mxu0 %v156
    %206 = vmatprep.subr.mxu0 0.0
    %207 = vmatpush1.msra.mxu0 %v157
    %208 = vmatprep.subr.mxu0 0.0
    %209 = vmatpush1.msra.mxu0 %v158
    %210 = vmatprep.subr.mxu0 0.0
    %211 = vmatpush1.msra.mxu0 %v159
    %212 = vmatprep.subr.mxu0 0.0
    %213 = vmatpush1.msra.mxu0 %v160
    %214 = vmatprep.subr.mxu0 0.0
    %215 = vmatpush1.msra.mxu0 %v161
    %216 = vmatprep.subr.mxu0 0.0
    %217 = vmatpush1.msra.mxu0 %v162
    %218 = vmatprep.subr.mxu0 0.0
    %219 = vmatpush1.msra.mxu0 %v163
    %220 = vmatprep.subr.mxu0 0.0
    %221 = vmatpush1.msra.mxu0 %v164
    %222 = vmatprep.subr.mxu0 0.0
    %223 = vmatpush1.msra.mxu0 %v165
    %224 = vmatprep.subr.mxu0 0.0
    %225 = vmatpush1.msra.mxu0 %v166
    %226 = vmatprep.subr.mxu0 0.0
    %227 = vmatpush1.msra.mxu0 %v167
    %228 = vmatprep.subr.mxu0 0.0
    %229 = vmatpush1.msra.mxu0 %v168
    %230 = vmatprep.subr.mxu0 0.0
    %231 = vmatpush1.msra.mxu0 %v169
    %232 = vmatprep.subr.mxu0 0.0
    %233 = vmatpush1.msra.mxu0 %v170
    %234 = vmatprep.subr.mxu0 0.0
    %235 = vmatpush1.msra.mxu0 %v171
    %236 = vmatprep.subr.mxu0 0.0
    %237 = vmatpush1.msra.mxu0 %v172
    %238 = vmatprep.subr.mxu0 0.0
    %239 = vmatpush1.msra.mxu0 %v173
    %240 = vmatprep.subr.mxu0 0.0
    %241 = vmatpush1.msra.mxu0 %v174
    %242 = vmatprep.subr.mxu0 0.0
    %243 = vmatpush1.msra.mxu0 %v175
    %244 = vmatprep.subr.mxu0 0.0
    %245 = vmatpush1.msra.mxu0 %v176
    %246 = vmatprep.subr.mxu0 0.0
    %247 = vmatpush1.msra.mxu0 %v177
    %248 = vmatprep.subr.mxu0 0.0
    %249 = vmatpush1.msra.mxu0 %v178
    %250 = vmatprep.mubr.f32.mxu0 %v146
    %251 = vmatmul.mubr.f32.gmra.mrb[0].mxu0 %v145
    %v252 = vpop.f32.mrb[0].mxu0
    %v253 = vadd.f32 %v184, %v252
    %v254 = vpop.f32.mrb[0].mxu0
    %255 = vdwg.mxu0
    %v256 = vld [vmem:[%s9] sm:$0x1f]
    %v257 = vld [vmem:[%s7] sm:$0x1]
    %v258 = vadd.f32 %v257, %v256
    %v260 = vrot.slane %v256, 1
    %v262 = vadd.f32 %v253, %v260
    %v263 = vrot.slane %v256, 5
    %v265 = vadd.f32 %v253, %v263
    %v267 = vrot.slane %v262, 7
    %v270 = vlaneseq
    %v271 = vshrl.u32 %v270, 7
    %v272 = vsub.s32 0, %v271
    %v273 = vrot.slane %v258, %v272
    %v276 = vrot.slane %v265, 6
    %vm278 = vcmask 1040384
    %v279 = vsel %vm278, %v258, %v267
    %vm280 = vcmask 1044480
    %v281 = vsel %vm280, %v279, %v273
    %vm282 = vcmask 1045504
    %v283 = vsel %vm282, %v281, %v276
    %v284 = vld [vmem:[%s11] sm:$0x1]
    %v285 = vld [vmem:[%s13] sm:$0x1]
    %vm286 = vcmask 261120
    %v287 = vsel %vm286, %v283, 0.0
    %288 = vadd.xlane.f32.xlu0 %v287
    %v289 = vpop.xlane.xlu0 %288
    %vm290 = vcmask 254976
    %v291 = vsel %vm290, %v276, 0.0
    %292 = vadd.xlane.f32.xlu0 %v291
    %v293 = vpop.xlane.xlu0 %292
    %v294 = vrcp.pop 32.0
    %v295 = vmul.f32 %v289, %v294
    %v296 = vmul.f32 %v293, %v294
    %v297 = vsub.f32 %v283, %v295
    %v298 = vsub.f32 %v276, %v296
    %v299 = vmul.f32 %v297, %v297
    %v300 = vmul.f32 %v298, %v298
    %v301 = vsel %vm286, %v299, 0.0
    %302 = vadd.xlane.f32.xlu0 %v301
    %v303 = vpop.xlane.xlu0 %302
    %v304 = vsel %vm290, %v300, 0.0
    %305 = vadd.xlane.f32.xlu0 %v304
    %v306 = vpop.xlane.xlu0 %305
    %v307 = vmul.f32 %v303, %v294
    %v308 = vmul.f32 %v306, %v294
    %v309 = vadd.f32 %v307, 1e-12
    %v310 = vadd.f32 %v308, 1e-12
    %v311 = vrsqrt.pop %v309
    %v312 = vrsqrt.pop %v310
    %v313 = vmul.f32 %v297, %v311
    %v314 = vmul.f32 %v298, %v312
    %v316 = vlaneseq
    %v317 = vshrl.u32 %v316, 7
    %v318 = vsub.s32 0, %v317
    %v319 = vrot.slane %v284, %v318
    %v321 = vmul.f32 %v313, %v319
    %v322 = vmul.f32 %v314, %v319
    %v324 = vlaneseq
    %v325 = vshrl.u32 %v324, 7
    %v326 = vsub.s32 0, %v325
    %v327 = vrot.slane %v285, %v326
    %v329 = vadd.f32 %v321, %v327
    %v330 = vadd.f32 %v322, %v327
    %v331 = vld [vmem:[%s15] sm:$0xff]
    %v332 = vld [vmem:[%s15 + $0x8] sm:$0xff]
    %v333 = vld [vmem:[%s15 + $0x10] sm:$0xff]
    %v334 = vld [vmem:[%s15 + $0x18] sm:$0xff]
    %v335 = vld [vmem:[%s17] sm:$0x1]
    %v337 = vlaneseq
    %v338 = vshrl.u32 %v337, 7
    %v339 = vsub.s32 0, %v338
    %v340 = vrot.slane %v335, %v339
    %v343 = vsel %vm286, %v329, 0
    %v346 = vsel %vm286, %v330, 0
    %348 = vmatprep.subr.mxu0 0.0
    %349 = vmatpush1.msra.mxu0 %v331
    %350 = vmatprep.subr.mxu0 0.0
    %351 = vmatpush1.msra.mxu0 %v332
    %352 = vmatprep.subr.mxu0 0.0
    %353 = vmatpush1.msra.mxu0 %v333
    %354 = vmatprep.subr.mxu0 0.0
    %355 = vmatpush1.msra.mxu0 %v334
    %356 = vmatprep.subr.mxu0 0.0
    %357 = vmatpush1.msra.mxu0 0.0
    %358 = vmatprep.subr.mxu0 0.0
    %359 = vmatpush1.msra.mxu0 0.0
    %360 = vmatprep.subr.mxu0 0.0
    %361 = vmatpush1.msra.mxu0 0.0
    %362 = vmatprep.subr.mxu0 0.0
    %363 = vmatpush1.msra.mxu0 0.0
    %364 = vmatprep.subr.mxu0 0.0
    %365 = vmatpush1.msra.mxu0 0.0
    %366 = vmatprep.subr.mxu0 0.0
    %367 = vmatpush1.msra.mxu0 0.0
    %368 = vmatprep.subr.mxu0 0.0
    %369 = vmatpush1.msra.mxu0 0.0
    %370 = vmatprep.subr.mxu0 0.0
    %371 = vmatpush1.msra.mxu0 0.0
    %372 = vmatprep.subr.mxu0 0.0
    %373 = vmatpush1.msra.mxu0 0.0
    %374 = vmatprep.subr.mxu0 0.0
    %375 = vmatpush1.msra.mxu0 0.0
    %376 = vmatprep.subr.mxu0 0.0
    %377 = vmatpush1.msra.mxu0 0.0
    %378 = vmatprep.subr.mxu0 0.0
    %379 = vmatpush1.msra.mxu0 0.0
    %380 = vmatprep.subr.mxu0 0.0
    %381 = vmatpush1.msra.mxu0 0.0
    %382 = vmatprep.subr.mxu0 0.0
    %383 = vmatpush1.msra.mxu0 0.0
    %384 = vmatprep.subr.mxu0 0.0
    %385 = vmatpush1.msra.mxu0 0.0
    %386 = vmatprep.subr.mxu0 0.0
    %387 = vmatpush1.msra.mxu0 0.0
    %388 = vmatprep.subr.mxu0 0.0
    %389 = vmatpush1.msra.mxu0 0.0
    %390 = vmatprep.subr.mxu0 0.0
    %391 = vmatpush1.msra.mxu0 0.0
    %392 = vmatprep.subr.mxu0 0.0
    %393 = vmatpush1.msra.mxu0 0.0
    %394 = vmatprep.subr.mxu0 0.0
    %395 = vmatpush1.msra.mxu0 0.0
    %396 = vmatprep.subr.mxu0 0.0
    %397 = vmatpush1.msra.mxu0 0.0
    %398 = vmatprep.subr.mxu0 0.0
    %399 = vmatpush1.msra.mxu0 0.0
    %400 = vmatprep.subr.mxu0 0.0
    %401 = vmatpush1.msra.mxu0 0.0
    %402 = vmatprep.subr.mxu0 0.0
    %403 = vmatpush1.msra.mxu0 0.0
    %404 = vmatprep.subr.mxu0 0.0
    %405 = vmatpush1.msra.mxu0 0.0
    %406 = vmatprep.subr.mxu0 0.0
    %407 = vmatpush1.msra.mxu0 0.0
    %408 = vmatprep.subr.mxu0 0.0
    %409 = vmatpush1.msra.mxu0 0.0
    %410 = vmatprep.subr.mxu0 0.0
    %411 = vmatpush1.msra.mxu0 0.0
    %412 = vmatprep.mubr.f32.mxu0 0.0
    %413 = vmatmul.mubr.f32.gmra.mrb[0].mxu0 %v343
    %v414 = vpop.f32.mrb[0].mxu0
    %v415 = vadd.f32 %v340, %v414
    %v416 = vpop.f32.mrb[0].mxu0
    %417 = vmatprep.mubr.f32.mxu0 0.0
    %418 = vmatmul.mubr.f32.gmra.mrb[0].mxu0 %v346
    %v419 = vpop.f32.mrb[0].mxu0
    %v420 = vadd.f32 %v340, %v419
    %v421 = vpop.f32.mrb[0].mxu0
    %422 = vdwg.mxu0
    %424 = vrot.lane.b32.xlu0 %v415, 96
    %v425 = vpop.permute.xlu0 %424
    %vm426 = vcmask 64512
    %v427 = vsel %vm426, %v415, 0
    %v429 = vsel %vm426, %v425, 0
    %431 = vmatprep.subr.mxu0 0.0
    %432 = vmatpush1.xpose.msra.mxu0 %v429
    %433 = vmatprep.subr.mxu0 0.0
    %434 = vmatpush1.xpose.msra.mxu0 0.0
    %435 = vmatprep.subr.mxu0 0.0
    %436 = vmatpush1.xpose.msra.mxu0 0.0
    %437 = vmatprep.subr.mxu0 0.0
    %438 = vmatpush1.xpose.msra.mxu0 0.0
    %439 = vmatprep.subr.mxu0 0.0
    %440 = vmatpush1.xpose.msra.mxu0 0.0
    %441 = vmatprep.subr.mxu0 0.0
    %442 = vmatpush1.xpose.msra.mxu0 0.0
    %443 = vmatprep.subr.mxu0 0.0
    %444 = vmatpush1.xpose.msra.mxu0 0.0
    %445 = vmatprep.subr.mxu0 0.0
    %446 = vmatpush1.xpose.msra.mxu0 0.0
    %447 = vmatprep.subr.mxu0 0.0
    %448 = vmatpush1.xpose.msra.mxu0 0.0
    %449 = vmatprep.subr.mxu0 0.0
    %450 = vmatpush1.xpose.msra.mxu0 0.0
    %451 = vmatprep.subr.mxu0 0.0
    %452 = vmatpush1.xpose.msra.mxu0 0.0
    %453 = vmatprep.subr.mxu0 0.0
    %454 = vmatpush1.xpose.msra.mxu0 0.0
    %455 = vmatprep.subr.mxu0 0.0
    %456 = vmatpush1.xpose.msra.mxu0 0.0
    %457 = vmatprep.subr.mxu0 0.0
    %458 = vmatpush1.xpose.msra.mxu0 0.0
    %459 = vmatprep.subr.mxu0 0.0
    %460 = vmatpush1.xpose.msra.mxu0 0.0
    %461 = vmatprep.subr.mxu0 0.0
    %462 = vmatpush1.xpose.msra.mxu0 0.0
    %463 = vmatprep.subr.mxu0 0.0
    %464 = vmatpush1.xpose.msra.mxu0 0.0
    %465 = vmatprep.subr.mxu0 0.0
    %466 = vmatpush1.xpose.msra.mxu0 0.0
    %467 = vmatprep.subr.mxu0 0.0
    %468 = vmatpush1.xpose.msra.mxu0 0.0
    %469 = vmatprep.subr.mxu0 0.0
    %470 = vmatpush1.xpose.msra.mxu0 0.0
    %471 = vmatprep.subr.mxu0 0.0
    %472 = vmatpush1.xpose.msra.mxu0 0.0
    %473 = vmatprep.subr.mxu0 0.0
    %474 = vmatpush1.xpose.msra.mxu0 0.0
    %475 = vmatprep.subr.mxu0 0.0
    %476 = vmatpush1.xpose.msra.mxu0 0.0
    %477 = vmatprep.subr.mxu0 0.0
    %478 = vmatpush1.xpose.msra.mxu0 0.0
    %479 = vmatprep.subr.mxu0 0.0
    %480 = vmatpush1.xpose.msra.mxu0 0.0
    %481 = vmatprep.subr.mxu0 0.0
    %482 = vmatpush1.xpose.msra.mxu0 0.0
    %483 = vmatprep.subr.mxu0 0.0
    %484 = vmatpush1.xpose.msra.mxu0 0.0
    %485 = vmatprep.subr.mxu0 0.0
    %486 = vmatpush1.xpose.msra.mxu0 0.0
    %487 = vmatprep.subr.mxu0 0.0
    %488 = vmatpush1.xpose.msra.mxu0 0.0
    %489 = vmatprep.subr.mxu0 0.0
    %490 = vmatpush1.xpose.msra.mxu0 0.0
    %491 = vmatprep.subr.mxu0 0.0
    %492 = vmatpush1.xpose.msra.mxu0 0.0
    %493 = vmatprep.subr.mxu0 0.0
    %494 = vmatpush1.xpose.msra.mxu0 0.0
    %495 = vmatprep.mubr.f32.mxu0 0.0
    %496 = vmatmul.mubr.f32.gmra.mrb[0].mxu0 %v427
    %v497 = vpop.f32.mrb[0].mxu0
    %v498 = vadd.f32 0.0, %v497
    %v499 = vpop.f32.mrb[0].mxu0
    %500 = vdwg.mxu0
    %v501 = vmul.f32 %v498, 0.35355338
    %vm502 = vcmask 36864
    %v503 = vsel %vm502, %v501, -inf
    %504 = vmax.xlane.f32.xlu0 %v503
    %v505 = vpop.xlane.xlu0 %504
    %v506 = vsub.f32 %v501, %v505
    %v507 = vmul.f32 %v506, 1.442695
    %v508 = vpow.pop %v507
    %v509 = vsel %vm502, %v508, 0.0
    %510 = vadd.xlane.f32.xlu0 %v509
    %v511 = vpop.xlane.xlu0 %510
    %v512 = vrcp.pop %v511
    %v513 = vmul.f32 %v508, %v512
    %514 = vrot.lane.b32.xlu0 %v415, 64
    %v515 = vpop.permute.xlu0 %514
    %vm516 = vcmask 39936
    %v518 = vsel %vm516, %v513, 0
    %v520 = vsel %vm280, %v515, 0
    %522 = vmatprep.subr.mxu0 0.0
    %523 = vmatpush1.msra.mxu0 %v520
    %524 = vmatprep.subr.mxu0 0.0
    %525 = vmatpush1.msra.mxu0 0.0
    %526 = vmatprep.subr.mxu0 0.0
    %527 = vmatpush1.msra.mxu0 0.0
    %528 = vmatprep.subr.mxu0 0.0
    %529 = vmatpush1.msra.mxu0 0.0
    %530 = vmatprep.subr.mxu0 0.0
    %531 = vmatpush1.msra.mxu0 0.0
    %532 = vmatprep.subr.mxu0 0.0
    %533 = vmatpush1.msra.mxu0 0.0
    %534 = vmatprep.subr.mxu0 0.0
    %535 = vmatpush1.msra.mxu0 0.0
    %536 = vmatprep.subr.mxu0 0.0
    %537 = vmatpush1.msra.mxu0 0.0
    %538 = vmatprep.subr.mxu0 0.0
    %539 = vmatpush1.msra.mxu0 0.0
    %540 = vmatprep.subr.mxu0 0.0
    %541 = vmatpush1.msra.mxu0 0.0
    %542 = vmatprep.subr.mxu0 0.0
    %543 = vmatpush1.msra.mxu0 0.0
    %544 = vmatprep.subr.mxu0 0.0
    %545 = vmatpush1.msra.mxu0 0.0
    %546 = vmatprep.subr.mxu0 0.0
    %547 = vmatpush1.msra.mxu0 0.0
    %548 = vmatprep.subr.mxu0 0.0
    %549 = vmatpush1.msra.mxu0 0.0
    %550 = vmatprep.subr.mxu0 0.0
    %551 = vmatpush1.msra.mxu0 0.0
    %552 = vmatprep.subr.mxu0 0.0
    %553 = vmatpush1.msra.mxu0 0.0
    %554 = vmatprep.subr.mxu0 0.0
    %555 = vmatpush1.msra.mxu0 0.0
    %556 = vmatprep.subr.mxu0 0.0
    %557 = vmatpush1.msra.mxu0 0.0
    %558 = vmatprep.subr.mxu0 0.0
    %559 = vmatpush1.msra.mxu0 0.0
    %560 = vmatprep.subr.mxu0 0.0
    %561 = vmatpush1.msra.mxu0 0.0
    %562 = vmatprep.subr.mxu0 0.0
    %563 = vmatpush1.msra.mxu0 0.0
    %564 = vmatprep.subr.mxu0 0.0
    %565 = vmatpush1.msra.mxu0 0.0
    %566 = vmatprep.subr.mxu0 0.0
    %567 = vmatpush1.msra.mxu0 0.0
    %568 = vmatprep.subr.mxu0 0.0
    %569 = vmatpush1.msra.mxu0 0.0
    %570 = vmatprep.subr.mxu0 0.0
    %571 = vmatpush1.msra.mxu0 0.0
    %572 = vmatprep.subr.mxu0 0.0
    %573 = vmatpush1.msra.mxu0 0.0
    %574 = vmatprep.subr.mxu0 0.0
    %575 = vmatpush1.msra.mxu0 0.0
    %576 = vmatprep.subr.mxu0 0.0
    %577 = vmatpush1.msra.mxu0 0.0
    %578 = vmatprep.subr.mxu0 0.0
    %579 = vmatpush1.msra.mxu0 0.0
    %580 = vmatprep.subr.mxu0 0.0
    %581 = vmatpush1.msra.mxu0 0.0
    %582 = vmatprep.subr.mxu0 0.0
    %583 = vmatpush1.msra.mxu0 0.0
    %584 = vmatprep.subr.mxu0 0.0
    %585 = vmatpush1.msra.mxu0 0.0
    %586 = vmatprep.mubr.f32.mxu0 0.0
    %587 = vmatmul.mubr.f32.gmra.mrb[0].mxu0 %v518
    %v588 = vpop.f32.mrb[0].mxu0
    %v589 = vadd.f32 0.0, %v588
    %v590 = vpop.f32.mrb[0].mxu0
    %591 = vdwg.mxu0
    %592 = vrot.lane.b32.xlu0 %v415, 120
    %v593 = vpop.permute.xlu0 %592
    %594 = vrot.lane.b32.xlu0 %v415, 88
    %v595 = vpop.permute.xlu0 %594
    %v596 = vsel %vm426, %v593, 0
    %v598 = vsel %vm426, %v595, 0
    %600 = vmatprep.subr.mxu0 0.0
    %601 = vmatpush1.xpose.msra.mxu0 %v598
    %602 = vmatprep.subr.mxu0 0.0
    %603 = vmatpush1.xpose.msra.mxu0 0.0
    %604 = vmatprep.subr.mxu0 0.0
    %605 = vmatpush1.xpose.msra.mxu0 0.0
    %606 = vmatprep.subr.mxu0 0.0
    %607 = vmatpush1.xpose.msra.mxu0 0.0
    %608 = vmatprep.subr.mxu0 0.0
    %609 = vmatpush1.xpose.msra.mxu0 0.0
    %610 = vmatprep.subr.mxu0 0.0
    %611 = vmatpush1.xpose.msra.mxu0 0.0
    %612 = vmatprep.subr.mxu0 0.0
    %613 = vmatpush1.xpose.msra.mxu0 0.0
    %614 = vmatprep.subr.mxu0 0.0
    %615 = vmatpush1.xpose.msra.mxu0 0.0
    %616 = vmatprep.subr.mxu0 0.0
    %617 = vmatpush1.xpose.msra.mxu0 0.0
    %618 = vmatprep.subr.mxu0 0.0
    %619 = vmatpush1.xpose.msra.mxu0 0.0
    %620 = vmatprep.subr.mxu0 0.0
    %621 = vmatpush1.xpose.msra.mxu0 0.0
    %622 = vmatprep.subr.mxu0 0.0
    %623 = vmatpush1.xpose.msra.mxu0 0.0
    %624 = vmatprep.subr.mxu0 0.0
    %625 = vmatpush1.xpose.msra.mxu0 0.0
    %626 = vmatprep.subr.mxu0 0.0
    %627 = vmatpush1.xpose.msra.mxu0 0.0
    %628 = vmatprep.subr.mxu0 0.0
    %629 = vmatpush1.xpose.msra.mxu0 0.0
    %630 = vmatprep.subr.mxu0 0.0
    %631 = vmatpush1.xpose.msra.mxu0 0.0
    %632 = vmatprep.subr.mxu0 0.0
    %633 = vmatpush1.xpose.msra.mxu0 0.0
    %634 = vmatprep.subr.mxu0 0.0
    %635 = vmatpush1.xpose.msra.mxu0 0.0
    %636 = vmatprep.subr.mxu0 0.0
    %637 = vmatpush1.xpose.msra.mxu0 0.0
    %638 = vmatprep.subr.mxu0 0.0
    %639 = vmatpush1.xpose.msra.mxu0 0.0
    %640 = vmatprep.subr.mxu0 0.0
    %641 = vmatpush1.xpose.msra.mxu0 0.0
    %642 = vmatprep.subr.mxu0 0.0
    %643 = vmatpush1.xpose.msra.mxu0 0.0
    %644 = vmatprep.subr.mxu0 0.0
    %645 = vmatpush1.xpose.msra.mxu0 0.0
    %646 = vmatprep.subr.mxu0 0.0
    %647 = vmatpush1.xpose.msra.mxu0 0.0
    %648 = vmatprep.subr.mxu0 0.0
    %649 = vmatpush1.xpose.msra.mxu0 0.0
    %650 = vmatprep.subr.mxu0 0.0
    %651 = vmatpush1.xpose.msra.mxu0 0.0
    %652 = vmatprep.subr.mxu0 0.0
    %653 = vmatpush1.xpose.msra.mxu0 0.0
    %654 = vmatprep.subr.mxu0 0.0
    %655 = vmatpush1.xpose.msra.mxu0 0.0
    %656 = vmatprep.subr.mxu0 0.0
    %657 = vmatpush1.xpose.msra.mxu0 0.0
    %658 = vmatprep.subr.mxu0 0.0
    %659 = vmatpush1.xpose.msra.mxu0 0.0
    %660 = vmatprep.subr.mxu0 0.0
    %661 = vmatpush1.xpose.msra.mxu0 0.0
    %662 = vmatprep.subr.mxu0 0.0
    %663 = vmatpush1.xpose.msra.mxu0 0.0
    %664 = vmatprep.mubr.f32.mxu0 0.0
    %665 = vmatmul.mubr.f32.gmra.mrb[0].mxu0 %v596
    %v666 = vpop.f32.mrb[0].mxu0
    %v667 = vadd.f32 0.0, %v666
    %v668 = vpop.f32.mrb[0].mxu0
    %669 = vdwg.mxu0
    %v670 = vmul.f32 %v667, 0.35355338
    %v671 = vsel %vm502, %v670, -inf
    %672 = vmax.xlane.f32.xlu0 %v671
    %v673 = vpop.xlane.xlu0 %672
    %v674 = vsub.f32 %v670, %v673
    %v675 = vmul.f32 %v674, 1.442695
    %v676 = vpow.pop %v675
    %v677 = vsel %vm502, %v676, 0.0
    %678 = vadd.xlane.f32.xlu0 %v677
    %v679 = vpop.xlane.xlu0 %678
    %v680 = vrcp.pop %v679
    %v681 = vmul.f32 %v676, %v680
    %682 = vrot.lane.b32.xlu0 %v415, 56
    %v683 = vpop.permute.xlu0 %682
    %v685 = vsel %vm516, %v681, 0
    %v687 = vsel %vm280, %v683, 0
    %689 = vmatprep.subr.mxu0 0.0
    %690 = vmatpush1.msra.mxu0 %v687
    %691 = vmatprep.subr.mxu0 0.0
    %692 = vmatpush1.msra.mxu0 0.0
    %693 = vmatprep.subr.mxu0 0.0
    %694 = vmatpush1.msra.mxu0 0.0
    %695 = vmatprep.subr.mxu0 0.0
    %696 = vmatpush1.msra.mxu0 0.0
    %697 = vmatprep.subr.mxu0 0.0
    %698 = vmatpush1.msra.mxu0 0.0
    %699 = vmatprep.subr.mxu0 0.0
    %700 = vmatpush1.msra.mxu0 0.0
    %701 = vmatprep.subr.mxu0 0.0
    %702 = vmatpush1.msra.mxu0 0.0
    %703 = vmatprep.subr.mxu0 0.0
    %704 = vmatpush1.msra.mxu0 0.0
    %705 = vmatprep.subr.mxu0 0.0
    %706 = vmatpush1.msra.mxu0 0.0
    %707 = vmatprep.subr.mxu0 0.0
    %708 = vmatpush1.msra.mxu0 0.0
    %709 = vmatprep.subr.mxu0 0.0
    %710 = vmatpush1.msra.mxu0 0.0
    %711 = vmatprep.subr.mxu0 0.0
    %712 = vmatpush1.msra.mxu0 0.0
    %713 = vmatprep.subr.mxu0 0.0
    %714 = vmatpush1.msra.mxu0 0.0
    %715 = vmatprep.subr.mxu0 0.0
    %716 = vmatpush1.msra.mxu0 0.0
    %717 = vmatprep.subr.mxu0 0.0
    %718 = vmatpush1.msra.mxu0 0.0
    %719 = vmatprep.subr.mxu0 0.0
    %720 = vmatpush1.msra.mxu0 0.0
    %721 = vmatprep.subr.mxu0 0.0
    %722 = vmatpush1.msra.mxu0 0.0
    %723 = vmatprep.subr.mxu0 0.0
    %724 = vmatpush1.msra.mxu0 0.0
    %725 = vmatprep.subr.mxu0 0.0
    %726 = vmatpush1.msra.mxu0 0.0
    %727 = vmatprep.subr.mxu0 0.0
    %728 = vmatpush1.msra.mxu0 0.0
    %729 = vmatprep.subr.mxu0 0.0
    %730 = vmatpush1.msra.mxu0 0.0
    %731 = vmatprep.subr.mxu0 0.0
    %732 = vmatpush1.msra.mxu0 0.0
    %733 = vmatprep.subr.mxu0 0.0
    %734 = vmatpush1.msra.mxu0 0.0
    %735 = vmatprep.subr.mxu0 0.0
    %736 = vmatpush1.msra.mxu0 0.0
    %737 = vmatprep.subr.mxu0 0.0
    %738 = vmatpush1.msra.mxu0 0.0
    %739 = vmatprep.subr.mxu0 0.0
    %740 = vmatpush1.msra.mxu0 0.0
    %741 = vmatprep.subr.mxu0 0.0
    %742 = vmatpush1.msra.mxu0 0.0
    %743 = vmatprep.subr.mxu0 0.0
    %744 = vmatpush1.msra.mxu0 0.0
    %745 = vmatprep.subr.mxu0 0.0
    %746 = vmatpush1.msra.mxu0 0.0
    %747 = vmatprep.subr.mxu0 0.0
    %748 = vmatpush1.msra.mxu0 0.0
    %749 = vmatprep.subr.mxu0 0.0
    %750 = vmatpush1.msra.mxu0 0.0
    %751 = vmatprep.subr.mxu0 0.0
    %752 = vmatpush1.msra.mxu0 0.0
    %753 = vmatprep.mubr.f32.mxu0 0.0
    %754 = vmatmul.mubr.f32.gmra.mrb[0].mxu0 %v685
    %v755 = vpop.f32.mrb[0].mxu0
    %v756 = vadd.f32 0.0, %v755
    %v757 = vpop.f32.mrb[0].mxu0
    %758 = vdwg.mxu0
    %759 = vrot.lane.b32.xlu0 %v415, 112
    %v760 = vpop.permute.xlu0 %759
    %761 = vrot.lane.b32.xlu0 %v415, 80
    %v762 = vpop.permute.xlu0 %761
    %v763 = vsel %vm426, %v760, 0
    %v765 = vsel %vm426, %v762, 0
    %767 = vmatprep.subr.mxu0 0.0
    %768 = vmatpush1.xpose.msra.mxu0 %v765
    %769 = vmatprep.subr.mxu0 0.0
    %770 = vmatpush1.xpose.msra.mxu0 0.0
    %771 = vmatprep.subr.mxu0 0.0
    %772 = vmatpush1.xpose.msra.mxu0 0.0
    %773 = vmatprep.subr.mxu0 0.0
    %774 = vmatpush1.xpose.msra.mxu0 0.0
    %775 = vmatprep.subr.mxu0 0.0
    %776 = vmatpush1.xpose.msra.mxu0 0.0
    %777 = vmatprep.subr.mxu0 0.0
    %778 = vmatpush1.xpose.msra.mxu0 0.0
    %779 = vmatprep.subr.mxu0 0.0
    %780 = vmatpush1.xpose.msra.mxu0 0.0
    %781 = vmatprep.subr.mxu0 0.0
    %782 = vmatpush1.xpose.msra.mxu0 0.0
    %783 = vmatprep.subr.mxu0 0.0
    %784 = vmatpush1.xpose.msra.mxu0 0.0
    %785 = vmatprep.subr.mxu0 0.0
    %786 = vmatpush1.xpose.msra.mxu0 0.0
    %787 = vmatprep.subr.mxu0 0.0
    %788 = vmatpush1.xpose.msra.mxu0 0.0
    %789 = vmatprep.subr.mxu0 0.0
    %790 = vmatpush1.xpose.msra.mxu0 0.0
    %791 = vmatprep.subr.mxu0 0.0
    %792 = vmatpush1.xpose.msra.mxu0 0.0
    %793 = vmatprep.subr.mxu0 0.0
    %794 = vmatpush1.xpose.msra.mxu0 0.0
    %795 = vmatprep.subr.mxu0 0.0
    %796 = vmatpush1.xpose.msra.mxu0 0.0
    %797 = vmatprep.subr.mxu0 0.0
    %798 = vmatpush1.xpose.msra.mxu0 0.0
    %799 = vmatprep.subr.mxu0 0.0
    %800 = vmatpush1.xpose.msra.mxu0 0.0
    %801 = vmatprep.subr.mxu0 0.0
    %802 = vmatpush1.xpose.msra.mxu0 0.0
    %803 = vmatprep.subr.mxu0 0.0
    %804 = vmatpush1.xpose.msra.mxu0 0.0
    %805 = vmatprep.subr.mxu0 0.0
    %806 = vmatpush1.xpose.msra.mxu0 0.0
    %807 = vmatprep.subr.mxu0 0.0
    %808 = vmatpush1.xpose.msra.mxu0 0.0
    %809 = vmatprep.subr.mxu0 0.0
    %810 = vmatpush1.xpose.msra.mxu0 0.0
    %811 = vmatprep.subr.mxu0 0.0
    %812 = vmatpush1.xpose.msra.mxu0 0.0
    %813 = vmatprep.subr.mxu0 0.0
    %814 = vmatpush1.xpose.msra.mxu0 0.0
    %815 = vmatprep.subr.mxu0 0.0
    %816 = vmatpush1.xpose.msra.mxu0 0.0
    %817 = vmatprep.subr.mxu0 0.0
    %818 = vmatpush1.xpose.msra.mxu0 0.0
    %819 = vmatprep.subr.mxu0 0.0
    %820 = vmatpush1.xpose.msra.mxu0 0.0
    %821 = vmatprep.subr.mxu0 0.0
    %822 = vmatpush1.xpose.msra.mxu0 0.0
    %823 = vmatprep.subr.mxu0 0.0
    %824 = vmatpush1.xpose.msra.mxu0 0.0
    %825 = vmatprep.subr.mxu0 0.0
    %826 = vmatpush1.xpose.msra.mxu0 0.0
    %827 = vmatprep.subr.mxu0 0.0
    %828 = vmatpush1.xpose.msra.mxu0 0.0
    %829 = vmatprep.subr.mxu0 0.0
    %830 = vmatpush1.xpose.msra.mxu0 0.0
    %831 = vmatprep.mubr.f32.mxu0 0.0
    %832 = vmatmul.mubr.f32.gmra.mrb[0].mxu0 %v763
    %v833 = vpop.f32.mrb[0].mxu0
    %v834 = vadd.f32 0.0, %v833
    %v835 = vpop.f32.mrb[0].mxu0
    %836 = vdwg.mxu0
    %v837 = vmul.f32 %v834, 0.35355338
    %v838 = vsel %vm502, %v837, -inf
    %839 = vmax.xlane.f32.xlu0 %v838
    %v840 = vpop.xlane.xlu0 %839
    %v841 = vsub.f32 %v837, %v840
    %v842 = vmul.f32 %v841, 1.442695
    %v843 = vpow.pop %v842
    %v844 = vsel %vm502, %v843, 0.0
    %845 = vadd.xlane.f32.xlu0 %v844
    %v846 = vpop.xlane.xlu0 %845
    %v847 = vrcp.pop %v846
    %v848 = vmul.f32 %v843, %v847
    %849 = vrot.lane.b32.xlu0 %v415, 48
    %v850 = vpop.permute.xlu0 %849
    %v852 = vsel %vm516, %v848, 0
    %v854 = vsel %vm280, %v850, 0
    %856 = vmatprep.subr.mxu0 0.0
    %857 = vmatpush1.msra.mxu0 %v854
    %858 = vmatprep.subr.mxu0 0.0
    %859 = vmatpush1.msra.mxu0 0.0
    %860 = vmatprep.subr.mxu0 0.0
    %861 = vmatpush1.msra.mxu0 0.0
    %862 = vmatprep.subr.mxu0 0.0
    %863 = vmatpush1.msra.mxu0 0.0
    %864 = vmatprep.subr.mxu0 0.0
    %865 = vmatpush1.msra.mxu0 0.0
    %866 = vmatprep.subr.mxu0 0.0
    %867 = vmatpush1.msra.mxu0 0.0
    %868 = vmatprep.subr.mxu0 0.0
    %869 = vmatpush1.msra.mxu0 0.0
    %870 = vmatprep.subr.mxu0 0.0
    %871 = vmatpush1.msra.mxu0 0.0
    %872 = vmatprep.subr.mxu0 0.0
    %873 = vmatpush1.msra.mxu0 0.0
    %874 = vmatprep.subr.mxu0 0.0
    %875 = vmatpush1.msra.mxu0 0.0
    %876 = vmatprep.subr.mxu0 0.0
    %877 = vmatpush1.msra.mxu0 0.0
    %878 = vmatprep.subr.mxu0 0.0
    %879 = vmatpush1.msra.mxu0 0.0
    %880 = vmatprep.subr.mxu0 0.0
    %881 = vmatpush1.msra.mxu0 0.0
    %882 = vmatprep.subr.mxu0 0.0
    %883 = vmatpush1.msra.mxu0 0.0
    %884 = vmatprep.subr.mxu0 0.0
    %885 = vmatpush1.msra.mxu0 0.0
    %886 = vmatprep.subr.mxu0 0.0
    %887 = vmatpush1.msra.mxu0 0.0
    %888 = vmatprep.subr.mxu0 0.0
    %889 = vmatpush1.msra.mxu0 0.0
    %890 = vmatprep.subr.mxu0 0.0
    %891 = vmatpush1.msra.mxu0 0.0
    %892 = vmatprep.subr.mxu0 0.0
    %893 = vmatpush1.msra.mxu0 0.0
    %894 = vmatprep.subr.mxu0 0.0
    %895 = vmatpush1.msra.mxu0 0.0
    %896 = vmatprep.subr.mxu0 0.0
    %897 = vmatpush1.msra.mxu0 0.0
    %898 = vmatprep.subr.mxu0 0.0
    %899 = vmatpush1.msra.mxu0 0.0
    %900 = vmatprep.subr.mxu0 0.0
    %901 = vmatpush1.msra.mxu0 0.0
    %902 = vmatprep.subr.mxu0 0.0
    %903 = vmatpush1.msra.mxu0 0.0
    %904 = vmatprep.subr.mxu0 0.0
    %905 = vmatpush1.msra.mxu0 0.0
    %906 = vmatprep.subr.mxu0 0.0
    %907 = vmatpush1.msra.mxu0 0.0
    %908 = vmatprep.subr.mxu0 0.0
    %909 = vmatpush1.msra.mxu0 0.0
    %910 = vmatprep.subr.mxu0 0.0
    %911 = vmatpush1.msra.mxu0 0.0
    %912 = vmatprep.subr.mxu0 0.0
    %913 = vmatpush1.msra.mxu0 0.0
    %914 = vmatprep.subr.mxu0 0.0
    %915 = vmatpush1.msra.mxu0 0.0
    %916 = vmatprep.subr.mxu0 0.0
    %917 = vmatpush1.msra.mxu0 0.0
    %918 = vmatprep.subr.mxu0 0.0
    %919 = vmatpush1.msra.mxu0 0.0
    %920 = vmatprep.mubr.f32.mxu0 0.0
    %921 = vmatmul.mubr.f32.gmra.mrb[0].mxu0 %v852
    %v922 = vpop.f32.mrb[0].mxu0
    %v923 = vadd.f32 0.0, %v922
    %v924 = vpop.f32.mrb[0].mxu0
    %925 = vdwg.mxu0
    %926 = vrot.lane.b32.xlu0 %v415, 104
    %v927 = vpop.permute.xlu0 %926
    %928 = vrot.lane.b32.xlu0 %v415, 72
    %v929 = vpop.permute.xlu0 %928
    %v930 = vsel %vm426, %v927, 0
    %v932 = vsel %vm426, %v929, 0
    %934 = vmatprep.subr.mxu0 0.0
    %935 = vmatpush1.xpose.msra.mxu0 %v932
    %936 = vmatprep.subr.mxu0 0.0
    %937 = vmatpush1.xpose.msra.mxu0 0.0
    %938 = vmatprep.subr.mxu0 0.0
    %939 = vmatpush1.xpose.msra.mxu0 0.0
    %940 = vmatprep.subr.mxu0 0.0
    %941 = vmatpush1.xpose.msra.mxu0 0.0
    %942 = vmatprep.subr.mxu0 0.0
    %943 = vmatpush1.xpose.msra.mxu0 0.0
    %944 = vmatprep.subr.mxu0 0.0
    %945 = vmatpush1.xpose.msra.mxu0 0.0
    %946 = vmatprep.subr.mxu0 0.0
    %947 = vmatpush1.xpose.msra.mxu0 0.0
    %948 = vmatprep.subr.mxu0 0.0
    %949 = vmatpush1.xpose.msra.mxu0 0.0
    %950 = vmatprep.subr.mxu0 0.0
    %951 = vmatpush1.xpose.msra.mxu0 0.0
    %952 = vmatprep.subr.mxu0 0.0
    %953 = vmatpush1.xpose.msra.mxu0 0.0
    %954 = vmatprep.subr.mxu0 0.0
    %955 = vmatpush1.xpose.msra.mxu0 0.0
    %956 = vmatprep.subr.mxu0 0.0
    %957 = vmatpush1.xpose.msra.mxu0 0.0
    %958 = vmatprep.subr.mxu0 0.0
    %959 = vmatpush1.xpose.msra.mxu0 0.0
    %960 = vmatprep.subr.mxu0 0.0
    %961 = vmatpush1.xpose.msra.mxu0 0.0
    %962 = vmatprep.subr.mxu0 0.0
    %963 = vmatpush1.xpose.msra.mxu0 0.0
    %964 = vmatprep.subr.mxu0 0.0
    %965 = vmatpush1.xpose.msra.mxu0 0.0
    %966 = vmatprep.subr.mxu0 0.0
    %967 = vmatpush1.xpose.msra.mxu0 0.0
    %968 = vmatprep.subr.mxu0 0.0
    %969 = vmatpush1.xpose.msra.mxu0 0.0
    %970 = vmatprep.subr.mxu0 0.0
    %971 = vmatpush1.xpose.msra.mxu0 0.0
    %972 = vmatprep.subr.mxu0 0.0
    %973 = vmatpush1.xpose.msra.mxu0 0.0
    %974 = vmatprep.subr.mxu0 0.0
    %975 = vmatpush1.xpose.msra.mxu0 0.0
    %976 = vmatprep.subr.mxu0 0.0
    %977 = vmatpush1.xpose.msra.mxu0 0.0
    %978 = vmatprep.subr.mxu0 0.0
    %979 = vmatpush1.xpose.msra.mxu0 0.0
    %980 = vmatprep.subr.mxu0 0.0
    %981 = vmatpush1.xpose.msra.mxu0 0.0
    %982 = vmatprep.subr.mxu0 0.0
    %983 = vmatpush1.xpose.msra.mxu0 0.0
    %984 = vmatprep.subr.mxu0 0.0
    %985 = vmatpush1.xpose.msra.mxu0 0.0
    %986 = vmatprep.subr.mxu0 0.0
    %987 = vmatpush1.xpose.msra.mxu0 0.0
    %988 = vmatprep.subr.mxu0 0.0
    %989 = vmatpush1.xpose.msra.mxu0 0.0
    %990 = vmatprep.subr.mxu0 0.0
    %991 = vmatpush1.xpose.msra.mxu0 0.0
    %992 = vmatprep.subr.mxu0 0.0
    %993 = vmatpush1.xpose.msra.mxu0 0.0
    %994 = vmatprep.subr.mxu0 0.0
    %995 = vmatpush1.xpose.msra.mxu0 0.0
    %996 = vmatprep.subr.mxu0 0.0
    %997 = vmatpush1.xpose.msra.mxu0 0.0
    %998 = vmatprep.mubr.f32.mxu0 0.0
    %999 = vmatmul.mubr.f32.gmra.mrb[0].mxu0 %v930
    %v1000 = vpop.f32.mrb[0].mxu0
    %v1001 = vadd.f32 0.0, %v1000
    %v1002 = vpop.f32.mrb[0].mxu0
    %1003 = vdwg.mxu0
    %v1004 = vmul.f32 %v1001, 0.35355338
    %v1005 = vsel %vm502, %v1004, -inf
    %1006 = vmax.xlane.f32.xlu0 %v1005
    %v1007 = vpop.xlane.xlu0 %1006
    %v1008 = vsub.f32 %v1004, %v1007
    %v1009 = vmul.f32 %v1008, 1.442695
    %v1010 = vpow.pop %v1009
    %v1011 = vsel %vm502, %v1010, 0.0
    %1012 = vadd.xlane.f32.xlu0 %v1011
    %v1013 = vpop.xlane.xlu0 %1012
    %v1014 = vrcp.pop %v1013
    %v1015 = vmul.f32 %v1010, %v1014
    %1016 = vrot.lane.b32.xlu0 %v415, 40
    %v1017 = vpop.permute.xlu0 %1016
    %v1019 = vsel %vm516, %v1015, 0
    %v1021 = vsel %vm280, %v1017, 0
    %1023 = vmatprep.subr.mxu0 0.0
    %1024 = vmatpush1.msra.mxu0 %v1021
    %1025 = vmatprep.subr.mxu0 0.0
    %1026 = vmatpush1.msra.mxu0 0.0
    %1027 = vmatprep.subr.mxu0 0.0
    %1028 = vmatpush1.msra.mxu0 0.0
    %1029 = vmatprep.subr.mxu0 0.0
    %1030 = vmatpush1.msra.mxu0 0.0
    %1031 = vmatprep.subr.mxu0 0.0
    %1032 = vmatpush1.msra.mxu0 0.0
    %1033 = vmatprep.subr.mxu0 0.0
    %1034 = vmatpush1.msra.mxu0 0.0
    %1035 = vmatprep.subr.mxu0 0.0
    %1036 = vmatpush1.msra.mxu0 0.0
    %1037 = vmatprep.subr.mxu0 0.0
    %1038 = vmatpush1.msra.mxu0 0.0
    %1039 = vmatprep.subr.mxu0 0.0
    %1040 = vmatpush1.msra.mxu0 0.0
    %1041 = vmatprep.subr.mxu0 0.0
    %1042 = vmatpush1.msra.mxu0 0.0
    %1043 = vmatprep.subr.mxu0 0.0
    %1044 = vmatpush1.msra.mxu0 0.0
    %1045 = vmatprep.subr.mxu0 0.0
    %1046 = vmatpush1.msra.mxu0 0.0
    %1047 = vmatprep.subr.mxu0 0.0
    %1048 = vmatpush1.msra.mxu0 0.0
    %1049 = vmatprep.subr.mxu0 0.0
    %1050 = vmatpush1.msra.mxu0 0.0
    %1051 = vmatprep.subr.mxu0 0.0
    %1052 = vmatpush1.msra.mxu0 0.0
    %1053 = vmatprep.subr.mxu0 0.0
    %1054 = vmatpush1.msra.mxu0 0.0
    %1055 = vmatprep.subr.mxu0 0.0
    %1056 = vmatpush1.msra.mxu0 0.0
    %1057 = vmatprep.subr.mxu0 0.0
    %1058 = vmatpush1.msra.mxu0 0.0
    %1059 = vmatprep.subr.mxu0 0.0
    %1060 = vmatpush1.msra.mxu0 0.0
    %1061 = vmatprep.subr.mxu0 0.0
    %1062 = vmatpush1.msra.mxu0 0.0
    %1063 = vmatprep.subr.mxu0 0.0
    %1064 = vmatpush1.msra.mxu0 0.0
    %1065 = vmatprep.subr.mxu0 0.0
    %1066 = vmatpush1.msra.mxu0 0.0
    %1067 = vmatprep.subr.mxu0 0.0
    %1068 = vmatpush1.msra.mxu0 0.0
    %1069 = vmatprep.subr.mxu0 0.0
    %1070 = vmatpush1.msra.mxu0 0.0
    %1071 = vmatprep.subr.mxu0 0.0
    %1072 = vmatpush1.msra.mxu0 0.0
    %1073 = vmatprep.subr.mxu0 0.0
    %1074 = vmatpush1.msra.mxu0 0.0
    %1075 = vmatprep.subr.mxu0 0.0
    %1076 = vmatpush1.msra.mxu0 0.0
    %1077 = vmatprep.subr.mxu0 0.0
    %1078 = vmatpush1.msra.mxu0 0.0
    %1079 = vmatprep.subr.mxu0 0.0
    %1080 = vmatpush1.msra.mxu0 0.0
    %1081 = vmatprep.subr.mxu0 0.0
    %1082 = vmatpush1.msra.mxu0 0.0
    %1083 = vmatprep.subr.mxu0 0.0
    %1084 = vmatpush1.msra.mxu0 0.0
    %1085 = vmatprep.subr.mxu0 0.0
    %1086 = vmatpush1.msra.mxu0 0.0
    %1087 = vmatprep.mubr.f32.mxu0 0.0
    %1088 = vmatmul.mubr.f32.gmra.mrb[0].mxu0 %v1019
    %v1089 = vpop.f32.mrb[0].mxu0
    %v1090 = vadd.f32 0.0, %v1089
    %v1091 = vpop.f32.mrb[0].mxu0
    %1092 = vdwg.mxu0
    %1094 = vrot.lane.b32.xlu0 %v756, 8
    %v1095 = vpop.permute.xlu0 %1094
    %1098 = vrot.lane.b32.xlu0 %v923, 16
    %v1099 = vpop.permute.xlu0 %1098
    %1102 = vrot.lane.b32.xlu0 %v1090, 24
    %v1103 = vpop.permute.xlu0 %1102
    %v1105 = vsel %vm426, %v589, %v1095
    %vm1106 = vcmask 130048
    %v1107 = vsel %vm1106, %v1105, %v1099
    %vm1108 = vcmask 195584
    %v1109 = vsel %vm1108, %v1107, %v1103
    %vm1111 = vcmask 1042432
    %v1112 = vrot.slane %v415, 5
    %v1113 = vrot.slane %v420, 5
    %v1114 = vsel %vm1111, %v1112, %v1113
    %1115 = vrot.lane.b32.xlu0 %v1114, 96
    %v1116 = vpop.permute.xlu0 %1115
    %v1117 = vsel %vm426, %v1114, 0
    %v1119 = vsel %vm426, %v1116, 0
    %1121 = vmatprep.subr.mxu0 0.0
    %1122 = vmatpush1.xpose.msra.mxu0 %v1119
    %1123 = vmatprep.subr.mxu0 0.0
    %1124 = vmatpush1.xpose.msra.mxu0 0.0
    %1125 = vmatprep.subr.mxu0 0.0
    %1126 = vmatpush1.xpose.msra.mxu0 0.0
    %1127 = vmatprep.subr.mxu0 0.0
    %1128 = vmatpush1.xpose.msra.mxu0 0.0
    %1129 = vmatprep.subr.mxu0 0.0
    %1130 = vmatpush1.xpose.msra.mxu0 0.0
    %1131 = vmatprep.subr.mxu0 0.0
    %1132 = vmatpush1.xpose.msra.mxu0 0.0
    %1133 = vmatprep.subr.mxu0 0.0
    %1134 = vmatpush1.xpose.msra.mxu0 0.0
    %1135 = vmatprep.subr.mxu0 0.0
    %1136 = vmatpush1.xpose.msra.mxu0 0.0
    %1137 = vmatprep.subr.mxu0 0.0
    %1138 = vmatpush1.xpose.msra.mxu0 0.0
    %1139 = vmatprep.subr.mxu0 0.0
    %1140 = vmatpush1.xpose.msra.mxu0 0.0
    %1141 = vmatprep.subr.mxu0 0.0
    %1142 = vmatpush1.xpose.msra.mxu0 0.0
    %1143 = vmatprep.subr.mxu0 0.0
    %1144 = vmatpush1.xpose.msra.mxu0 0.0
    %1145 = vmatprep.subr.mxu0 0.0
    %1146 = vmatpush1.xpose.msra.mxu0 0.0
    %1147 = vmatprep.subr.mxu0 0.0
    %1148 = vmatpush1.xpose.msra.mxu0 0.0
    %1149 = vmatprep.subr.mxu0 0.0
    %1150 = vmatpush1.xpose.msra.mxu0 0.0
    %1151 = vmatprep.subr.mxu0 0.0
    %1152 = vmatpush1.xpose.msra.mxu0 0.0
    %1153 = vmatprep.subr.mxu0 0.0
    %1154 = vmatpush1.xpose.msra.mxu0 0.0
    %1155 = vmatprep.subr.mxu0 0.0
    %1156 = vmatpush1.xpose.msra.mxu0 0.0
    %1157 = vmatprep.subr.mxu0 0.0
    %1158 = vmatpush1.xpose.msra.mxu0 0.0
    %1159 = vmatprep.subr.mxu0 0.0
    %1160 = vmatpush1.xpose.msra.mxu0 0.0
    %1161 = vmatprep.subr.mxu0 0.0
    %1162 = vmatpush1.xpose.msra.mxu0 0.0
    %1163 = vmatprep.subr.mxu0 0.0
    %1164 = vmatpush1.xpose.msra.mxu0 0.0
    %1165 = vmatprep.subr.mxu0 0.0
    %1166 = vmatpush1.xpose.msra.mxu0 0.0
    %1167 = vmatprep.subr.mxu0 0.0
    %1168 = vmatpush1.xpose.msra.mxu0 0.0
    %1169 = vmatprep.subr.mxu0 0.0
    %1170 = vmatpush1.xpose.msra.mxu0 0.0
    %1171 = vmatprep.subr.mxu0 0.0
    %1172 = vmatpush1.xpose.msra.mxu0 0.0
    %1173 = vmatprep.subr.mxu0 0.0
    %1174 = vmatpush1.xpose.msra.mxu0 0.0
    %1175 = vmatprep.subr.mxu0 0.0
    %1176 = vmatpush1.xpose.msra.mxu0 0.0
    %1177 = vmatprep.subr.mxu0 0.0
    %1178 = vmatpush1.xpose.msra.mxu0 0.0
    %1179 = vmatprep.subr.mxu0 0.0
    %1180 = vmatpush1.xpose.msra.mxu0 0.0
    %1181 = vmatprep.subr.mxu0 0.0
    %1182 = vmatpush1.xpose.msra.mxu0 0.0
    %1183 = vmatprep.subr.mxu0 0.0
    %1184 = vmatpush1.xpose.msra.mxu0 0.0
    %1185 = vmatprep.mubr.f32.mxu0 0.0
    %1186 = vmatmul.mubr.f32.gmra.mrb[0].mxu0 %v1117
    %v1187 = vpop.f32.mrb[0].mxu0
    %v1188 = vadd.f32 0.0, %v1187
    %v1189 = vpop.f32.mrb[0].mxu0
    %1190 = vdwg.mxu0
    %v1191 = vmul.f32 %v1188, 0.35355338
    %v1192 = vsel %vm502, %v1191, -inf
    %1193 = vmax.xlane.f32.xlu0 %v1192
    %v1194 = vpop.xlane.xlu0 %1193
    %v1195 = vsub.f32 %v1191, %v1194
    %v1196 = vmul.f32 %v1195, 1.442695
    %v1197 = vpow.pop %v1196
    %v1198 = vsel %vm502, %v1197, 0.0
    %1199 = vadd.xlane.f32.xlu0 %v1198
    %v1200 = vpop.xlane.xlu0 %1199
    %v1201 = vrcp.pop %v1200
    %v1202 = vmul.f32 %v1197, %v1201
    %1203 = vrot.lane.b32.xlu0 %v1114, 64
    %v1204 = vpop.permute.xlu0 %1203
    %v1206 = vsel %vm516, %v1202, 0
    %v1208 = vsel %vm280, %v1204, 0
    %1210 = vmatprep.subr.mxu0 0.0
    %1211 = vmatpush1.msra.mxu0 %v1208
    %1212 = vmatprep.subr.mxu0 0.0
    %1213 = vmatpush1.msra.mxu0 0.0
    %1214 = vmatprep.subr.mxu0 0.0
    %1215 = vmatpush1.msra.mxu0 0.0
    %1216 = vmatprep.subr.mxu0 0.0
    %1217 = vmatpush1.msra.mxu0 0.0
    %1218 = vmatprep.subr.mxu0 0.0
    %1219 = vmatpush1.msra.mxu0 0.0
    %1220 = vmatprep.subr.mxu0 0.0
    %1221 = vmatpush1.msra.mxu0 0.0
    %1222 = vmatprep.subr.mxu0 0.0
    %1223 = vmatpush1.msra.mxu0 0.0
    %1224 = vmatprep.subr.mxu0 0.0
    %1225 = vmatpush1.msra.mxu0 0.0
    %1226 = vmatprep.subr.mxu0 0.0
    %1227 = vmatpush1.msra.mxu0 0.0
    %1228 = vmatprep.subr.mxu0 0.0
    %1229 = vmatpush1.msra.mxu0 0.0
    %1230 = vmatprep.subr.mxu0 0.0
    %1231 = vmatpush1.msra.mxu0 0.0
    %1232 = vmatprep.subr.mxu0 0.0
    %1233 = vmatpush1.msra.mxu0 0.0
    %1234 = vmatprep.subr.mxu0 0.0
    %1235 = vmatpush1.msra.mxu0 0.0
    %1236 = vmatprep.subr.mxu0 0.0
    %1237 = vmatpush1.msra.mxu0 0.0
    %1238 = vmatprep.subr.mxu0 0.0
    %1239 = vmatpush1.msra.mxu0 0.0
    %1240 = vmatprep.subr.mxu0 0.0
    %1241 = vmatpush1.msra.mxu0 0.0
    %1242 = vmatprep.subr.mxu0 0.0
    %1243 = vmatpush1.msra.mxu0 0.0
    %1244 = vmatprep.subr.mxu0 0.0
    %1245 = vmatpush1.msra.mxu0 0.0
    %1246 = vmatprep.subr.mxu0 0.0
    %1247 = vmatpush1.msra.mxu0 0.0
    %1248 = vmatprep.subr.mxu0 0.0
    %1249 = vmatpush1.msra.mxu0 0.0
    %1250 = vmatprep.subr.mxu0 0.0
    %1251 = vmatpush1.msra.mxu0 0.0
    %1252 = vmatprep.subr.mxu0 0.0
    %1253 = vmatpush1.msra.mxu0 0.0
    %1254 = vmatprep.subr.mxu0 0.0
    %1255 = vmatpush1.msra.mxu0 0.0
    %1256 = vmatprep.subr.mxu0 0.0
    %1257 = vmatpush1.msra.mxu0 0.0
    %1258 = vmatprep.subr.mxu0 0.0
    %1259 = vmatpush1.msra.mxu0 0.0
    %1260 = vmatprep.subr.mxu0 0.0
    %1261 = vmatpush1.msra.mxu0 0.0
    %1262 = vmatprep.subr.mxu0 0.0
    %1263 = vmatpush1.msra.mxu0 0.0
    %1264 = vmatprep.subr.mxu0 0.0
    %1265 = vmatpush1.msra.mxu0 0.0
    %1266 = vmatprep.subr.mxu0 0.0
    %1267 = vmatpush1.msra.mxu0 0.0
    %1268 = vmatprep.subr.mxu0 0.0
    %1269 = vmatpush1.msra.mxu0 0.0
    %1270 = vmatprep.subr.mxu0 0.0
    %1271 = vmatpush1.msra.mxu0 0.0
    %1272 = vmatprep.subr.mxu0 0.0
    %1273 = vmatpush1.msra.mxu0 0.0
    %1274 = vmatprep.mubr.f32.mxu0 0.0
    %1275 = vmatmul.mubr.f32.gmra.mrb[0].mxu0 %v1206
    %v1276 = vpop.f32.mrb[0].mxu0
    %v1277 = vadd.f32 0.0, %v1276
    %v1278 = vpop.f32.mrb[0].mxu0
    %1279 = vdwg.mxu0
    %1280 = vrot.lane.b32.xlu0 %v1114, 120
    %v1281 = vpop.permute.xlu0 %1280
    %1282 = vrot.lane.b32.xlu0 %v1114, 88
    %v1283 = vpop.permute.xlu0 %1282
    %v1284 = vsel %vm426, %v1281, 0
    %v1286 = vsel %vm426, %v1283, 0
    %1288 = vmatprep.subr.mxu0 0.0
    %1289 = vmatpush1.xpose.msra.mxu0 %v1286
    %1290 = vmatprep.subr.mxu0 0.0
    %1291 = vmatpush1.xpose.msra.mxu0 0.0
    %1292 = vmatprep.subr.mxu0 0.0
    %1293 = vmatpush1.xpose.msra.mxu0 0.0
    %1294 = vmatprep.subr.mxu0 0.0
    %1295 = vmatpush1.xpose.msra.mxu0 0.0
    %1296 = vmatprep.subr.mxu0 0.0
    %1297 = vmatpush1.xpose.msra.mxu0 0.0
    %1298 = vmatprep.subr.mxu0 0.0
    %1299 = vmatpush1.xpose.msra.mxu0 0.0
    %1300 = vmatprep.subr.mxu0 0.0
    %1301 = vmatpush1.xpose.msra.mxu0 0.0
    %1302 = vmatprep.subr.mxu0 0.0
    %1303 = vmatpush1.xpose.msra.mxu0 0.0
    %1304 = vmatprep.subr.mxu0 0.0
    %1305 = vmatpush1.xpose.msra.mxu0 0.0
    %1306 = vmatprep.subr.mxu0 0.0
    %1307 = vmatpush1.xpose.msra.mxu0 0.0
    %1308 = vmatprep.subr.mxu0 0.0
    %1309 = vmatpush1.xpose.msra.mxu0 0.0
    %1310 = vmatprep.subr.mxu0 0.0
    %1311 = vmatpush1.xpose.msra.mxu0 0.0
    %1312 = vmatprep.subr.mxu0 0.0
    %1313 = vmatpush1.xpose.msra.mxu0 0.0
    %1314 = vmatprep.subr.mxu0 0.0
    %1315 = vmatpush1.xpose.msra.mxu0 0.0
    %1316 = vmatprep.subr.mxu0 0.0
    %1317 = vmatpush1.xpose.msra.mxu0 0.0
    %1318 = vmatprep.subr.mxu0 0.0
    %1319 = vmatpush1.xpose.msra.mxu0 0.0
    %1320 = vmatprep.subr.mxu0 0.0
    %1321 = vmatpush1.xpose.msra.mxu0 0.0
    %1322 = vmatprep.subr.mxu0 0.0
    %1323 = vmatpush1.xpose.msra.mxu0 0.0
    %1324 = vmatprep.subr.mxu0 0.0
    %1325 = vmatpush1.xpose.msra.mxu0 0.0
    %1326 = vmatprep.subr.mxu0 0.0
    %1327 = vmatpush1.xpose.msra.mxu0 0.0
    %1328 = vmatprep.subr.mxu0 0.0
    %1329 = vmatpush1.xpose.msra.mxu0 0.0
    %1330 = vmatprep.subr.mxu0 0.0
    %1331 = vmatpush1.xpose.msra.mxu0 0.0
    %1332 = vmatprep.subr.mxu0 0.0
    %1333 = vmatpush1.xpose.msra.mxu0 0.0
    %1334 = vmatprep.subr.mxu0 0.0
    %1335 = vmatpush1.xpose.msra.mxu0 0.0
    %1336 = vmatprep.subr.mxu0 0.0
    %1337 = vmatpush1.xpose.msra.mxu0 0.0
    %1338 = vmatprep.subr.mxu0 0.0
    %1339 = vmatpush1.xpose.msra.mxu0 0.0
    %1340 = vmatprep.subr.mxu0 0.0
    %1341 = vmatpush1.xpose.msra.mxu0 0.0
    %1342 = vmatprep.subr.mxu0 0.0
    %1343 = vmatpush1.xpose.msra.mxu0 0.0
    %1344 = vmatprep.subr.mxu0 0.0
    %1345 = vmatpush1.xpose.msra.mxu0 0.0
    %1346 = vmatprep.subr.mxu0 0.0
    %1347 = vmatpush1.xpose.msra.mxu0 0.0
    %1348 = vmatprep.subr.mxu0 0.0
    %1349 = vmatpush1.xpose.msra.mxu0 0.0
    %1350 = vmatprep.subr.mxu0 0.0
    %1351 = vmatpush1.xpose.msra.mxu0 0.0
    %1352 = vmatprep.mubr.f32.mxu0 0.0
    %1353 = vmatmul.mubr.f32.gmra.mrb[0].mxu0 %v1284
    %v1354 = vpop.f32.mrb[0].mxu0
    %v1355 = vadd.f32 0.0, %v1354
    %v1356 = vpop.f32.mrb[0].mxu0
    %1357 = vdwg.mxu0
    %v1358 = vmul.f32 %v1355, 0.35355338
    %v1359 = vsel %vm502, %v1358, -inf
    %1360 = vmax.xlane.f32.xlu0 %v1359
    %v1361 = vpop.xlane.xlu0 %1360
    %v1362 = vsub.f32 %v1358, %v1361
    %v1363 = vmul.f32 %v1362, 1.442695
    %v1364 = vpow.pop %v1363
    %v1365 = vsel %vm502, %v1364, 0.0
    %1366 = vadd.xlane.f32.xlu0 %v1365
    %v1367 = vpop.xlane.xlu0 %1366
    %v1368 = vrcp.pop %v1367
    %v1369 = vmul.f32 %v1364, %v1368
    %1370 = vrot.lane.b32.xlu0 %v1114, 56
    %v1371 = vpop.permute.xlu0 %1370
    %v1373 = vsel %vm516, %v1369, 0
    %v1375 = vsel %vm280, %v1371, 0
    %1377 = vmatprep.subr.mxu0 0.0
    %1378 = vmatpush1.msra.mxu0 %v1375
    %1379 = vmatprep.subr.mxu0 0.0
    %1380 = vmatpush1.msra.mxu0 0.0
    %1381 = vmatprep.subr.mxu0 0.0
    %1382 = vmatpush1.msra.mxu0 0.0
    %1383 = vmatprep.subr.mxu0 0.0
    %1384 = vmatpush1.msra.mxu0 0.0
    %1385 = vmatprep.subr.mxu0 0.0
    %1386 = vmatpush1.msra.mxu0 0.0
    %1387 = vmatprep.subr.mxu0 0.0
    %1388 = vmatpush1.msra.mxu0 0.0
    %1389 = vmatprep.subr.mxu0 0.0
    %1390 = vmatpush1.msra.mxu0 0.0
    %1391 = vmatprep.subr.mxu0 0.0
    %1392 = vmatpush1.msra.mxu0 0.0
    %1393 = vmatprep.subr.mxu0 0.0
    %1394 = vmatpush1.msra.mxu0 0.0
    %1395 = vmatprep.subr.mxu0 0.0
    %1396 = vmatpush1.msra.mxu0 0.0
    %1397 = vmatprep.subr.mxu0 0.0
    %1398 = vmatpush1.msra.mxu0 0.0
    %1399 = vmatprep.subr.mxu0 0.0
    %1400 = vmatpush1.msra.mxu0 0.0
    %1401 = vmatprep.subr.mxu0 0.0
    %1402 = vmatpush1.msra.mxu0 0.0
    %1403 = vmatprep.subr.mxu0 0.0
    %1404 = vmatpush1.msra.mxu0 0.0
    %1405 = vmatprep.subr.mxu0 0.0
    %1406 = vmatpush1.msra.mxu0 0.0
    %1407 = vmatprep.subr.mxu0 0.0
    %1408 = vmatpush1.msra.mxu0 0.0
    %1409 = vmatprep.subr.mxu0 0.0
    %1410 = vmatpush1.msra.mxu0 0.0
    %1411 = vmatprep.subr.mxu0 0.0
    %1412 = vmatpush1.msra.mxu0 0.0
    %1413 = vmatprep.subr.mxu0 0.0
    %1414 = vmatpush1.msra.mxu0 0.0
    %1415 = vmatprep.subr.mxu0 0.0
    %1416 = vmatpush1.msra.mxu0 0.0
    %1417 = vmatprep.subr.mxu0 0.0
    %1418 = vmatpush1.msra.mxu0 0.0
    %1419 = vmatprep.subr.mxu0 0.0
    %1420 = vmatpush1.msra.mxu0 0.0
    %1421 = vmatprep.subr.mxu0 0.0
    %1422 = vmatpush1.msra.mxu0 0.0
    %1423 = vmatprep.subr.mxu0 0.0
    %1424 = vmatpush1.msra.mxu0 0.0
    %1425 = vmatprep.subr.mxu0 0.0
    %1426 = vmatpush1.msra.mxu0 0.0
    %1427 = vmatprep.subr.mxu0 0.0
    %1428 = vmatpush1.msra.mxu0 0.0
    %1429 = vmatprep.subr.mxu0 0.0
    %1430 = vmatpush1.msra.mxu0 0.0
    %1431 = vmatprep.subr.mxu0 0.0
    %1432 = vmatpush1.msra.mxu0 0.0
    %1433 = vmatprep.subr.mxu0 0.0
    %1434 = vmatpush1.msra.mxu0 0.0
    %1435 = vmatprep.subr.mxu0 0.0
    %1436 = vmatpush1.msra.mxu0 0.0
    %1437 = vmatprep.subr.mxu0 0.0
    %1438 = vmatpush1.msra.mxu0 0.0
    %1439 = vmatprep.subr.mxu0 0.0
    %1440 = vmatpush1.msra.mxu0 0.0
    %1441 = vmatprep.mubr.f32.mxu0 0.0
    %1442 = vmatmul.mubr.f32.gmra.mrb[0].mxu0 %v1373
    %v1443 = vpop.f32.mrb[0].mxu0
    %v1444 = vadd.f32 0.0, %v1443
    %v1445 = vpop.f32.mrb[0].mxu0
    %1446 = vdwg.mxu0
    %1447 = vrot.lane.b32.xlu0 %v1114, 112
    %v1448 = vpop.permute.xlu0 %1447
    %1449 = vrot.lane.b32.xlu0 %v1114, 80
    %v1450 = vpop.permute.xlu0 %1449
    %v1451 = vsel %vm426, %v1448, 0
    %v1453 = vsel %vm426, %v1450, 0
    %1455 = vmatprep.subr.mxu0 0.0
    %1456 = vmatpush1.xpose.msra.mxu0 %v1453
    %1457 = vmatprep.subr.mxu0 0.0
    %1458 = vmatpush1.xpose.msra.mxu0 0.0
    %1459 = vmatprep.subr.mxu0 0.0
    %1460 = vmatpush1.xpose.msra.mxu0 0.0
    %1461 = vmatprep.subr.mxu0 0.0
    %1462 = vmatpush1.xpose.msra.mxu0 0.0
    %1463 = vmatprep.subr.mxu0 0.0
    %1464 = vmatpush1.xpose.msra.mxu0 0.0
    %1465 = vmatprep.subr.mxu0 0.0
    %1466 = vmatpush1.xpose.msra.mxu0 0.0
    %1467 = vmatprep.subr.mxu0 0.0
    %1468 = vmatpush1.xpose.msra.mxu0 0.0
    %1469 = vmatprep.subr.mxu0 0.0
    %1470 = vmatpush1.xpose.msra.mxu0 0.0
    %1471 = vmatprep.subr.mxu0 0.0
    %1472 = vmatpush1.xpose.msra.mxu0 0.0
    %1473 = vmatprep.subr.mxu0 0.0
    %1474 = vmatpush1.xpose.msra.mxu0 0.0
    %1475 = vmatprep.subr.mxu0 0.0
    %1476 = vmatpush1.xpose.msra.mxu0 0.0
    %1477 = vmatprep.subr.mxu0 0.0
    %1478 = vmatpush1.xpose.msra.mxu0 0.0
    %1479 = vmatprep.subr.mxu0 0.0
    %1480 = vmatpush1.xpose.msra.mxu0 0.0
    %1481 = vmatprep.subr.mxu0 0.0
    %1482 = vmatpush1.xpose.msra.mxu0 0.0
    %1483 = vmatprep.subr.mxu0 0.0
    %1484 = vmatpush1.xpose.msra.mxu0 0.0
    %1485 = vmatprep.subr.mxu0 0.0
    %1486 = vmatpush1.xpose.msra.mxu0 0.0
    %1487 = vmatprep.subr.mxu0 0.0
    %1488 = vmatpush1.xpose.msra.mxu0 0.0
    %1489 = vmatprep.subr.mxu0 0.0
    %1490 = vmatpush1.xpose.msra.mxu0 0.0
    %1491 = vmatprep.subr.mxu0 0.0
    %1492 = vmatpush1.xpose.msra.mxu0 0.0
    %1493 = vmatprep.subr.mxu0 0.0
    %1494 = vmatpush1.xpose.msra.mxu0 0.0
    %1495 = vmatprep.subr.mxu0 0.0
    %1496 = vmatpush1.xpose.msra.mxu0 0.0
    %1497 = vmatprep.subr.mxu0 0.0
    %1498 = vmatpush1.xpose.msra.mxu0 0.0
    %1499 = vmatprep.subr.mxu0 0.0
    %1500 = vmatpush1.xpose.msra.mxu0 0.0
    %1501 = vmatprep.subr.mxu0 0.0
    %1502 = vmatpush1.xpose.msra.mxu0 0.0
    %1503 = vmatprep.subr.mxu0 0.0
    %1504 = vmatpush1.xpose.msra.mxu0 0.0
    %1505 = vmatprep.subr.mxu0 0.0
    %1506 = vmatpush1.xpose.msra.mxu0 0.0
    %1507 = vmatprep.subr.mxu0 0.0
    %1508 = vmatpush1.xpose.msra.mxu0 0.0
    %1509 = vmatprep.subr.mxu0 0.0
    %1510 = vmatpush1.xpose.msra.mxu0 0.0
    %1511 = vmatprep.subr.mxu0 0.0
    %1512 = vmatpush1.xpose.msra.mxu0 0.0
    %1513 = vmatprep.subr.mxu0 0.0
    %1514 = vmatpush1.xpose.msra.mxu0 0.0
    %1515 = vmatprep.subr.mxu0 0.0
    %1516 = vmatpush1.xpose.msra.mxu0 0.0
    %1517 = vmatprep.subr.mxu0 0.0
    %1518 = vmatpush1.xpose.msra.mxu0 0.0
    %1519 = vmatprep.mubr.f32.mxu0 0.0
    %1520 = vmatmul.mubr.f32.gmra.mrb[0].mxu0 %v1451
    %v1521 = vpop.f32.mrb[0].mxu0
    %v1522 = vadd.f32 0.0, %v1521
    %v1523 = vpop.f32.mrb[0].mxu0
    %1524 = vdwg.mxu0
    %v1525 = vmul.f32 %v1522, 0.35355338
    %v1526 = vsel %vm502, %v1525, -inf
    %1527 = vmax.xlane.f32.xlu0 %v1526
    %v1528 = vpop.xlane.xlu0 %1527
    %v1529 = vsub.f32 %v1525, %v1528
    %v1530 = vmul.f32 %v1529, 1.442695
    %v1531 = vpow.pop %v1530
    %v1532 = vsel %vm502, %v1531, 0.0
    %1533 = vadd.xlane.f32.xlu0 %v1532
    %v1534 = vpop.xlane.xlu0 %1533
    %v1535 = vrcp.pop %v1534
    %v1536 = vmul.f32 %v1531, %v1535
    %1537 = vrot.lane.b32.xlu0 %v1114, 48
    %v1538 = vpop.permute.xlu0 %1537
    %v1540 = vsel %vm516, %v1536, 0
    %v1542 = vsel %vm280, %v1538, 0
    %1544 = vmatprep.subr.mxu0 0.0
    %1545 = vmatpush1.msra.mxu0 %v1542
    %1546 = vmatprep.subr.mxu0 0.0
    %1547 = vmatpush1.msra.mxu0 0.0
    %1548 = vmatprep.subr.mxu0 0.0
    %1549 = vmatpush1.msra.mxu0 0.0
    %1550 = vmatprep.subr.mxu0 0.0
    %1551 = vmatpush1.msra.mxu0 0.0
    %1552 = vmatprep.subr.mxu0 0.0
    %1553 = vmatpush1.msra.mxu0 0.0
    %1554 = vmatprep.subr.mxu0 0.0
    %1555 = vmatpush1.msra.mxu0 0.0
    %1556 = vmatprep.subr.mxu0 0.0
    %1557 = vmatpush1.msra.mxu0 0.0
    %1558 = vmatprep.subr.mxu0 0.0
    %1559 = vmatpush1.msra.mxu0 0.0
    %1560 = vmatprep.subr.mxu0 0.0
    %1561 = vmatpush1.msra.mxu0 0.0
    %1562 = vmatprep.subr.mxu0 0.0
    %1563 = vmatpush1.msra.mxu0 0.0
    %1564 = vmatprep.subr.mxu0 0.0
    %1565 = vmatpush1.msra.mxu0 0.0
    %1566 = vmatprep.subr.mxu0 0.0
    %1567 = vmatpush1.msra.mxu0 0.0
    %1568 = vmatprep.subr.mxu0 0.0
    %1569 = vmatpush1.msra.mxu0 0.0
    %1570 = vmatprep.subr.mxu0 0.0
    %1571 = vmatpush1.msra.mxu0 0.0
    %1572 = vmatprep.subr.mxu0 0.0
    %1573 = vmatpush1.msra.mxu0 0.0
    %1574 = vmatprep.subr.mxu0 0.0
    %1575 = vmatpush1.msra.mxu0 0.0
    %1576 = vmatprep.subr.mxu0 0.0
    %1577 = vmatpush1.msra.mxu0 0.0
    %1578 = vmatprep.subr.mxu0 0.0
    %1579 = vmatpush1.msra.mxu0 0.0
    %1580 = vmatprep.subr.mxu0 0.0
    %1581 = vmatpush1.msra.mxu0 0.0
    %1582 = vmatprep.subr.mxu0 0.0
    %1583 = vmatpush1.msra.mxu0 0.0
    %1584 = vmatprep.subr.mxu0 0.0
    %1585 = vmatpush1.msra.mxu0 0.0
    %1586 = vmatprep.subr.mxu0 0.0
    %1587 = vmatpush1.msra.mxu0 0.0
    %1588 = vmatprep.subr.mxu0 0.0
    %1589 = vmatpush1.msra.mxu0 0.0
    %1590 = vmatprep.subr.mxu0 0.0
    %1591 = vmatpush1.msra.mxu0 0.0
    %1592 = vmatprep.subr.mxu0 0.0
    %1593 = vmatpush1.msra.mxu0 0.0
    %1594 = vmatprep.subr.mxu0 0.0
    %1595 = vmatpush1.msra.mxu0 0.0
    %1596 = vmatprep.subr.mxu0 0.0
    %1597 = vmatpush1.msra.mxu0 0.0
    %1598 = vmatprep.subr.mxu0 0.0
    %1599 = vmatpush1.msra.mxu0 0.0
    %1600 = vmatprep.subr.mxu0 0.0
    %1601 = vmatpush1.msra.mxu0 0.0
    %1602 = vmatprep.subr.mxu0 0.0
    %1603 = vmatpush1.msra.mxu0 0.0
    %1604 = vmatprep.subr.mxu0 0.0
    %1605 = vmatpush1.msra.mxu0 0.0
    %1606 = vmatprep.subr.mxu0 0.0
    %1607 = vmatpush1.msra.mxu0 0.0
    %1608 = vmatprep.mubr.f32.mxu0 0.0
    %1609 = vmatmul.mubr.f32.gmra.mrb[0].mxu0 %v1540
    %v1610 = vpop.f32.mrb[0].mxu0
    %v1611 = vadd.f32 0.0, %v1610
    %v1612 = vpop.f32.mrb[0].mxu0
    %1613 = vdwg.mxu0
    %1614 = vrot.lane.b32.xlu0 %v1114, 104
    %v1615 = vpop.permute.xlu0 %1614
    %1616 = vrot.lane.b32.xlu0 %v1114, 72
    %v1617 = vpop.permute.xlu0 %1616
    %v1618 = vsel %vm426, %v1615, 0
    %v1620 = vsel %vm426, %v1617, 0
    %1622 = vmatprep.subr.mxu0 0.0
    %1623 = vmatpush1.xpose.msra.mxu0 %v1620
    %1624 = vmatprep.subr.mxu0 0.0
    %1625 = vmatpush1.xpose.msra.mxu0 0.0
    %1626 = vmatprep.subr.mxu0 0.0
    %1627 = vmatpush1.xpose.msra.mxu0 0.0
    %1628 = vmatprep.subr.mxu0 0.0
    %1629 = vmatpush1.xpose.msra.mxu0 0.0
    %1630 = vmatprep.subr.mxu0 0.0
    %1631 = vmatpush1.xpose.msra.mxu0 0.0
    %1632 = vmatprep.subr.mxu0 0.0
    %1633 = vmatpush1.xpose.msra.mxu0 0.0
    %1634 = vmatprep.subr.mxu0 0.0
    %1635 = vmatpush1.xpose.msra.mxu0 0.0
    %1636 = vmatprep.subr.mxu0 0.0
    %1637 = vmatpush1.xpose.msra.mxu0 0.0
    %1638 = vmatprep.subr.mxu0 0.0
    %1639 = vmatpush1.xpose.msra.mxu0 0.0
    %1640 = vmatprep.subr.mxu0 0.0
    %1641 = vmatpush1.xpose.msra.mxu0 0.0
    %1642 = vmatprep.subr.mxu0 0.0
    %1643 = vmatpush1.xpose.msra.mxu0 0.0
    %1644 = vmatprep.subr.mxu0 0.0
    %1645 = vmatpush1.xpose.msra.mxu0 0.0
    %1646 = vmatprep.subr.mxu0 0.0
    %1647 = vmatpush1.xpose.msra.mxu0 0.0
    %1648 = vmatprep.subr.mxu0 0.0
    %1649 = vmatpush1.xpose.msra.mxu0 0.0
    %1650 = vmatprep.subr.mxu0 0.0
    %1651 = vmatpush1.xpose.msra.mxu0 0.0
    %1652 = vmatprep.subr.mxu0 0.0
    %1653 = vmatpush1.xpose.msra.mxu0 0.0
    %1654 = vmatprep.subr.mxu0 0.0
    %1655 = vmatpush1.xpose.msra.mxu0 0.0
    %1656 = vmatprep.subr.mxu0 0.0
    %1657 = vmatpush1.xpose.msra.mxu0 0.0
    %1658 = vmatprep.subr.mxu0 0.0
    %1659 = vmatpush1.xpose.msra.mxu0 0.0
    %1660 = vmatprep.subr.mxu0 0.0
    %1661 = vmatpush1.xpose.msra.mxu0 0.0
    %1662 = vmatprep.subr.mxu0 0.0
    %1663 = vmatpush1.xpose.msra.mxu0 0.0
    %1664 = vmatprep.subr.mxu0 0.0
    %1665 = vmatpush1.xpose.msra.mxu0 0.0
    %1666 = vmatprep.subr.mxu0 0.0
    %1667 = vmatpush1.xpose.msra.mxu0 0.0
    %1668 = vmatprep.subr.mxu0 0.0
    %1669 = vmatpush1.xpose.msra.mxu0 0.0
    %1670 = vmatprep.subr.mxu0 0.0
    %1671 = vmatpush1.xpose.msra.mxu0 0.0
    %1672 = vmatprep.subr.mxu0 0.0
    %1673 = vmatpush1.xpose.msra.mxu0 0.0
    %1674 = vmatprep.subr.mxu0 0.0
    %1675 = vmatpush1.xpose.msra.mxu0 0.0
    %1676 = vmatprep.subr.mxu0 0.0
    %1677 = vmatpush1.xpose.msra.mxu0 0.0
    %1678 = vmatprep.subr.mxu0 0.0
    %1679 = vmatpush1.xpose.msra.mxu0 0.0
    %1680 = vmatprep.subr.mxu0 0.0
    %1681 = vmatpush1.xpose.msra.mxu0 0.0
    %1682 = vmatprep.subr.mxu0 0.0
    %1683 = vmatpush1.xpose.msra.mxu0 0.0
    %1684 = vmatprep.subr.mxu0 0.0
    %1685 = vmatpush1.xpose.msra.mxu0 0.0
    %1686 = vmatprep.mubr.f32.mxu0 0.0
    %1687 = vmatmul.mubr.f32.gmra.mrb[0].mxu0 %v1618
    %v1688 = vpop.f32.mrb[0].mxu0
    %v1689 = vadd.f32 0.0, %v1688
    %v1690 = vpop.f32.mrb[0].mxu0
    %1691 = vdwg.mxu0
    %v1692 = vmul.f32 %v1689, 0.35355338
    %v1693 = vsel %vm502, %v1692, -inf
    %1694 = vmax.xlane.f32.xlu0 %v1693
    %v1695 = vpop.xlane.xlu0 %1694
    %v1696 = vsub.f32 %v1692, %v1695
    %v1697 = vmul.f32 %v1696, 1.442695
    %v1698 = vpow.pop %v1697
    %v1699 = vsel %vm502, %v1698, 0.0
    %1700 = vadd.xlane.f32.xlu0 %v1699
    %v1701 = vpop.xlane.xlu0 %1700
    %v1702 = vrcp.pop %v1701
    %v1703 = vmul.f32 %v1698, %v1702
    %1704 = vrot.lane.b32.xlu0 %v1114, 40
    %v1705 = vpop.permute.xlu0 %1704
    %v1707 = vsel %vm516, %v1703, 0
    %v1709 = vsel %vm280, %v1705, 0
    %1711 = vmatprep.subr.mxu0 0.0
    %1712 = vmatpush1.msra.mxu0 %v1709
    %1713 = vmatprep.subr.mxu0 0.0
    %1714 = vmatpush1.msra.mxu0 0.0
    %1715 = vmatprep.subr.mxu0 0.0
    %1716 = vmatpush1.msra.mxu0 0.0
    %1717 = vmatprep.subr.mxu0 0.0
    %1718 = vmatpush1.msra.mxu0 0.0
    %1719 = vmatprep.subr.mxu0 0.0
    %1720 = vmatpush1.msra.mxu0 0.0
    %1721 = vmatprep.subr.mxu0 0.0
    %1722 = vmatpush1.msra.mxu0 0.0
    %1723 = vmatprep.subr.mxu0 0.0
    %1724 = vmatpush1.msra.mxu0 0.0
    %1725 = vmatprep.subr.mxu0 0.0
    %1726 = vmatpush1.msra.mxu0 0.0
    %1727 = vmatprep.subr.mxu0 0.0
    %1728 = vmatpush1.msra.mxu0 0.0
    %1729 = vmatprep.subr.mxu0 0.0
    %1730 = vmatpush1.msra.mxu0 0.0
    %1731 = vmatprep.subr.mxu0 0.0
    %1732 = vmatpush1.msra.mxu0 0.0
    %1733 = vmatprep.subr.mxu0 0.0
    %1734 = vmatpush1.msra.mxu0 0.0
    %1735 = vmatprep.subr.mxu0 0.0
    %1736 = vmatpush1.msra.mxu0 0.0
    %1737 = vmatprep.subr.mxu0 0.0
    %1738 = vmatpush1.msra.mxu0 0.0
    %1739 = vmatprep.subr.mxu0 0.0
    %1740 = vmatpush1.msra.mxu0 0.0
    %1741 = vmatprep.subr.mxu0 0.0
    %1742 = vmatpush1.msra.mxu0 0.0
    %1743 = vmatprep.subr.mxu0 0.0
    %1744 = vmatpush1.msra.mxu0 0.0
    %1745 = vmatprep.subr.mxu0 0.0
    %1746 = vmatpush1.msra.mxu0 0.0
    %1747 = vmatprep.subr.mxu0 0.0
    %1748 = vmatpush1.msra.mxu0 0.0
    %1749 = vmatprep.subr.mxu0 0.0
    %1750 = vmatpush1.msra.mxu0 0.0
    %1751 = vmatprep.subr.mxu0 0.0
    %1752 = vmatpush1.msra.mxu0 0.0
    %1753 = vmatprep.subr.mxu0 0.0
    %1754 = vmatpush1.msra.mxu0 0.0
    %1755 = vmatprep.subr.mxu0 0.0
    %1756 = vmatpush1.msra.mxu0 0.0
    %1757 = vmatprep.subr.mxu0 0.0
    %1758 = vmatpush1.msra.mxu0 0.0
    %1759 = vmatprep.subr.mxu0 0.0
    %1760 = vmatpush1.msra.mxu0 0.0
    %1761 = vmatprep.subr.mxu0 0.0
    %1762 = vmatpush1.msra.mxu0 0.0
    %1763 = vmatprep.subr.mxu0 0.0
    %1764 = vmatpush1.msra.mxu0 0.0
    %1765 = vmatprep.subr.mxu0 0.0
    %1766 = vmatpush1.msra.mxu0 0.0
    %1767 = vmatprep.subr.mxu0 0.0
    %1768 = vmatpush1.msra.mxu0 0.0
    %1769 = vmatprep.subr.mxu0 0.0
    %1770 = vmatpush1.msra.mxu0 0.0
    %1771 = vmatprep.subr.mxu0 0.0
    %1772 = vmatpush1.msra.mxu0 0.0
    %1773 = vmatprep.subr.mxu0 0.0
    %1774 = vmatpush1.msra.mxu0 0.0
    %1775 = vmatprep.mubr.f32.mxu0 0.0
    %1776 = vmatmul.mubr.f32.gmra.mrb[0].mxu0 %v1707
    %v1777 = vpop.f32.mrb[0].mxu0
    %v1778 = vadd.f32 0.0, %v1777
    %v1779 = vpop.f32.mrb[0].mxu0
    %1780 = vdwg.mxu0
    %1782 = vrot.lane.b32.xlu0 %v1444, 8
    %v1783 = vpop.permute.xlu0 %1782
    %1786 = vrot.lane.b32.xlu0 %v1611, 16
    %v1787 = vpop.permute.xlu0 %1786
    %1790 = vrot.lane.b32.xlu0 %v1778, 24
    %v1791 = vpop.permute.xlu0 %1790
    %v1793 = vsel %vm426, %v1277, %v1783
    %v1794 = vsel %vm1106, %v1793, %v1787
    %v1795 = vsel %vm1108, %v1794, %v1791
    %v1797 = vrot.slane %v1795, 3
    %v1799 = vsel %vm280, %v1109, %v1797
    %v1800 = vld [vmem:[%s19] sm:$0xff]
    %v1801 = vld [vmem:[%s19 + $0x8] sm:$0xff]
    %v1802 = vld [vmem:[%s19 + $0x10] sm:$0xff]
    %v1803 = vld [vmem:[%s19 + $0x18] sm:$0xff]
    %v1805 = vsel %vm286, %v1799, 0
    %v1807 = vsel %vm286, %v1797, 0
    %1809 = vmatprep.subr.mxu0 0.0
    %1810 = vmatpush1.msra.mxu0 %v1800
    %1811 = vmatprep.subr.mxu0 0.0
    %1812 = vmatpush1.msra.mxu0 %v1801
    %1813 = vmatprep.subr.mxu0 0.0
    %1814 = vmatpush1.msra.mxu0 %v1802
    %1815 = vmatprep.subr.mxu0 0.0
    %1816 = vmatpush1.msra.mxu0 %v1803
    %1817 = vmatprep.subr.mxu0 0.0
    %1818 = vmatpush1.msra.mxu0 0.0
    %1819 = vmatprep.subr.mxu0 0.0
    %1820 = vmatpush1.msra.mxu0 0.0
    %1821 = vmatprep.subr.mxu0 0.0
    %1822 = vmatpush1.msra.mxu0 0.0
    %1823 = vmatprep.subr.mxu0 0.0
    %1824 = vmatpush1.msra.mxu0 0.0
    %1825 = vmatprep.subr.mxu0 0.0
    %1826 = vmatpush1.msra.mxu0 0.0
    %1827 = vmatprep.subr.mxu0 0.0
    %1828 = vmatpush1.msra.mxu0 0.0
    %1829 = vmatprep.subr.mxu0 0.0
    %1830 = vmatpush1.msra.mxu0 0.0
    %1831 = vmatprep.subr.mxu0 0.0
    %1832 = vmatpush1.msra.mxu0 0.0
    %1833 = vmatprep.subr.mxu0 0.0
    %1834 = vmatpush1.msra.mxu0 0.0
    %1835 = vmatprep.subr.mxu0 0.0
    %1836 = vmatpush1.msra.mxu0 0.0
    %1837 = vmatprep.subr.mxu0 0.0
    %1838 = vmatpush1.msra.mxu0 0.0
    %1839 = vmatprep.subr.mxu0 0.0
    %1840 = vmatpush1.msra.mxu0 0.0
    %1841 = vmatprep.subr.mxu0 0.0
    %1842 = vmatpush1.msra.mxu0 0.0
    %1843 = vmatprep.subr.mxu0 0.0
    %1844 = vmatpush1.msra.mxu0 0.0
    %1845 = vmatprep.subr.mxu0 0.0
    %1846 = vmatpush1.msra.mxu0 0.0
    %1847 = vmatprep.subr.mxu0 0.0
    %1848 = vmatpush1.msra.mxu0 0.0
    %1849 = vmatprep.subr.mxu0 0.0
    %1850 = vmatpush1.msra.mxu0 0.0
    %1851 = vmatprep.subr.mxu0 0.0
    %1852 = vmatpush1.msra.mxu0 0.0
    %1853 = vmatprep.subr.mxu0 0.0
    %1854 = vmatpush1.msra.mxu0 0.0
    %1855 = vmatprep.subr.mxu0 0.0
    %1856 = vmatpush1.msra.mxu0 0.0
    %1857 = vmatprep.subr.mxu0 0.0
    %1858 = vmatpush1.msra.mxu0 0.0
    %1859 = vmatprep.subr.mxu0 0.0
    %1860 = vmatpush1.msra.mxu0 0.0
    %1861 = vmatprep.subr.mxu0 0.0
    %1862 = vmatpush1.msra.mxu0 0.0
    %1863 = vmatprep.subr.mxu0 0.0
    %1864 = vmatpush1.msra.mxu0 0.0
    %1865 = vmatprep.subr.mxu0 0.0
    %1866 = vmatpush1.msra.mxu0 0.0
    %1867 = vmatprep.subr.mxu0 0.0
    %1868 = vmatpush1.msra.mxu0 0.0
    %1869 = vmatprep.subr.mxu0 0.0
    %1870 = vmatpush1.msra.mxu0 0.0
    %1871 = vmatprep.subr.mxu0 0.0
    %1872 = vmatpush1.msra.mxu0 0.0
    %1873 = vmatprep.mubr.f32.mxu0 0.0
    %1874 = vmatmul.mubr.f32.gmra.mrb[0].mxu0 %v1805
    %v1875 = vpop.f32.mrb[0].mxu0
    %v1876 = vadd.f32 0.0, %v1875
    %v1877 = vpop.f32.mrb[0].mxu0
    %1878 = vmatprep.mubr.f32.mxu0 0.0
    %1879 = vmatmul.mubr.f32.gmra.mrb[0].mxu0 %v1807
    %v1880 = vpop.f32.mrb[0].mxu0
    %v1881 = vadd.f32 0.0, %v1880
    %v1882 = vpop.f32.mrb[0].mxu0
    %1883 = vdwg.mxu0
    %v1884 = vadd.f32 %v283, %v1876
    %v1885 = vadd.f32 %v276, %v1881
    %v1886 = vld [vmem:[%s21] sm:$0x1]
    %v1888 = vlaneseq
    %v1889 = vshrl.u32 %v1888, 7
    %v1890 = vsub.s32 0, %v1889
    %v1891 = vrot.slane %v1886, %v1890
    %v1893 = vadd.f32 %v1884, %v1891
    %v1894 = vadd.f32 %v1885, %v1891
    %v1895 = vld [vmem:[%s23] sm:$0x1]
    %v1896 = vld [vmem:[%s25] sm:$0x1]
    %v1897 = vsel %vm286, %v1893, 0.0
    %1898 = vadd.xlane.f32.xlu0 %v1897
    %v1899 = vpop.xlane.xlu0 %1898
    %v1900 = vsel %vm290, %v1894, 0.0
    %1901 = vadd.xlane.f32.xlu0 %v1900
    %v1902 = vpop.xlane.xlu0 %1901
    %v1903 = vmul.f32 %v1899, %v294
    %v1904 = vmul.f32 %v1902, %v294
    %v1905 = vsub.f32 %v1893, %v1903
    %v1906 = vsub.f32 %v1894, %v1904
    %v1907 = vmul.f32 %v1905, %v1905
    %v1908 = vmul.f32 %v1906, %v1906
    %v1909 = vsel %vm286, %v1907, 0.0
    %1910 = vadd.xlane.f32.xlu0 %v1909
    %v1911 = vpop.xlane.xlu0 %1910
    %v1912 = vsel %vm290, %v1908, 0.0
    %1913 = vadd.xlane.f32.xlu0 %v1912
    %v1914 = vpop.xlane.xlu0 %1913
    %v1915 = vmul.f32 %v1911, %v294
    %v1916 = vmul.f32 %v1914, %v294
    %v1917 = vadd.f32 %v1915, 1e-12
    %v1918 = vadd.f32 %v1916, 1e-12
    %v1919 = vrsqrt.pop %v1917
    %v1920 = vrsqrt.pop %v1918
    %v1921 = vmul.f32 %v1905, %v1919
    %v1922 = vmul.f32 %v1906, %v1920
    %v1924 = vlaneseq
    %v1925 = vshrl.u32 %v1924, 7
    %v1926 = vsub.s32 0, %v1925
    %v1927 = vrot.slane %v1895, %v1926
    %v1929 = vmul.f32 %v1921, %v1927
    %v1930 = vmul.f32 %v1922, %v1927
    %v1932 = vlaneseq
    %v1933 = vshrl.u32 %v1932, 7
    %v1934 = vsub.s32 0, %v1933
    %v1935 = vrot.slane %v1896, %v1934
    %v1937 = vadd.f32 %v1929, %v1935
    %v1938 = vadd.f32 %v1930, %v1935
    %v1939 = vld [vmem:[%s27] sm:$0xff]
    %v1940 = vld [vmem:[%s27 + $0x8] sm:$0xff]
    %v1941 = vld [vmem:[%s27 + $0x10] sm:$0xff]
    %v1942 = vld [vmem:[%s27 + $0x18] sm:$0xff]
    %v1943 = vld [vmem:[%s29] sm:$0x1]
    %v1945 = vlaneseq
    %v1946 = vshrl.u32 %v1945, 7
    %v1947 = vsub.s32 0, %v1946
    %v1948 = vrot.slane %v1943, %v1947
    %v1951 = vsel %vm286, %v1937, 0
    %v1954 = vsel %vm286, %v1938, 0
    %1956 = vmatprep.subr.mxu0 0.0
    %1957 = vmatpush1.msra.mxu0 %v1939
    %1958 = vmatprep.subr.mxu0 0.0
    %1959 = vmatpush1.msra.mxu0 %v1940
    %1960 = vmatprep.subr.mxu0 0.0
    %1961 = vmatpush1.msra.mxu0 %v1941
    %1962 = vmatprep.subr.mxu0 0.0
    %1963 = vmatpush1.msra.mxu0 %v1942
    %1964 = vmatprep.subr.mxu0 0.0
    %1965 = vmatpush1.msra.mxu0 0.0
    %1966 = vmatprep.subr.mxu0 0.0
    %1967 = vmatpush1.msra.mxu0 0.0
    %1968 = vmatprep.subr.mxu0 0.0
    %1969 = vmatpush1.msra.mxu0 0.0
    %1970 = vmatprep.subr.mxu0 0.0
    %1971 = vmatpush1.msra.mxu0 0.0
    %1972 = vmatprep.subr.mxu0 0.0
    %1973 = vmatpush1.msra.mxu0 0.0
    %1974 = vmatprep.subr.mxu0 0.0
    %1975 = vmatpush1.msra.mxu0 0.0
    %1976 = vmatprep.subr.mxu0 0.0
    %1977 = vmatpush1.msra.mxu0 0.0
    %1978 = vmatprep.subr.mxu0 0.0
    %1979 = vmatpush1.msra.mxu0 0.0
    %1980 = vmatprep.subr.mxu0 0.0
    %1981 = vmatpush1.msra.mxu0 0.0
    %1982 = vmatprep.subr.mxu0 0.0
    %1983 = vmatpush1.msra.mxu0 0.0
    %1984 = vmatprep.subr.mxu0 0.0
    %1985 = vmatpush1.msra.mxu0 0.0
    %1986 = vmatprep.subr.mxu0 0.0
    %1987 = vmatpush1.msra.mxu0 0.0
    %1988 = vmatprep.subr.mxu0 0.0
    %1989 = vmatpush1.msra.mxu0 0.0
    %1990 = vmatprep.subr.mxu0 0.0
    %1991 = vmatpush1.msra.mxu0 0.0
    %1992 = vmatprep.subr.mxu0 0.0
    %1993 = vmatpush1.msra.mxu0 0.0
    %1994 = vmatprep.subr.mxu0 0.0
    %1995 = vmatpush1.msra.mxu0 0.0
    %1996 = vmatprep.subr.mxu0 0.0
    %1997 = vmatpush1.msra.mxu0 0.0
    %1998 = vmatprep.subr.mxu0 0.0
    %1999 = vmatpush1.msra.mxu0 0.0
    %2000 = vmatprep.subr.mxu0 0.0
    %2001 = vmatpush1.msra.mxu0 0.0
    %2002 = vmatprep.subr.mxu0 0.0
    %2003 = vmatpush1.msra.mxu0 0.0
    %2004 = vmatprep.subr.mxu0 0.0
    %2005 = vmatpush1.msra.mxu0 0.0
    %2006 = vmatprep.subr.mxu0 0.0
    %2007 = vmatpush1.msra.mxu0 0.0
    %2008 = vmatprep.subr.mxu0 0.0
    %2009 = vmatpush1.msra.mxu0 0.0
    %2010 = vmatprep.subr.mxu0 0.0
    %2011 = vmatpush1.msra.mxu0 0.0
    %2012 = vmatprep.subr.mxu0 0.0
    %2013 = vmatpush1.msra.mxu0 0.0
    %2014 = vmatprep.subr.mxu0 0.0
    %2015 = vmatpush1.msra.mxu0 0.0
    %2016 = vmatprep.subr.mxu0 0.0
    %2017 = vmatpush1.msra.mxu0 0.0
    %2018 = vmatprep.subr.mxu0 0.0
    %2019 = vmatpush1.msra.mxu0 0.0
    %2020 = vmatprep.mubr.f32.mxu0 0.0
    %2021 = vmatmul.mubr.f32.gmra.mrb[0].mxu0 %v1951
    %v2022 = vpop.f32.mrb[0].mxu0
    %v2023 = vadd.f32 %v1948, %v2022
    %v2024 = vpop.f32.mrb[0].mxu0
    %2025 = vmatprep.mubr.f32.mxu0 0.0
    %2026 = vmatmul.mubr.f32.gmra.mrb[0].mxu0 %v1954
    %v2027 = vpop.f32.mrb[0].mxu0
    %v2028 = vadd.f32 %v1948, %v2027
    %v2029 = vpop.f32.mrb[0].mxu0
    %2030 = vdwg.mxu0
    %v2031 = vmul.f32 %v2023, 0.5
    %v2032 = vmul.f32 %v2028, 0.5
    %v2033 = vmul.f32 %v2023, 0.70710677
    %v2034 = vmul.f32 %v2028, 0.70710677
    %v2035 = verf.f32.pop %v2033
    %v2036 = verf.f32.pop %v2034
    %v2037 = vadd.f32 %v2035, 1.0
    %v2038 = vadd.f32 %v2036, 1.0
    %v2039 = vmul.f32 %v2031, %v2037
    %v2040 = vmul.f32 %v2032, %v2038
    %v2041 = vld [vmem:[%s31] sm:$0xff]
    %v2042 = vld [vmem:[%s31 + $0x8] sm:$0xff]
    %v2043 = vld [vmem:[%s31 + $0x10] sm:$0xff]
    %v2044 = vld [vmem:[%s31 + $0x18] sm:$0xff]
    %v2045 = vld [vmem:[%s31 + $0x20] sm:$0xff]
    %v2046 = vld [vmem:[%s31 + $0x28] sm:$0xff]
    %v2047 = vld [vmem:[%s31 + $0x30] sm:$0xff]
    %v2048 = vld [vmem:[%s31 + $0x38] sm:$0xff]
    %vm2049 = vcmask 523264
    %v2051 = vsel %vm2049, %v2039, 0
    %v2054 = vsel %vm2049, %v2040, 0
    %2056 = vmatprep.subr.mxu0 0.0
    %2057 = vmatpush1.msra.mxu0 %v2041
    %2058 = vmatprep.subr.mxu0 0.0
    %2059 = vmatpush1.msra.mxu0 %v2042
    %2060 = vmatprep.subr.mxu0 0.0
    %2061 = vmatpush1.msra.mxu0 %v2043
    %2062 = vmatprep.subr.mxu0 0.0
    %2063 = vmatpush1.msra.mxu0 %v2044
    %2064 = vmatprep.subr.mxu0 0.0
    %2065 = vmatpush1.msra.mxu0 %v2045
    %2066 = vmatprep.subr.mxu0 0.0
    %2067 = vmatpush1.msra.mxu0 %v2046
    %2068 = vmatprep.subr.mxu0 0.0
    %2069 = vmatpush1.msra.mxu0 %v2047
    %2070 = vmatprep.subr.mxu0 0.0
    %2071 = vmatpush1.msra.mxu0 %v2048
    %2072 = vmatprep.subr.mxu0 0.0
    %2073 = vmatpush1.msra.mxu0 0.0
    %2074 = vmatprep.subr.mxu0 0.0
    %2075 = vmatpush1.msra.mxu0 0.0
    %2076 = vmatprep.subr.mxu0 0.0
    %2077 = vmatpush1.msra.mxu0 0.0
    %2078 = vmatprep.subr.mxu0 0.0
    %2079 = vmatpush1.msra.mxu0 0.0
    %2080 = vmatprep.subr.mxu0 0.0
    %2081 = vmatpush1.msra.mxu0 0.0
    %2082 = vmatprep.subr.mxu0 0.0
    %2083 = vmatpush1.msra.mxu0 0.0
    %2084 = vmatprep.subr.mxu0 0.0
    %2085 = vmatpush1.msra.mxu0 0.0
    %2086 = vmatprep.subr.mxu0 0.0
    %2087 = vmatpush1.msra.mxu0 0.0
    %2088 = vmatprep.subr.mxu0 0.0
    %2089 = vmatpush1.msra.mxu0 0.0
    %2090 = vmatprep.subr.mxu0 0.0
    %2091 = vmatpush1.msra.mxu0 0.0
    %2092 = vmatprep.subr.mxu0 0.0
    %2093 = vmatpush1.msra.mxu0 0.0
    %2094 = vmatprep.subr.mxu0 0.0
    %2095 = vmatpush1.msra.mxu0 0.0
    %2096 = vmatprep.subr.mxu0 0.0
    %2097 = vmatpush1.msra.mxu0 0.0
    %2098 = vmatprep.subr.mxu0 0.0
    %2099 = vmatpush1.msra.mxu0 0.0
    %2100 = vmatprep.subr.mxu0 0.0
    %2101 = vmatpush1.msra.mxu0 0.0
    %2102 = vmatprep.subr.mxu0 0.0
    %2103 = vmatpush1.msra.mxu0 0.0
    %2104 = vmatprep.subr.mxu0 0.0
    %2105 = vmatpush1.msra.mxu0 0.0
    %2106 = vmatprep.subr.mxu0 0.0
    %2107 = vmatpush1.msra.mxu0 0.0
    %2108 = vmatprep.subr.mxu0 0.0
    %2109 = vmatpush1.msra.mxu0 0.0
    %2110 = vmatprep.subr.mxu0 0.0
    %2111 = vmatpush1.msra.mxu0 0.0
    %2112 = vmatprep.subr.mxu0 0.0
    %2113 = vmatpush1.msra.mxu0 0.0
    %2114 = vmatprep.subr.mxu0 0.0
    %2115 = vmatpush1.msra.mxu0 0.0
    %2116 = vmatprep.subr.mxu0 0.0
    %2117 = vmatpush1.msra.mxu0 0.0
    %2118 = vmatprep.subr.mxu0 0.0
    %2119 = vmatpush1.msra.mxu0 0.0
    %2120 = vmatprep.mubr.f32.mxu0 0.0
    %2121 = vmatmul.mubr.f32.gmra.mrb[0].mxu0 %v2051
    %v2122 = vpop.f32.mrb[0].mxu0
    %v2123 = vadd.f32 0.0, %v2122
    %v2124 = vpop.f32.mrb[0].mxu0
    %2125 = vmatprep.mubr.f32.mxu0 0.0
    %2126 = vmatmul.mubr.f32.gmra.mrb[0].mxu0 %v2054
    %v2127 = vpop.f32.mrb[0].mxu0
    %v2128 = vadd.f32 0.0, %v2127
    %v2129 = vpop.f32.mrb[0].mxu0
    %2130 = vdwg.mxu0
    %v2131 = vadd.f32 %v1893, %v2123
    %v2132 = vadd.f32 %v1894, %v2128
    %v2133 = vld [vmem:[%s33] sm:$0x1]
    %v2135 = vlaneseq
    %v2136 = vshrl.u32 %v2135, 7
    %v2137 = vsub.s32 0, %v2136
    %v2138 = vrot.slane %v2133, %v2137
    %v2140 = vadd.f32 %v2131, %v2138
    %v2141 = vadd.f32 %v2132, %v2138
    %v2142 = vld [vmem:[%s35] sm:$0x1]
    %v2143 = vld [vmem:[%s37] sm:$0x1]
    %v2144 = vsel %vm286, %v2140, 0.0
    %2145 = vadd.xlane.f32.xlu0 %v2144
    %v2146 = vpop.xlane.xlu0 %2145
    %v2147 = vsel %vm290, %v2141, 0.0
    %2148 = vadd.xlane.f32.xlu0 %v2147
    %v2149 = vpop.xlane.xlu0 %2148
    %v2150 = vmul.f32 %v2146, %v294
    %v2151 = vmul.f32 %v2149, %v294
    %v2152 = vsub.f32 %v2140, %v2150
    %v2153 = vsub.f32 %v2141, %v2151
    %v2154 = vmul.f32 %v2152, %v2152
    %v2155 = vmul.f32 %v2153, %v2153
    %v2156 = vsel %vm286, %v2154, 0.0
    %2157 = vadd.xlane.f32.xlu0 %v2156
    %v2158 = vpop.xlane.xlu0 %2157
    %v2159 = vsel %vm290, %v2155, 0.0
    %2160 = vadd.xlane.f32.xlu0 %v2159
    %v2161 = vpop.xlane.xlu0 %2160
    %v2162 = vmul.f32 %v2158, %v294
    %v2163 = vmul.f32 %v2161, %v294
    %v2164 = vadd.f32 %v2162, 1e-12
    %v2165 = vadd.f32 %v2163, 1e-12
    %v2166 = vrsqrt.pop %v2164
    %v2167 = vrsqrt.pop %v2165
    %v2168 = vmul.f32 %v2152, %v2166
    %v2169 = vmul.f32 %v2153, %v2167
    %v2171 = vlaneseq
    %v2172 = vshrl.u32 %v2171, 7
    %v2173 = vsub.s32 0, %v2172
    %v2174 = vrot.slane %v2142, %v2173
    %v2176 = vmul.f32 %v2168, %v2174
    %v2177 = vmul.f32 %v2169, %v2174
    %v2179 = vlaneseq
    %v2180 = vshrl.u32 %v2179, 7
    %v2181 = vsub.s32 0, %v2180
    %v2182 = vrot.slane %v2143, %v2181
    %v2184 = vadd.f32 %v2176, %v2182
    %v2185 = vadd.f32 %v2177, %v2182
    %v2186 = vld [vmem:[%s39] sm:$0xff]
    %v2187 = vld [vmem:[%s39 + $0x8] sm:$0xff]
    %v2188 = vld [vmem:[%s39 + $0x10] sm:$0xff]
    %v2189 = vld [vmem:[%s39 + $0x18] sm:$0xff]
    %v2190 = vld [vmem:[%s41] sm:$0x1]
    %v2192 = vlaneseq
    %v2193 = vshrl.u32 %v2192, 7
    %v2194 = vsub.s32 0, %v2193
    %v2195 = vrot.slane %v2190, %v2194
    %v2198 = vsel %vm286, %v2184, 0
    %v2201 = vsel %vm286, %v2185, 0
    %2203 = vmatprep.subr.mxu0 0.0
    %2204 = vmatpush1.msra.mxu0 %v2186
    %2205 = vmatprep.subr.mxu0 0.0
    %2206 = vmatpush1.msra.mxu0 %v2187
    %2207 = vmatprep.subr.mxu0 0.0
    %2208 = vmatpush1.msra.mxu0 %v2188
    %2209 = vmatprep.subr.mxu0 0.0
    %2210 = vmatpush1.msra.mxu0 %v2189
    %2211 = vmatprep.subr.mxu0 0.0
    %2212 = vmatpush1.msra.mxu0 0.0
    %2213 = vmatprep.subr.mxu0 0.0
    %2214 = vmatpush1.msra.mxu0 0.0
    %2215 = vmatprep.subr.mxu0 0.0
    %2216 = vmatpush1.msra.mxu0 0.0
    %2217 = vmatprep.subr.mxu0 0.0
    %2218 = vmatpush1.msra.mxu0 0.0
    %2219 = vmatprep.subr.mxu0 0.0
    %2220 = vmatpush1.msra.mxu0 0.0
    %2221 = vmatprep.subr.mxu0 0.0
    %2222 = vmatpush1.msra.mxu0 0.0
    %2223 = vmatprep.subr.mxu0 0.0
    %2224 = vmatpush1.msra.mxu0 0.0
    %2225 = vmatprep.subr.mxu0 0.0
    %2226 = vmatpush1.msra.mxu0 0.0
    %2227 = vmatprep.subr.mxu0 0.0
    %2228 = vmatpush1.msra.mxu0 0.0
    %2229 = vmatprep.subr.mxu0 0.0
    %2230 = vmatpush1.msra.mxu0 0.0
    %2231 = vmatprep.subr.mxu0 0.0
    %2232 = vmatpush1.msra.mxu0 0.0
    %2233 = vmatprep.subr.mxu0 0.0
    %2234 = vmatpush1.msra.mxu0 0.0
    %2235 = vmatprep.subr.mxu0 0.0
    %2236 = vmatpush1.msra.mxu0 0.0
    %2237 = vmatprep.subr.mxu0 0.0
    %2238 = vmatpush1.msra.mxu0 0.0
    %2239 = vmatprep.subr.mxu0 0.0
    %2240 = vmatpush1.msra.mxu0 0.0
    %2241 = vmatprep.subr.mxu0 0.0
    %2242 = vmatpush1.msra.mxu0 0.0
    %2243 = vmatprep.subr.mxu0 0.0
    %2244 = vmatpush1.msra.mxu0 0.0
    %2245 = vmatprep.subr.mxu0 0.0
    %2246 = vmatpush1.msra.mxu0 0.0
    %2247 = vmatprep.subr.mxu0 0.0
    %2248 = vmatpush1.msra.mxu0 0.0
    %2249 = vmatprep.subr.mxu0 0.0
    %2250 = vmatpush1.msra.mxu0 0.0
    %2251 = vmatprep.subr.mxu0 0.0
    %2252 = vmatpush1.msra.mxu0 0.0
    %2253 = vmatprep.subr.mxu0 0.0
    %2254 = vmatpush1.msra.mxu0 0.0
    %2255 = vmatprep.subr.mxu0 0.0
    %2256 = vmatpush1.msra.mxu0 0.0
    %2257 = vmatprep.subr.mxu0 0.0
    %2258 = vmatpush1.msra.mxu0 0.0
    %2259 = vmatprep.subr.mxu0 0.0
    %2260 = vmatpush1.msra.mxu0 0.0
    %2261 = vmatprep.subr.mxu0 0.0
    %2262 = vmatpush1.msra.mxu0 0.0
    %2263 = vmatprep.subr.mxu0 0.0
    %2264 = vmatpush1.msra.mxu0 0.0
    %2265 = vmatprep.subr.mxu0 0.0
    %2266 = vmatpush1.msra.mxu0 0.0
    %2267 = vmatprep.mubr.f32.mxu0 0.0
    %2268 = vmatmul.mubr.f32.gmra.mrb[0].mxu0 %v2198
    %v2269 = vpop.f32.mrb[0].mxu0
    %v2270 = vadd.f32 %v2195, %v2269
    %v2271 = vpop.f32.mrb[0].mxu0
    %2272 = vmatprep.mubr.f32.mxu0 0.0
    %2273 = vmatmul.mubr.f32.gmra.mrb[0].mxu0 %v2201
    %v2274 = vpop.f32.mrb[0].mxu0
    %v2275 = vadd.f32 %v2195, %v2274
    %v2276 = vpop.f32.mrb[0].mxu0
    %2277 = vdwg.mxu0
    %2279 = vrot.lane.b32.xlu0 %v2270, 96
    %v2280 = vpop.permute.xlu0 %2279
    %v2281 = vsel %vm426, %v2270, 0
    %v2283 = vsel %vm426, %v2280, 0
    %2285 = vmatprep.subr.mxu0 0.0
    %2286 = vmatpush1.xpose.msra.mxu0 %v2283
    %2287 = vmatprep.subr.mxu0 0.0
    %2288 = vmatpush1.xpose.msra.mxu0 0.0
    %2289 = vmatprep.subr.mxu0 0.0
    %2290 = vmatpush1.xpose.msra.mxu0 0.0
    %2291 = vmatprep.subr.mxu0 0.0
    %2292 = vmatpush1.xpose.msra.mxu0 0.0
    %2293 = vmatprep.subr.mxu0 0.0
    %2294 = vmatpush1.xpose.msra.mxu0 0.0
    %2295 = vmatprep.subr.mxu0 0.0
    %2296 = vmatpush1.xpose.msra.mxu0 0.0
    %2297 = vmatprep.subr.mxu0 0.0
    %2298 = vmatpush1.xpose.msra.mxu0 0.0
    %2299 = vmatprep.subr.mxu0 0.0
    %2300 = vmatpush1.xpose.msra.mxu0 0.0
    %2301 = vmatprep.subr.mxu0 0.0
    %2302 = vmatpush1.xpose.msra.mxu0 0.0
    %2303 = vmatprep.subr.mxu0 0.0
    %2304 = vmatpush1.xpose.msra.mxu0 0.0
    %2305 = vmatprep.subr.mxu0 0.0
    %2306 = vmatpush1.xpose.msra.mxu0 0.0
    %2307 = vmatprep.subr.mxu0 0.0
    %2308 = vmatpush1.xpose.msra.mxu0 0.0
    %2309 = vmatprep.subr.mxu0 0.0
    %2310 = vmatpush1.xpose.msra.mxu0 0.0
    %2311 = vmatprep.subr.mxu0 0.0
    %2312 = vmatpush1.xpose.msra.mxu0 0.0
    %2313 = vmatprep.subr.mxu0 0.0
    %2314 = vmatpush1.xpose.msra.mxu0 0.0
    %2315 = vmatprep.subr.mxu0 0.0
    %2316 = vmatpush1.xpose.msra.mxu0 0.0
    %2317 = vmatprep.subr.mxu0 0.0
    %2318 = vmatpush1.xpose.msra.mxu0 0.0
    %2319 = vmatprep.subr.mxu0 0.0
    %2320 = vmatpush1.xpose.msra.mxu0 0.0
    %2321 = vmatprep.subr.mxu0 0.0
    %2322 = vmatpush1.xpose.msra.mxu0 0.0
    %2323 = vmatprep.subr.mxu0 0.0
    %2324 = vmatpush1.xpose.msra.mxu0 0.0
    %2325 = vmatprep.subr.mxu0 0.0
    %2326 = vmatpush1.xpose.msra.mxu0 0.0
    %2327 = vmatprep.subr.mxu0 0.0
    %2328 = vmatpush1.xpose.msra.mxu0 0.0
    %2329 = vmatprep.subr.mxu0 0.0
    %2330 = vmatpush1.xpose.msra.mxu0 0.0
    %2331 = vmatprep.subr.mxu0 0.0
    %2332 = vmatpush1.xpose.msra.mxu0 0.0
    %2333 = vmatprep.subr.mxu0 0.0
    %2334 = vmatpush1.xpose.msra.mxu0 0.0
    %2335 = vmatprep.subr.mxu0 0.0
    %2336 = vmatpush1.xpose.msra.mxu0 0.0
    %2337 = vmatprep.subr.mxu0 0.0
    %2338 = vmatpush1.xpose.msra.mxu0 0.0
    %2339 = vmatprep.subr.mxu0 0.0
    %2340 = vmatpush1.xpose.msra.mxu0 0.0
    %2341 = vmatprep.subr.mxu0 0.0
    %2342 = vmatpush1.xpose.msra.mxu0 0.0
    %2343 = vmatprep.subr.mxu0 0.0
    %2344 = vmatpush1.xpose.msra.mxu0 0.0
    %2345 = vmatprep.subr.mxu0 0.0
    %2346 = vmatpush1.xpose.msra.mxu0 0.0
    %2347 = vmatprep.subr.mxu0 0.0
    %2348 = vmatpush1.xpose.msra.mxu0 0.0
    %2349 = vmatprep.mubr.f32.mxu0 0.0
    %2350 = vmatmul.mubr.f32.gmra.mrb[0].mxu0 %v2281
    %v2351 = vpop.f32.mrb[0].mxu0
    %v2352 = vadd.f32 0.0, %v2351
    %v2353 = vpop.f32.mrb[0].mxu0
    %2354 = vdwg.mxu0
    %v2355 = vmul.f32 %v2352, 0.35355338
    %v2356 = vsel %vm502, %v2355, -inf
    %2357 = vmax.xlane.f32.xlu0 %v2356
    %v2358 = vpop.xlane.xlu0 %2357
    %v2359 = vsub.f32 %v2355, %v2358
    %v2360 = vmul.f32 %v2359, 1.442695
    %v2361 = vpow.pop %v2360
    %v2362 = vsel %vm502, %v2361, 0.0
    %2363 = vadd.xlane.f32.xlu0 %v2362
    %v2364 = vpop.xlane.xlu0 %2363
    %v2365 = vrcp.pop %v2364
    %v2366 = vmul.f32 %v2361, %v2365
    %2367 = vrot.lane.b32.xlu0 %v2270, 64
    %v2368 = vpop.permute.xlu0 %2367
    %v2370 = vsel %vm516, %v2366, 0
    %v2372 = vsel %vm280, %v2368, 0
    %2374 = vmatprep.subr.mxu0 0.0
    %2375 = vmatpush1.msra.mxu0 %v2372
    %2376 = vmatprep.subr.mxu0 0.0
    %2377 = vmatpush1.msra.mxu0 0.0
    %2378 = vmatprep.subr.mxu0 0.0
    %2379 = vmatpush1.msra.mxu0 0.0
    %2380 = vmatprep.subr.mxu0 0.0
    %2381 = vmatpush1.msra.mxu0 0.0
    %2382 = vmatprep.subr.mxu0 0.0
    %2383 = vmatpush1.msra.mxu0 0.0
    %2384 = vmatprep.subr.mxu0 0.0
    %2385 = vmatpush1.msra.mxu0 0.0
    %2386 = vmatprep.subr.mxu0 0.0
    %2387 = vmatpush1.msra.mxu0 0.0
    %2388 = vmatprep.subr.mxu0 0.0
    %2389 = vmatpush1.msra.mxu0 0.0
    %2390 = vmatprep.subr.mxu0 0.0
    %2391 = vmatpush1.msra.mxu0 0.0
    %2392 = vmatprep.subr.mxu0 0.0
    %2393 = vmatpush1.msra.mxu0 0.0
    %2394 = vmatprep.subr.mxu0 0.0
    %2395 = vmatpush1.msra.mxu0 0.0
    %2396 = vmatprep.subr.mxu0 0.0
    %2397 = vmatpush1.msra.mxu0 0.0
    %2398 = vmatprep.subr.mxu0 0.0
    %2399 = vmatpush1.msra.mxu0 0.0
    %2400 = vmatprep.subr.mxu0 0.0
    %2401 = vmatpush1.msra.mxu0 0.0
    %2402 = vmatprep.subr.mxu0 0.0
    %2403 = vmatpush1.msra.mxu0 0.0
    %2404 = vmatprep.subr.mxu0 0.0
    %2405 = vmatpush1.msra.mxu0 0.0
    %2406 = vmatprep.subr.mxu0 0.0
    %2407 = vmatpush1.msra.mxu0 0.0
    %2408 = vmatprep.subr.mxu0 0.0
    %2409 = vmatpush1.msra.mxu0 0.0
    %2410 = vmatprep.subr.mxu0 0.0
    %2411 = vmatpush1.msra.mxu0 0.0
    %2412 = vmatprep.subr.mxu0 0.0
    %2413 = vmatpush1.msra.mxu0 0.0
    %2414 = vmatprep.subr.mxu0 0.0
    %2415 = vmatpush1.msra.mxu0 0.0
    %2416 = vmatprep.subr.mxu0 0.0
    %2417 = vmatpush1.msra.mxu0 0.0
    %2418 = vmatprep.subr.mxu0 0.0
    %2419 = vmatpush1.msra.mxu0 0.0
    %2420 = vmatprep.subr.mxu0 0.0
    %2421 = vmatpush1.msra.mxu0 0.0
    %2422 = vmatprep.subr.mxu0 0.0
    %2423 = vmatpush1.msra.mxu0 0.0
    %2424 = vmatprep.subr.mxu0 0.0
    %2425 = vmatpush1.msra.mxu0 0.0
    %2426 = vmatprep.subr.mxu0 0.0
    %2427 = vmatpush1.msra.mxu0 0.0
    %2428 = vmatprep.subr.mxu0 0.0
    %2429 = vmatpush1.msra.mxu0 0.0
    %2430 = vmatprep.subr.mxu0 0.0
    %2431 = vmatpush1.msra.mxu0 0.0
    %2432 = vmatprep.subr.mxu0 0.0
    %2433 = vmatpush1.msra.mxu0 0.0
    %2434 = vmatprep.subr.mxu0 0.0
    %2435 = vmatpush1.msra.mxu0 0.0
    %2436 = vmatprep.subr.mxu0 0.0
    %2437 = vmatpush1.msra.mxu0 0.0
    %2438 = vmatprep.mubr.f32.mxu0 0.0
    %2439 = vmatmul.mubr.f32.gmra.mrb[0].mxu0 %v2370
    %v2440 = vpop.f32.mrb[0].mxu0
    %v2441 = vadd.f32 0.0, %v2440
    %v2442 = vpop.f32.mrb[0].mxu0
    %2443 = vdwg.mxu0
    %2444 = vrot.lane.b32.xlu0 %v2270, 120
    %v2445 = vpop.permute.xlu0 %2444
    %2446 = vrot.lane.b32.xlu0 %v2270, 88
    %v2447 = vpop.permute.xlu0 %2446
    %v2448 = vsel %vm426, %v2445, 0
    %v2450 = vsel %vm426, %v2447, 0
    %2452 = vmatprep.subr.mxu0 0.0
    %2453 = vmatpush1.xpose.msra.mxu0 %v2450
    %2454 = vmatprep.subr.mxu0 0.0
    %2455 = vmatpush1.xpose.msra.mxu0 0.0
    %2456 = vmatprep.subr.mxu0 0.0
    %2457 = vmatpush1.xpose.msra.mxu0 0.0
    %2458 = vmatprep.subr.mxu0 0.0
    %2459 = vmatpush1.xpose.msra.mxu0 0.0
    %2460 = vmatprep.subr.mxu0 0.0
    %2461 = vmatpush1.xpose.msra.mxu0 0.0
    %2462 = vmatprep.subr.mxu0 0.0
    %2463 = vmatpush1.xpose.msra.mxu0 0.0
    %2464 = vmatprep.subr.mxu0 0.0
    %2465 = vmatpush1.xpose.msra.mxu0 0.0
    %2466 = vmatprep.subr.mxu0 0.0
    %2467 = vmatpush1.xpose.msra.mxu0 0.0
    %2468 = vmatprep.subr.mxu0 0.0
    %2469 = vmatpush1.xpose.msra.mxu0 0.0
    %2470 = vmatprep.subr.mxu0 0.0
    %2471 = vmatpush1.xpose.msra.mxu0 0.0
    %2472 = vmatprep.subr.mxu0 0.0
    %2473 = vmatpush1.xpose.msra.mxu0 0.0
    %2474 = vmatprep.subr.mxu0 0.0
    %2475 = vmatpush1.xpose.msra.mxu0 0.0
    %2476 = vmatprep.subr.mxu0 0.0
    %2477 = vmatpush1.xpose.msra.mxu0 0.0
    %2478 = vmatprep.subr.mxu0 0.0
    %2479 = vmatpush1.xpose.msra.mxu0 0.0
    %2480 = vmatprep.subr.mxu0 0.0
    %2481 = vmatpush1.xpose.msra.mxu0 0.0
    %2482 = vmatprep.subr.mxu0 0.0
    %2483 = vmatpush1.xpose.msra.mxu0 0.0
    %2484 = vmatprep.subr.mxu0 0.0
    %2485 = vmatpush1.xpose.msra.mxu0 0.0
    %2486 = vmatprep.subr.mxu0 0.0
    %2487 = vmatpush1.xpose.msra.mxu0 0.0
    %2488 = vmatprep.subr.mxu0 0.0
    %2489 = vmatpush1.xpose.msra.mxu0 0.0
    %2490 = vmatprep.subr.mxu0 0.0
    %2491 = vmatpush1.xpose.msra.mxu0 0.0
    %2492 = vmatprep.subr.mxu0 0.0
    %2493 = vmatpush1.xpose.msra.mxu0 0.0
    %2494 = vmatprep.subr.mxu0 0.0
    %2495 = vmatpush1.xpose.msra.mxu0 0.0
    %2496 = vmatprep.subr.mxu0 0.0
    %2497 = vmatpush1.xpose.msra.mxu0 0.0
    %2498 = vmatprep.subr.mxu0 0.0
    %2499 = vmatpush1.xpose.msra.mxu0 0.0
    %2500 = vmatprep.subr.mxu0 0.0
    %2501 = vmatpush1.xpose.msra.mxu0 0.0
    %2502 = vmatprep.subr.mxu0 0.0
    %2503 = vmatpush1.xpose.msra.mxu0 0.0
    %2504 = vmatprep.subr.mxu0 0.0
    %2505 = vmatpush1.xpose.msra.mxu0 0.0
    %2506 = vmatprep.subr.mxu0 0.0
    %2507 = vmatpush1.xpose.msra.mxu0 0.0
    %2508 = vmatprep.subr.mxu0 0.0
    %2509 = vmatpush1.xpose.msra.mxu0 0.0
    %2510 = vmatprep.subr.mxu0 0.0
    %2511 = vmatpush1.xpose.msra.mxu0 0.0
    %2512 = vmatprep.subr.mxu0 0.0
    %2513 = vmatpush1.xpose.msra.mxu0 0.0
    %2514 = vmatprep.subr.mxu0 0.0
    %2515 = vmatpush1.xpose.msra.mxu0 0.0
    %2516 = vmatprep.mubr.f32.mxu0 0.0
    %2517 = vmatmul.mubr.f32.gmra.mrb[0].mxu0 %v2448
    %v2518 = vpop.f32.mrb[0].mxu0
    %v2519 = vadd.f32 0.0, %v2518
    %v2520 = vpop.f32.mrb[0].mxu0
    %2521 = vdwg.mxu0
    %v2522 = vmul.f32 %v2519, 0.35355338
    %v2523 = vsel %vm502, %v2522, -inf
    %2524 = vmax.xlane.f32.xlu0 %v2523
    %v2525 = vpop.xlane.xlu0 %2524
    %v2526 = vsub.f32 %v2522, %v2525
    %v2527 = vmul.f32 %v2526, 1.442695
    %v2528 = vpow.pop %v2527
    %v2529 = vsel %vm502, %v2528, 0.0
    %2530 = vadd.xlane.f32.xlu0 %v2529
    %v2531 = vpop.xlane.xlu0 %2530
    %v2532 = vrcp.pop %v2531
    %v2533 = vmul.f32 %v2528, %v2532
    %2534 = vrot.lane.b32.xlu0 %v2270, 56
    %v2535 = vpop.permute.xlu0 %2534
    %v2537 = vsel %vm516, %v2533, 0
    %v2539 = vsel %vm280, %v2535, 0
    %2541 = vmatprep.subr.mxu0 0.0
    %2542 = vmatpush1.msra.mxu0 %v2539
    %2543 = vmatprep.subr.mxu0 0.0
    %2544 = vmatpush1.msra.mxu0 0.0
    %2545 = vmatprep.subr.mxu0 0.0
    %2546 = vmatpush1.msra.mxu0 0.0
    %2547 = vmatprep.subr.mxu0 0.0
    %2548 = vmatpush1.msra.mxu0 0.0
    %2549 = vmatprep.subr.mxu0 0.0
    %2550 = vmatpush1.msra.mxu0 0.0
    %2551 = vmatprep.subr.mxu0 0.0
    %2552 = vmatpush1.msra.mxu0 0.0
    %2553 = vmatprep.subr.mxu0 0.0
    %2554 = vmatpush1.msra.mxu0 0.0
    %2555 = vmatprep.subr.mxu0 0.0
    %2556 = vmatpush1.msra.mxu0 0.0
    %2557 = vmatprep.subr.mxu0 0.0
    %2558 = vmatpush1.msra.mxu0 0.0
    %2559 = vmatprep.subr.mxu0 0.0
    %2560 = vmatpush1.msra.mxu0 0.0
    %2561 = vmatprep.subr.mxu0 0.0
    %2562 = vmatpush1.msra.mxu0 0.0
    %2563 = vmatprep.subr.mxu0 0.0
    %2564 = vmatpush1.msra.mxu0 0.0
    %2565 = vmatprep.subr.mxu0 0.0
    %2566 = vmatpush1.msra.mxu0 0.0
    %2567 = vmatprep.subr.mxu0 0.0
    %2568 = vmatpush1.msra.mxu0 0.0
    %2569 = vmatprep.subr.mxu0 0.0
    %2570 = vmatpush1.msra.mxu0 0.0
    %2571 = vmatprep.subr.mxu0 0.0
    %2572 = vmatpush1.msra.mxu0 0.0
    %2573 = vmatprep.subr.mxu0 0.0
    %2574 = vmatpush1.msra.mxu0 0.0
    %2575 = vmatprep.subr.mxu0 0.0
    %2576 = vmatpush1.msra.mxu0 0.0
    %2577 = vmatprep.subr.mxu0 0.0
    %2578 = vmatpush1.msra.mxu0 0.0
    %2579 = vmatprep.subr.mxu0 0.0
    %2580 = vmatpush1.msra.mxu0 0.0
    %2581 = vmatprep.subr.mxu0 0.0
    %2582 = vmatpush1.msra.mxu0 0.0
    %2583 = vmatprep.subr.mxu0 0.0
    %2584 = vmatpush1.msra.mxu0 0.0
    %2585 = vmatprep.subr.mxu0 0.0
    %2586 = vmatpush1.msra.mxu0 0.0
    %2587 = vmatprep.subr.mxu0 0.0
    %2588 = vmatpush1.msra.mxu0 0.0
    %2589 = vmatprep.subr.mxu0 0.0
    %2590 = vmatpush1.msra.mxu0 0.0
    %2591 = vmatprep.subr.mxu0 0.0
    %2592 = vmatpush1.msra.mxu0 0.0
    %2593 = vmatprep.subr.mxu0 0.0
    %2594 = vmatpush1.msra.mxu0 0.0
    %2595 = vmatprep.subr.mxu0 0.0
    %2596 = vmatpush1.msra.mxu0 0.0
    %2597 = vmatprep.subr.mxu0 0.0
    %2598 = vmatpush1.msra.mxu0 0.0
    %2599 = vmatprep.subr.mxu0 0.0
    %2600 = vmatpush1.msra.mxu0 0.0
    %2601 = vmatprep.subr.mxu0 0.0
    %2602 = vmatpush1.msra.mxu0 0.0
    %2603 = vmatprep.subr.mxu0 0.0
    %2604 = vmatpush1.msra.mxu0 0.0
    %2605 = vmatprep.mubr.f32.mxu0 0.0
    %2606 = vmatmul.mubr.f32.gmra.mrb[0].mxu0 %v2537
    %v2607 = vpop.f32.mrb[0].mxu0
    %v2608 = vadd.f32 0.0, %v2607
    %v2609 = vpop.f32.mrb[0].mxu0
    %2610 = vdwg.mxu0
    %2611 = vrot.lane.b32.xlu0 %v2270, 112
    %v2612 = vpop.permute.xlu0 %2611
    %2613 = vrot.lane.b32.xlu0 %v2270, 80
    %v2614 = vpop.permute.xlu0 %2613
    %v2615 = vsel %vm426, %v2612, 0
    %v2617 = vsel %vm426, %v2614, 0
    %2619 = vmatprep.subr.mxu0 0.0
    %2620 = vmatpush1.xpose.msra.mxu0 %v2617
    %2621 = vmatprep.subr.mxu0 0.0
    %2622 = vmatpush1.xpose.msra.mxu0 0.0
    %2623 = vmatprep.subr.mxu0 0.0
    %2624 = vmatpush1.xpose.msra.mxu0 0.0
    %2625 = vmatprep.subr.mxu0 0.0
    %2626 = vmatpush1.xpose.msra.mxu0 0.0
    %2627 = vmatprep.subr.mxu0 0.0
    %2628 = vmatpush1.xpose.msra.mxu0 0.0
    %2629 = vmatprep.subr.mxu0 0.0
    %2630 = vmatpush1.xpose.msra.mxu0 0.0
    %2631 = vmatprep.subr.mxu0 0.0
    %2632 = vmatpush1.xpose.msra.mxu0 0.0
    %2633 = vmatprep.subr.mxu0 0.0
    %2634 = vmatpush1.xpose.msra.mxu0 0.0
    %2635 = vmatprep.subr.mxu0 0.0
    %2636 = vmatpush1.xpose.msra.mxu0 0.0
    %2637 = vmatprep.subr.mxu0 0.0
    %2638 = vmatpush1.xpose.msra.mxu0 0.0
    %2639 = vmatprep.subr.mxu0 0.0
    %2640 = vmatpush1.xpose.msra.mxu0 0.0
    %2641 = vmatprep.subr.mxu0 0.0
    %2642 = vmatpush1.xpose.msra.mxu0 0.0
    %2643 = vmatprep.subr.mxu0 0.0
    %2644 = vmatpush1.xpose.msra.mxu0 0.0
    %2645 = vmatprep.subr.mxu0 0.0
    %2646 = vmatpush1.xpose.msra.mxu0 0.0
    %2647 = vmatprep.subr.mxu0 0.0
    %2648 = vmatpush1.xpose.msra.mxu0 0.0
    %2649 = vmatprep.subr.mxu0 0.0
    %2650 = vmatpush1.xpose.msra.mxu0 0.0
    %2651 = vmatprep.subr.mxu0 0.0
    %2652 = vmatpush1.xpose.msra.mxu0 0.0
    %2653 = vmatprep.subr.mxu0 0.0
    %2654 = vmatpush1.xpose.msra.mxu0 0.0
    %2655 = vmatprep.subr.mxu0 0.0
    %2656 = vmatpush1.xpose.msra.mxu0 0.0
    %2657 = vmatprep.subr.mxu0 0.0
    %2658 = vmatpush1.xpose.msra.mxu0 0.0
    %2659 = vmatprep.subr.mxu0 0.0
    %2660 = vmatpush1.xpose.msra.mxu0 0.0
    %2661 = vmatprep.subr.mxu0 0.0
    %2662 = vmatpush1.xpose.msra.mxu0 0.0
    %2663 = vmatprep.subr.mxu0 0.0
    %2664 = vmatpush1.xpose.msra.mxu0 0.0
    %2665 = vmatprep.subr.mxu0 0.0
    %2666 = vmatpush1.xpose.msra.mxu0 0.0
    %2667 = vmatprep.subr.mxu0 0.0
    %2668 = vmatpush1.xpose.msra.mxu0 0.0
    %2669 = vmatprep.subr.mxu0 0.0
    %2670 = vmatpush1.xpose.msra.mxu0 0.0
    %2671 = vmatprep.subr.mxu0 0.0
    %2672 = vmatpush1.xpose.msra.mxu0 0.0
    %2673 = vmatprep.subr.mxu0 0.0
    %2674 = vmatpush1.xpose.msra.mxu0 0.0
    %2675 = vmatprep.subr.mxu0 0.0
    %2676 = vmatpush1.xpose.msra.mxu0 0.0
    %2677 = vmatprep.subr.mxu0 0.0
    %2678 = vmatpush1.xpose.msra.mxu0 0.0
    %2679 = vmatprep.subr.mxu0 0.0
    %2680 = vmatpush1.xpose.msra.mxu0 0.0
    %2681 = vmatprep.subr.mxu0 0.0
    %2682 = vmatpush1.xpose.msra.mxu0 0.0
    %2683 = vmatprep.mubr.f32.mxu0 0.0
    %2684 = vmatmul.mubr.f32.gmra.mrb[0].mxu0 %v2615
    %v2685 = vpop.f32.mrb[0].mxu0
    %v2686 = vadd.f32 0.0, %v2685
    %v2687 = vpop.f32.mrb[0].mxu0
    %2688 = vdwg.mxu0
    %v2689 = vmul.f32 %v2686, 0.35355338
    %v2690 = vsel %vm502, %v2689, -inf
    %2691 = vmax.xlane.f32.xlu0 %v2690
    %v2692 = vpop.xlane.xlu0 %2691
    %v2693 = vsub.f32 %v2689, %v2692
    %v2694 = vmul.f32 %v2693, 1.442695
    %v2695 = vpow.pop %v2694
    %v2696 = vsel %vm502, %v2695, 0.0
    %2697 = vadd.xlane.f32.xlu0 %v2696
    %v2698 = vpop.xlane.xlu0 %2697
    %v2699 = vrcp.pop %v2698
    %v2700 = vmul.f32 %v2695, %v2699
    %2701 = vrot.lane.b32.xlu0 %v2270, 48
    %v2702 = vpop.permute.xlu0 %2701
    %v2704 = vsel %vm516, %v2700, 0
    %v2706 = vsel %vm280, %v2702, 0
    %2708 = vmatprep.subr.mxu0 0.0
    %2709 = vmatpush1.msra.mxu0 %v2706
    %2710 = vmatprep.subr.mxu0 0.0
    %2711 = vmatpush1.msra.mxu0 0.0
    %2712 = vmatprep.subr.mxu0 0.0
    %2713 = vmatpush1.msra.mxu0 0.0
    %2714 = vmatprep.subr.mxu0 0.0
    %2715 = vmatpush1.msra.mxu0 0.0
    %2716 = vmatprep.subr.mxu0 0.0
    %2717 = vmatpush1.msra.mxu0 0.0
    %2718 = vmatprep.subr.mxu0 0.0
    %2719 = vmatpush1.msra.mxu0 0.0
    %2720 = vmatprep.subr.mxu0 0.0
    %2721 = vmatpush1.msra.mxu0 0.0
    %2722 = vmatprep.subr.mxu0 0.0
    %2723 = vmatpush1.msra.mxu0 0.0
    %2724 = vmatprep.subr.mxu0 0.0
    %2725 = vmatpush1.msra.mxu0 0.0
    %2726 = vmatprep.subr.mxu0 0.0
    %2727 = vmatpush1.msra.mxu0 0.0
    %2728 = vmatprep.subr.mxu0 0.0
    %2729 = vmatpush1.msra.mxu0 0.0
    %2730 = vmatprep.subr.mxu0 0.0
    %2731 = vmatpush1.msra.mxu0 0.0
    %2732 = vmatprep.subr.mxu0 0.0
    %2733 = vmatpush1.msra.mxu0 0.0
    %2734 = vmatprep.subr.mxu0 0.0
    %2735 = vmatpush1.msra.mxu0 0.0
    %2736 = vmatprep.subr.mxu0 0.0
    %2737 = vmatpush1.msra.mxu0 0.0
    %2738 = vmatprep.subr.mxu0 0.0
    %2739 = vmatpush1.msra.mxu0 0.0
    %2740 = vmatprep.subr.mxu0 0.0
    %2741 = vmatpush1.msra.mxu0 0.0
    %2742 = vmatprep.subr.mxu0 0.0
    %2743 = vmatpush1.msra.mxu0 0.0
    %2744 = vmatprep.subr.mxu0 0.0
    %2745 = vmatpush1.msra.mxu0 0.0
    %2746 = vmatprep.subr.mxu0 0.0
    %2747 = vmatpush1.msra.mxu0 0.0
    %2748 = vmatprep.subr.mxu0 0.0
    %2749 = vmatpush1.msra.mxu0 0.0
    %2750 = vmatprep.subr.mxu0 0.0
    %2751 = vmatpush1.msra.mxu0 0.0
    %2752 = vmatprep.subr.mxu0 0.0
    %2753 = vmatpush1.msra.mxu0 0.0
    %2754 = vmatprep.subr.mxu0 0.0
    %2755 = vmatpush1.msra.mxu0 0.0
    %2756 = vmatprep.subr.mxu0 0.0
    %2757 = vmatpush1.msra.mxu0 0.0
    %2758 = vmatprep.subr.mxu0 0.0
    %2759 = vmatpush1.msra.mxu0 0.0
    %2760 = vmatprep.subr.mxu0 0.0
    %2761 = vmatpush1.msra.mxu0 0.0
    %2762 = vmatprep.subr.mxu0 0.0
    %2763 = vmatpush1.msra.mxu0 0.0
    %2764 = vmatprep.subr.mxu0 0.0
    %2765 = vmatpush1.msra.mxu0 0.0
    %2766 = vmatprep.subr.mxu0 0.0
    %2767 = vmatpush1.msra.mxu0 0.0
    %2768 = vmatprep.subr.mxu0 0.0
    %2769 = vmatpush1.msra.mxu0 0.0
    %2770 = vmatprep.subr.mxu0 0.0
    %2771 = vmatpush1.msra.mxu0 0.0
    %2772 = vmatprep.mubr.f32.mxu0 0.0
    %2773 = vmatmul.mubr.f32.gmra.mrb[0].mxu0 %v2704
    %v2774 = vpop.f32.mrb[0].mxu0
    %v2775 = vadd.f32 0.0, %v2774
    %v2776 = vpop.f32.mrb[0].mxu0
    %2777 = vdwg.mxu0
    %2778 = vrot.lane.b32.xlu0 %v2270, 104
    %v2779 = vpop.permute.xlu0 %2778
    %2780 = vrot.lane.b32.xlu0 %v2270, 72
    %v2781 = vpop.permute.xlu0 %2780
    %v2782 = vsel %vm426, %v2779, 0
    %v2784 = vsel %vm426, %v2781, 0
    %2786 = vmatprep.subr.mxu0 0.0
    %2787 = vmatpush1.xpose.msra.mxu0 %v2784
    %2788 = vmatprep.subr.mxu0 0.0
    %2789 = vmatpush1.xpose.msra.mxu0 0.0
    %2790 = vmatprep.subr.mxu0 0.0
    %2791 = vmatpush1.xpose.msra.mxu0 0.0
    %2792 = vmatprep.subr.mxu0 0.0
    %2793 = vmatpush1.xpose.msra.mxu0 0.0
    %2794 = vmatprep.subr.mxu0 0.0
    %2795 = vmatpush1.xpose.msra.mxu0 0.0
    %2796 = vmatprep.subr.mxu0 0.0
    %2797 = vmatpush1.xpose.msra.mxu0 0.0
    %2798 = vmatprep.subr.mxu0 0.0
    %2799 = vmatpush1.xpose.msra.mxu0 0.0
    %2800 = vmatprep.subr.mxu0 0.0
    %2801 = vmatpush1.xpose.msra.mxu0 0.0
    %2802 = vmatprep.subr.mxu0 0.0
    %2803 = vmatpush1.xpose.msra.mxu0 0.0
    %2804 = vmatprep.subr.mxu0 0.0
    %2805 = vmatpush1.xpose.msra.mxu0 0.0
    %2806 = vmatprep.subr.mxu0 0.0
    %2807 = vmatpush1.xpose.msra.mxu0 0.0
    %2808 = vmatprep.subr.mxu0 0.0
    %2809 = vmatpush1.xpose.msra.mxu0 0.0
    %2810 = vmatprep.subr.mxu0 0.0
    %2811 = vmatpush1.xpose.msra.mxu0 0.0
    %2812 = vmatprep.subr.mxu0 0.0
    %2813 = vmatpush1.xpose.msra.mxu0 0.0
    %2814 = vmatprep.subr.mxu0 0.0
    %2815 = vmatpush1.xpose.msra.mxu0 0.0
    %2816 = vmatprep.subr.mxu0 0.0
    %2817 = vmatpush1.xpose.msra.mxu0 0.0
    %2818 = vmatprep.subr.mxu0 0.0
    %2819 = vmatpush1.xpose.msra.mxu0 0.0
    %2820 = vmatprep.subr.mxu0 0.0
    %2821 = vmatpush1.xpose.msra.mxu0 0.0
    %2822 = vmatprep.subr.mxu0 0.0
    %2823 = vmatpush1.xpose.msra.mxu0 0.0
    %2824 = vmatprep.subr.mxu0 0.0
    %2825 = vmatpush1.xpose.msra.mxu0 0.0
    %2826 = vmatprep.subr.mxu0 0.0
    %2827 = vmatpush1.xpose.msra.mxu0 0.0
    %2828 = vmatprep.subr.mxu0 0.0
    %2829 = vmatpush1.xpose.msra.mxu0 0.0
    %2830 = vmatprep.subr.mxu0 0.0
    %2831 = vmatpush1.xpose.msra.mxu0 0.0
    %2832 = vmatprep.subr.mxu0 0.0
    %2833 = vmatpush1.xpose.msra.mxu0 0.0
    %2834 = vmatprep.subr.mxu0 0.0
    %2835 = vmatpush1.xpose.msra.mxu0 0.0
    %2836 = vmatprep.subr.mxu0 0.0
    %2837 = vmatpush1.xpose.msra.mxu0 0.0
    %2838 = vmatprep.subr.mxu0 0.0
    %2839 = vmatpush1.xpose.msra.mxu0 0.0
    %2840 = vmatprep.subr.mxu0 0.0
    %2841 = vmatpush1.xpose.msra.mxu0 0.0
    %2842 = vmatprep.subr.mxu0 0.0
    %2843 = vmatpush1.xpose.msra.mxu0 0.0
    %2844 = vmatprep.subr.mxu0 0.0
    %2845 = vmatpush1.xpose.msra.mxu0 0.0
    %2846 = vmatprep.subr.mxu0 0.0
    %2847 = vmatpush1.xpose.msra.mxu0 0.0
    %2848 = vmatprep.subr.mxu0 0.0
    %2849 = vmatpush1.xpose.msra.mxu0 0.0
    %2850 = vmatprep.mubr.f32.mxu0 0.0
    %2851 = vmatmul.mubr.f32.gmra.mrb[0].mxu0 %v2782
    %v2852 = vpop.f32.mrb[0].mxu0
    %v2853 = vadd.f32 0.0, %v2852
    %v2854 = vpop.f32.mrb[0].mxu0
    %2855 = vdwg.mxu0
    %v2856 = vmul.f32 %v2853, 0.35355338
    %v2857 = vsel %vm502, %v2856, -inf
    %2858 = vmax.xlane.f32.xlu0 %v2857
    %v2859 = vpop.xlane.xlu0 %2858
    %v2860 = vsub.f32 %v2856, %v2859
    %v2861 = vmul.f32 %v2860, 1.442695
    %v2862 = vpow.pop %v2861
    %v2863 = vsel %vm502, %v2862, 0.0
    %2864 = vadd.xlane.f32.xlu0 %v2863
    %v2865 = vpop.xlane.xlu0 %2864
    %v2866 = vrcp.pop %v2865
    %v2867 = vmul.f32 %v2862, %v2866
    %2868 = vrot.lane.b32.xlu0 %v2270, 40
    %v2869 = vpop.permute.xlu0 %2868
    %v2871 = vsel %vm516, %v2867, 0
    %v2873 = vsel %vm280, %v2869, 0
    %2875 = vmatprep.subr.mxu0 0.0
    %2876 = vmatpush1.msra.mxu0 %v2873
    %2877 = vmatprep.subr.mxu0 0.0
    %2878 = vmatpush1.msra.mxu0 0.0
    %2879 = vmatprep.subr.mxu0 0.0
    %2880 = vmatpush1.msra.mxu0 0.0
    %2881 = vmatprep.subr.mxu0 0.0
    %2882 = vmatpush1.msra.mxu0 0.0
    %2883 = vmatprep.subr.mxu0 0.0
    %2884 = vmatpush1.msra.mxu0 0.0
    %2885 = vmatprep.subr.mxu0 0.0
    %2886 = vmatpush1.msra.mxu0 0.0
    %2887 = vmatprep.subr.mxu0 0.0
    %2888 = vmatpush1.msra.mxu0 0.0
    %2889 = vmatprep.subr.mxu0 0.0
    %2890 = vmatpush1.msra.mxu0 0.0
    %2891 = vmatprep.subr.mxu0 0.0
    %2892 = vmatpush1.msra.mxu0 0.0
    %2893 = vmatprep.subr.mxu0 0.0
    %2894 = vmatpush1.msra.mxu0 0.0
    %2895 = vmatprep.subr.mxu0 0.0
    %2896 = vmatpush1.msra.mxu0 0.0
    %2897 = vmatprep.subr.mxu0 0.0
    %2898 = vmatpush1.msra.mxu0 0.0
    %2899 = vmatprep.subr.mxu0 0.0
    %2900 = vmatpush1.msra.mxu0 0.0
    %2901 = vmatprep.subr.mxu0 0.0
    %2902 = vmatpush1.msra.mxu0 0.0
    %2903 = vmatprep.subr.mxu0 0.0
    %2904 = vmatpush1.msra.mxu0 0.0
    %2905 = vmatprep.subr.mxu0 0.0
    %2906 = vmatpush1.msra.mxu0 0.0
    %2907 = vmatprep.subr.mxu0 0.0
    %2908 = vmatpush1.msra.mxu0 0.0
    %2909 = vmatprep.subr.mxu0 0.0
    %2910 = vmatpush1.msra.mxu0 0.0
    %2911 = vmatprep.subr.mxu0 0.0
    %2912 = vmatpush1.msra.mxu0 0.0
    %2913 = vmatprep.subr.mxu0 0.0
    %2914 = vmatpush1.msra.mxu0 0.0
    %2915 = vmatprep.subr.mxu0 0.0
    %2916 = vmatpush1.msra.mxu0 0.0
    %2917 = vmatprep.subr.mxu0 0.0
    %2918 = vmatpush1.msra.mxu0 0.0
    %2919 = vmatprep.subr.mxu0 0.0
    %2920 = vmatpush1.msra.mxu0 0.0
    %2921 = vmatprep.subr.mxu0 0.0
    %2922 = vmatpush1.msra.mxu0 0.0
    %2923 = vmatprep.subr.mxu0 0.0
    %2924 = vmatpush1.msra.mxu0 0.0
    %2925 = vmatprep.subr.mxu0 0.0
    %2926 = vmatpush1.msra.mxu0 0.0
    %2927 = vmatprep.subr.mxu0 0.0
    %2928 = vmatpush1.msra.mxu0 0.0
    %2929 = vmatprep.subr.mxu0 0.0
    %2930 = vmatpush1.msra.mxu0 0.0
    %2931 = vmatprep.subr.mxu0 0.0
    %2932 = vmatpush1.msra.mxu0 0.0
    %2933 = vmatprep.subr.mxu0 0.0
    %2934 = vmatpush1.msra.mxu0 0.0
    %2935 = vmatprep.subr.mxu0 0.0
    %2936 = vmatpush1.msra.mxu0 0.0
    %2937 = vmatprep.subr.mxu0 0.0
    %2938 = vmatpush1.msra.mxu0 0.0
    %2939 = vmatprep.mubr.f32.mxu0 0.0
    %2940 = vmatmul.mubr.f32.gmra.mrb[0].mxu0 %v2871
    %v2941 = vpop.f32.mrb[0].mxu0
    %v2942 = vadd.f32 0.0, %v2941
    %v2943 = vpop.f32.mrb[0].mxu0
    %2944 = vdwg.mxu0
    %2946 = vrot.lane.b32.xlu0 %v2608, 8
    %v2947 = vpop.permute.xlu0 %2946
    %2950 = vrot.lane.b32.xlu0 %v2775, 16
    %v2951 = vpop.permute.xlu0 %2950
    %2954 = vrot.lane.b32.xlu0 %v2942, 24
    %v2955 = vpop.permute.xlu0 %2954
    %v2957 = vsel %vm426, %v2441, %v2947
    %v2958 = vsel %vm1106, %v2957, %v2951
    %v2959 = vsel %vm1108, %v2958, %v2955
    %v2961 = vrot.slane %v2270, 5
    %v2962 = vrot.slane %v2275, 5
    %v2963 = vsel %vm1111, %v2961, %v2962
    %2964 = vrot.lane.b32.xlu0 %v2963, 96
    %v2965 = vpop.permute.xlu0 %2964
    %v2966 = vsel %vm426, %v2963, 0
    %v2968 = vsel %vm426, %v2965, 0
    %2970 = vmatprep.subr.mxu0 0.0
    %2971 = vmatpush1.xpose.msra.mxu0 %v2968
    %2972 = vmatprep.subr.mxu0 0.0
    %2973 = vmatpush1.xpose.msra.mxu0 0.0
    %2974 = vmatprep.subr.mxu0 0.0
    %2975 = vmatpush1.xpose.msra.mxu0 0.0
    %2976 = vmatprep.subr.mxu0 0.0
    %2977 = vmatpush1.xpose.msra.mxu0 0.0
    %2978 = vmatprep.subr.mxu0 0.0
    %2979 = vmatpush1.xpose.msra.mxu0 0.0
    %2980 = vmatprep.subr.mxu0 0.0
    %2981 = vmatpush1.xpose.msra.mxu0 0.0
    %2982 = vmatprep.subr.mxu0 0.0
    %2983 = vmatpush1.xpose.msra.mxu0 0.0
    %2984 = vmatprep.subr.mxu0 0.0
    %2985 = vmatpush1.xpose.msra.mxu0 0.0
    %2986 = vmatprep.subr.mxu0 0.0
    %2987 = vmatpush1.xpose.msra.mxu0 0.0
    %2988 = vmatprep.subr.mxu0 0.0
    %2989 = vmatpush1.xpose.msra.mxu0 0.0
    %2990 = vmatprep.subr.mxu0 0.0
    %2991 = vmatpush1.xpose.msra.mxu0 0.0
    %2992 = vmatprep.subr.mxu0 0.0
    %2993 = vmatpush1.xpose.msra.mxu0 0.0
    %2994 = vmatprep.subr.mxu0 0.0
    %2995 = vmatpush1.xpose.msra.mxu0 0.0
    %2996 = vmatprep.subr.mxu0 0.0
    %2997 = vmatpush1.xpose.msra.mxu0 0.0
    %2998 = vmatprep.subr.mxu0 0.0
    %2999 = vmatpush1.xpose.msra.mxu0 0.0
    %3000 = vmatprep.subr.mxu0 0.0
    %3001 = vmatpush1.xpose.msra.mxu0 0.0
    %3002 = vmatprep.subr.mxu0 0.0
    %3003 = vmatpush1.xpose.msra.mxu0 0.0
    %3004 = vmatprep.subr.mxu0 0.0
    %3005 = vmatpush1.xpose.msra.mxu0 0.0
    %3006 = vmatprep.subr.mxu0 0.0
    %3007 = vmatpush1.xpose.msra.mxu0 0.0
    %3008 = vmatprep.subr.mxu0 0.0
    %3009 = vmatpush1.xpose.msra.mxu0 0.0
    %3010 = vmatprep.subr.mxu0 0.0
    %3011 = vmatpush1.xpose.msra.mxu0 0.0
    %3012 = vmatprep.subr.mxu0 0.0
    %3013 = vmatpush1.xpose.msra.mxu0 0.0
    %3014 = vmatprep.subr.mxu0 0.0
    %3015 = vmatpush1.xpose.msra.mxu0 0.0
    %3016 = vmatprep.subr.mxu0 0.0
    %3017 = vmatpush1.xpose.msra.mxu0 0.0
    %3018 = vmatprep.subr.mxu0 0.0
    %3019 = vmatpush1.xpose.msra.mxu0 0.0
    %3020 = vmatprep.subr.mxu0 0.0
    %3021 = vmatpush1.xpose.msra.mxu0 0.0
    %3022 = vmatprep.subr.mxu0 0.0
    %3023 = vmatpush1.xpose.msra.mxu0 0.0
    %3024 = vmatprep.subr.mxu0 0.0
    %3025 = vmatpush1.xpose.msra.mxu0 0.0
    %3026 = vmatprep.subr.mxu0 0.0
    %3027 = vmatpush1.xpose.msra.mxu0 0.0
    %3028 = vmatprep.subr.mxu0 0.0
    %3029 = vmatpush1.xpose.msra.mxu0 0.0
    %3030 = vmatprep.subr.mxu0 0.0
    %3031 = vmatpush1.xpose.msra.mxu0 0.0
    %3032 = vmatprep.subr.mxu0 0.0
    %3033 = vmatpush1.xpose.msra.mxu0 0.0
    %3034 = vmatprep.mubr.f32.mxu0 0.0
    %3035 = vmatmul.mubr.f32.gmra.mrb[0].mxu0 %v2966
    %v3036 = vpop.f32.mrb[0].mxu0
    %v3037 = vadd.f32 0.0, %v3036
    %v3038 = vpop.f32.mrb[0].mxu0
    %3039 = vdwg.mxu0
    %v3040 = vmul.f32 %v3037, 0.35355338
    %v3041 = vsel %vm502, %v3040, -inf
    %3042 = vmax.xlane.f32.xlu0 %v3041
    %v3043 = vpop.xlane.xlu0 %3042
    %v3044 = vsub.f32 %v3040, %v3043
    %v3045 = vmul.f32 %v3044, 1.442695
    %v3046 = vpow.pop %v3045
    %v3047 = vsel %vm502, %v3046, 0.0
    %3048 = vadd.xlane.f32.xlu0 %v3047
    %v3049 = vpop.xlane.xlu0 %3048
    %v3050 = vrcp.pop %v3049
    %v3051 = vmul.f32 %v3046, %v3050
    %3052 = vrot.lane.b32.xlu0 %v2963, 64
    %v3053 = vpop.permute.xlu0 %3052
    %v3055 = vsel %vm516, %v3051, 0
    %v3057 = vsel %vm280, %v3053, 0
    %3059 = vmatprep.subr.mxu0 0.0
    %3060 = vmatpush1.msra.mxu0 %v3057
    %3061 = vmatprep.subr.mxu0 0.0
    %3062 = vmatpush1.msra.mxu0 0.0
    %3063 = vmatprep.subr.mxu0 0.0
    %3064 = vmatpush1.msra.mxu0 0.0
    %3065 = vmatprep.subr.mxu0 0.0
    %3066 = vmatpush1.msra.mxu0 0.0
    %3067 = vmatprep.subr.mxu0 0.0
    %3068 = vmatpush1.msra.mxu0 0.0
    %3069 = vmatprep.subr.mxu0 0.0
    %3070 = vmatpush1.msra.mxu0 0.0
    %3071 = vmatprep.subr.mxu0 0.0
    %3072 = vmatpush1.msra.mxu0 0.0
    %3073 = vmatprep.subr.mxu0 0.0
    %3074 = vmatpush1.msra.mxu0 0.0
    %3075 = vmatprep.subr.mxu0 0.0
    %3076 = vmatpush1.msra.mxu0 0.0
    %3077 = vmatprep.subr.mxu0 0.0
    %3078 = vmatpush1.msra.mxu0 0.0
    %3079 = vmatprep.subr.mxu0 0.0
    %3080 = vmatpush1.msra.mxu0 0.0
    %3081 = vmatprep.subr.mxu0 0.0
    %3082 = vmatpush1.msra.mxu0 0.0
    %3083 = vmatprep.subr.mxu0 0.0
    %3084 = vmatpush1.msra.mxu0 0.0
    %3085 = vmatprep.subr.mxu0 0.0
    %3086 = vmatpush1.msra.mxu0 0.0
    %3087 = vmatprep.subr.mxu0 0.0
    %3088 = vmatpush1.msra.mxu0 0.0
    %3089 = vmatprep.subr.mxu0 0.0
    %3090 = vmatpush1.msra.mxu0 0.0
    %3091 = vmatprep.subr.mxu0 0.0
    %3092 = vmatpush1.msra.mxu0 0.0
    %3093 = vmatprep.subr.mxu0 0.0
    %3094 = vmatpush1.msra.mxu0 0.0
    %3095 = vmatprep.subr.mxu0 0.0
    %3096 = vmatpush1.msra.mxu0 0.0
    %3097 = vmatprep.subr.mxu0 0.0
    %3098 = vmatpush1.msra.mxu0 0.0
    %3099 = vmatprep.subr.mxu0 0.0
    %3100 = vmatpush1.msra.mxu0 0.0
    %3101 = vmatprep.subr.mxu0 0.0
    %3102 = vmatpush1.msra.mxu0 0.0
    %3103 = vmatprep.subr.mxu0 0.0
    %3104 = vmatpush1.msra.mxu0 0.0
    %3105 = vmatprep.subr.mxu0 0.0
    %3106 = vmatpush1.msra.mxu0 0.0
    %3107 = vmatprep.subr.mxu0 0.0
    %3108 = vmatpush1.msra.mxu0 0.0
    %3109 = vmatprep.subr.mxu0 0.0
    %3110 = vmatpush1.msra.mxu0 0.0
    %3111 = vmatprep.subr.mxu0 0.0
    %3112 = vmatpush1.msra.mxu0 0.0
    %3113 = vmatprep.subr.mxu0 0.0
    %3114 = vmatpush1.msra.mxu0 0.0
    %3115 = vmatprep.subr.mxu0 0.0
    %3116 = vmatpush1.msra.mxu0 0.0
    %3117 = vmatprep.subr.mxu0 0.0
    %3118 = vmatpush1.msra.mxu0 0.0
    %3119 = vmatprep.subr.mxu0 0.0
    %3120 = vmatpush1.msra.mxu0 0.0
    %3121 = vmatprep.subr.mxu0 0.0
    %3122 = vmatpush1.msra.mxu0 0.0
    %3123 = vmatprep.mubr.f32.mxu0 0.0
    %3124 = vmatmul.mubr.f32.gmra.mrb[0].mxu0 %v3055
    %v3125 = vpop.f32.mrb[0].mxu0
    %v3126 = vadd.f32 0.0, %v3125
    %v3127 = vpop.f32.mrb[0].mxu0
    %3128 = vdwg.mxu0
    %3129 = vrot.lane.b32.xlu0 %v2963, 120
    %v3130 = vpop.permute.xlu0 %3129
    %3131 = vrot.lane.b32.xlu0 %v2963, 88
    %v3132 = vpop.permute.xlu0 %3131
    %v3133 = vsel %vm426, %v3130, 0
    %v3135 = vsel %vm426, %v3132, 0
    %3137 = vmatprep.subr.mxu0 0.0
    %3138 = vmatpush1.xpose.msra.mxu0 %v3135
    %3139 = vmatprep.subr.mxu0 0.0
    %3140 = vmatpush1.xpose.msra.mxu0 0.0
    %3141 = vmatprep.subr.mxu0 0.0
    %3142 = vmatpush1.xpose.msra.mxu0 0.0
    %3143 = vmatprep.subr.mxu0 0.0
    %3144 = vmatpush1.xpose.msra.mxu0 0.0
    %3145 = vmatprep.subr.mxu0 0.0
    %3146 = vmatpush1.xpose.msra.mxu0 0.0
    %3147 = vmatprep.subr.mxu0 0.0
    %3148 = vmatpush1.xpose.msra.mxu0 0.0
    %3149 = vmatprep.subr.mxu0 0.0
    %3150 = vmatpush1.xpose.msra.mxu0 0.0
    %3151 = vmatprep.subr.mxu0 0.0
    %3152 = vmatpush1.xpose.msra.mxu0 0.0
    %3153 = vmatprep.subr.mxu0 0.0
    %3154 = vmatpush1.xpose.msra.mxu0 0.0
    %3155 = vmatprep.subr.mxu0 0.0
    %3156 = vmatpush1.xpose.msra.mxu0 0.0
    %3157 = vmatprep.subr.mxu0 0.0
    %3158 = vmatpush1.xpose.msra.mxu0 0.0
    %3159 = vmatprep.subr.mxu0 0.0
    %3160 = vmatpush1.xpose.msra.mxu0 0.0
    %3161 = vmatprep.subr.mxu0 0.0
    %3162 = vmatpush1.xpose.msra.mxu0 0.0
    %3163 = vmatprep.subr.mxu0 0.0
    %3164 = vmatpush1.xpose.msra.mxu0 0.0
    %3165 = vmatprep.subr.mxu0 0.0
    %3166 = vmatpush1.xpose.msra.mxu0 0.0
    %3167 = vmatprep.subr.mxu0 0.0
    %3168 = vmatpush1.xpose.msra.mxu0 0.0
    %3169 = vmatprep.subr.mxu0 0.0
    %3170 = vmatpush1.xpose.msra.mxu0 0.0
    %3171 = vmatprep.subr.mxu0 0.0
    %3172 = vmatpush1.xpose.msra.mxu0 0.0
    %3173 = vmatprep.subr.mxu0 0.0
    %3174 = vmatpush1.xpose.msra.mxu0 0.0
    %3175 = vmatprep.subr.mxu0 0.0
    %3176 = vmatpush1.xpose.msra.mxu0 0.0
    %3177 = vmatprep.subr.mxu0 0.0
    %3178 = vmatpush1.xpose.msra.mxu0 0.0
    %3179 = vmatprep.subr.mxu0 0.0
    %3180 = vmatpush1.xpose.msra.mxu0 0.0
    %3181 = vmatprep.subr.mxu0 0.0
    %3182 = vmatpush1.xpose.msra.mxu0 0.0
    %3183 = vmatprep.subr.mxu0 0.0
    %3184 = vmatpush1.xpose.msra.mxu0 0.0
    %3185 = vmatprep.subr.mxu0 0.0
    %3186 = vmatpush1.xpose.msra.mxu0 0.0
    %3187 = vmatprep.subr.mxu0 0.0
    %3188 = vmatpush1.xpose.msra.mxu0 0.0
    %3189 = vmatprep.subr.mxu0 0.0
    %3190 = vmatpush1.xpose.msra.mxu0 0.0
    %3191 = vmatprep.subr.mxu0 0.0
    %3192 = vmatpush1.xpose.msra.mxu0 0.0
    %3193 = vmatprep.subr.mxu0 0.0
    %3194 = vmatpush1.xpose.msra.mxu0 0.0
    %3195 = vmatprep.subr.mxu0 0.0
    %3196 = vmatpush1.xpose.msra.mxu0 0.0
    %3197 = vmatprep.subr.mxu0 0.0
    %3198 = vmatpush1.xpose.msra.mxu0 0.0
    %3199 = vmatprep.subr.mxu0 0.0
    %3200 = vmatpush1.xpose.msra.mxu0 0.0
    %3201 = vmatprep.mubr.f32.mxu0 0.0
    %3202 = vmatmul.mubr.f32.gmra.mrb[0].mxu0 %v3133
    %v3203 = vpop.f32.mrb[0].mxu0
    %v3204 = vadd.f32 0.0, %v3203
    %v3205 = vpop.f32.mrb[0].mxu0
    %3206 = vdwg.mxu0
    %v3207 = vmul.f32 %v3204, 0.35355338
    %v3208 = vsel %vm502, %v3207, -inf
    %3209 = vmax.xlane.f32.xlu0 %v3208
    %v3210 = vpop.xlane.xlu0 %3209
    %v3211 = vsub.f32 %v3207, %v3210
    %v3212 = vmul.f32 %v3211, 1.442695
    %v3213 = vpow.pop %v3212
    %v3214 = vsel %vm502, %v3213, 0.0
    %3215 = vadd.xlane.f32.xlu0 %v3214
    %v3216 = vpop.xlane.xlu0 %3215
    %v3217 = vrcp.pop %v3216
    %v3218 = vmul.f32 %v3213, %v3217
    %3219 = vrot.lane.b32.xlu0 %v2963, 56
    %v3220 = vpop.permute.xlu0 %3219
    %v3222 = vsel %vm516, %v3218, 0
    %v3224 = vsel %vm280, %v3220, 0
    %3226 = vmatprep.subr.mxu0 0.0
    %3227 = vmatpush1.msra.mxu0 %v3224
    %3228 = vmatprep.subr.mxu0 0.0
    %3229 = vmatpush1.msra.mxu0 0.0
    %3230 = vmatprep.subr.mxu0 0.0
    %3231 = vmatpush1.msra.mxu0 0.0
    %3232 = vmatprep.subr.mxu0 0.0
    %3233 = vmatpush1.msra.mxu0 0.0
    %3234 = vmatprep.subr.mxu0 0.0
    %3235 = vmatpush1.msra.mxu0 0.0
    %3236 = vmatprep.subr.mxu0 0.0
    %3237 = vmatpush1.msra.mxu0 0.0
    %3238 = vmatprep.subr.mxu0 0.0
    %3239 = vmatpush1.msra.mxu0 0.0
    %3240 = vmatprep.subr.mxu0 0.0
    %3241 = vmatpush1.msra.mxu0 0.0
    %3242 = vmatprep.subr.mxu0 0.0
    %3243 = vmatpush1.msra.mxu0 0.0
    %3244 = vmatprep.subr.mxu0 0.0
    %3245 = vmatpush1.msra.mxu0 0.0
    %3246 = vmatprep.subr.mxu0 0.0
    %3247 = vmatpush1.msra.mxu0 0.0
    %3248 = vmatprep.subr.mxu0 0.0
    %3249 = vmatpush1.msra.mxu0 0.0
    %3250 = vmatprep.subr.mxu0 0.0
    %3251 = vmatpush1.msra.mxu0 0.0
    %3252 = vmatprep.subr.mxu0 0.0
    %3253 = vmatpush1.msra.mxu0 0.0
    %3254 = vmatprep.subr.mxu0 0.0
    %3255 = vmatpush1.msra.mxu0 0.0
    %3256 = vmatprep.subr.mxu0 0.0
    %3257 = vmatpush1.msra.mxu0 0.0
    %3258 = vmatprep.subr.mxu0 0.0
    %3259 = vmatpush1.msra.mxu0 0.0
    %3260 = vmatprep.subr.mxu0 0.0
    %3261 = vmatpush1.msra.mxu0 0.0
    %3262 = vmatprep.subr.mxu0 0.0
    %3263 = vmatpush1.msra.mxu0 0.0
    %3264 = vmatprep.subr.mxu0 0.0
    %3265 = vmatpush1.msra.mxu0 0.0
    %3266 = vmatprep.subr.mxu0 0.0
    %3267 = vmatpush1.msra.mxu0 0.0
    %3268 = vmatprep.subr.mxu0 0.0
    %3269 = vmatpush1.msra.mxu0 0.0
    %3270 = vmatprep.subr.mxu0 0.0
    %3271 = vmatpush1.msra.mxu0 0.0
    %3272 = vmatprep.subr.mxu0 0.0
    %3273 = vmatpush1.msra.mxu0 0.0
    %3274 = vmatprep.subr.mxu0 0.0
    %3275 = vmatpush1.msra.mxu0 0.0
    %3276 = vmatprep.subr.mxu0 0.0
    %3277 = vmatpush1.msra.mxu0 0.0
    %3278 = vmatprep.subr.mxu0 0.0
    %3279 = vmatpush1.msra.mxu0 0.0
    %3280 = vmatprep.subr.mxu0 0.0
    %3281 = vmatpush1.msra.mxu0 0.0
    %3282 = vmatprep.subr.mxu0 0.0
    %3283 = vmatpush1.msra.mxu0 0.0
    %3284 = vmatprep.subr.mxu0 0.0
    %3285 = vmatpush1.msra.mxu0 0.0
    %3286 = vmatprep.subr.mxu0 0.0
    %3287 = vmatpush1.msra.mxu0 0.0
    %3288 = vmatprep.subr.mxu0 0.0
    %3289 = vmatpush1.msra.mxu0 0.0
    %3290 = vmatprep.mubr.f32.mxu0 0.0
    %3291 = vmatmul.mubr.f32.gmra.mrb[0].mxu0 %v3222
    %v3292 = vpop.f32.mrb[0].mxu0
    %v3293 = vadd.f32 0.0, %v3292
    %v3294 = vpop.f32.mrb[0].mxu0
    %3295 = vdwg.mxu0
    %3296 = vrot.lane.b32.xlu0 %v2963, 112
    %v3297 = vpop.permute.xlu0 %3296
    %3298 = vrot.lane.b32.xlu0 %v2963, 80
    %v3299 = vpop.permute.xlu0 %3298
    %v3300 = vsel %vm426, %v3297, 0
    %v3302 = vsel %vm426, %v3299, 0
    %3304 = vmatprep.subr.mxu0 0.0
    %3305 = vmatpush1.xpose.msra.mxu0 %v3302
    %3306 = vmatprep.subr.mxu0 0.0
    %3307 = vmatpush1.xpose.msra.mxu0 0.0
    %3308 = vmatprep.subr.mxu0 0.0
    %3309 = vmatpush1.xpose.msra.mxu0 0.0
    %3310 = vmatprep.subr.mxu0 0.0
    %3311 = vmatpush1.xpose.msra.mxu0 0.0
    %3312 = vmatprep.subr.mxu0 0.0
    %3313 = vmatpush1.xpose.msra.mxu0 0.0
    %3314 = vmatprep.subr.mxu0 0.0
    %3315 = vmatpush1.xpose.msra.mxu0 0.0
    %3316 = vmatprep.subr.mxu0 0.0
    %3317 = vmatpush1.xpose.msra.mxu0 0.0
    %3318 = vmatprep.subr.mxu0 0.0
    %3319 = vmatpush1.xpose.msra.mxu0 0.0
    %3320 = vmatprep.subr.mxu0 0.0
    %3321 = vmatpush1.xpose.msra.mxu0 0.0
    %3322 = vmatprep.subr.mxu0 0.0
    %3323 = vmatpush1.xpose.msra.mxu0 0.0
    %3324 = vmatprep.subr.mxu0 0.0
    %3325 = vmatpush1.xpose.msra.mxu0 0.0
    %3326 = vmatprep.subr.mxu0 0.0
    %3327 = vmatpush1.xpose.msra.mxu0 0.0
    %3328 = vmatprep.subr.mxu0 0.0
    %3329 = vmatpush1.xpose.msra.mxu0 0.0
    %3330 = vmatprep.subr.mxu0 0.0
    %3331 = vmatpush1.xpose.msra.mxu0 0.0
    %3332 = vmatprep.subr.mxu0 0.0
    %3333 = vmatpush1.xpose.msra.mxu0 0.0
    %3334 = vmatprep.subr.mxu0 0.0
    %3335 = vmatpush1.xpose.msra.mxu0 0.0
    %3336 = vmatprep.subr.mxu0 0.0
    %3337 = vmatpush1.xpose.msra.mxu0 0.0
    %3338 = vmatprep.subr.mxu0 0.0
    %3339 = vmatpush1.xpose.msra.mxu0 0.0
    %3340 = vmatprep.subr.mxu0 0.0
    %3341 = vmatpush1.xpose.msra.mxu0 0.0
    %3342 = vmatprep.subr.mxu0 0.0
    %3343 = vmatpush1.xpose.msra.mxu0 0.0
    %3344 = vmatprep.subr.mxu0 0.0
    %3345 = vmatpush1.xpose.msra.mxu0 0.0
    %3346 = vmatprep.subr.mxu0 0.0
    %3347 = vmatpush1.xpose.msra.mxu0 0.0
    %3348 = vmatprep.subr.mxu0 0.0
    %3349 = vmatpush1.xpose.msra.mxu0 0.0
    %3350 = vmatprep.subr.mxu0 0.0
    %3351 = vmatpush1.xpose.msra.mxu0 0.0
    %3352 = vmatprep.subr.mxu0 0.0
    %3353 = vmatpush1.xpose.msra.mxu0 0.0
    %3354 = vmatprep.subr.mxu0 0.0
    %3355 = vmatpush1.xpose.msra.mxu0 0.0
    %3356 = vmatprep.subr.mxu0 0.0
    %3357 = vmatpush1.xpose.msra.mxu0 0.0
    %3358 = vmatprep.subr.mxu0 0.0
    %3359 = vmatpush1.xpose.msra.mxu0 0.0
    %3360 = vmatprep.subr.mxu0 0.0
    %3361 = vmatpush1.xpose.msra.mxu0 0.0
    %3362 = vmatprep.subr.mxu0 0.0
    %3363 = vmatpush1.xpose.msra.mxu0 0.0
    %3364 = vmatprep.subr.mxu0 0.0
    %3365 = vmatpush1.xpose.msra.mxu0 0.0
    %3366 = vmatprep.subr.mxu0 0.0
    %3367 = vmatpush1.xpose.msra.mxu0 0.0
    %3368 = vmatprep.mubr.f32.mxu0 0.0
    %3369 = vmatmul.mubr.f32.gmra.mrb[0].mxu0 %v3300
    %v3370 = vpop.f32.mrb[0].mxu0
    %v3371 = vadd.f32 0.0, %v3370
    %v3372 = vpop.f32.mrb[0].mxu0
    %3373 = vdwg.mxu0
    %v3374 = vmul.f32 %v3371, 0.35355338
    %v3375 = vsel %vm502, %v3374, -inf
    %3376 = vmax.xlane.f32.xlu0 %v3375
    %v3377 = vpop.xlane.xlu0 %3376
    %v3378 = vsub.f32 %v3374, %v3377
    %v3379 = vmul.f32 %v3378, 1.442695
    %v3380 = vpow.pop %v3379
    %v3381 = vsel %vm502, %v3380, 0.0
    %3382 = vadd.xlane.f32.xlu0 %v3381
    %v3383 = vpop.xlane.xlu0 %3382
    %v3384 = vrcp.pop %v3383
    %v3385 = vmul.f32 %v3380, %v3384
    %3386 = vrot.lane.b32.xlu0 %v2963, 48
    %v3387 = vpop.permute.xlu0 %3386
    %v3389 = vsel %vm516, %v3385, 0
    %v3391 = vsel %vm280, %v3387, 0
    %3393 = vmatprep.subr.mxu0 0.0
    %3394 = vmatpush1.msra.mxu0 %v3391
    %3395 = vmatprep.subr.mxu0 0.0
    %3396 = vmatpush1.msra.mxu0 0.0
    %3397 = vmatprep.subr.mxu0 0.0
    %3398 = vmatpush1.msra.mxu0 0.0
    %3399 = vmatprep.subr.mxu0 0.0
    %3400 = vmatpush1.msra.mxu0 0.0
    %3401 = vmatprep.subr.mxu0 0.0
    %3402 = vmatpush1.msra.mxu0 0.0
    %3403 = vmatprep.subr.mxu0 0.0
    %3404 = vmatpush1.msra.mxu0 0.0
    %3405 = vmatprep.subr.mxu0 0.0
    %3406 = vmatpush1.msra.mxu0 0.0
    %3407 = vmatprep.subr.mxu0 0.0
    %3408 = vmatpush1.msra.mxu0 0.0
    %3409 = vmatprep.subr.mxu0 0.0
    %3410 = vmatpush1.msra.mxu0 0.0
    %3411 = vmatprep.subr.mxu0 0.0
    %3412 = vmatpush1.msra.mxu0 0.0
    %3413 = vmatprep.subr.mxu0 0.0
    %3414 = vmatpush1.msra.mxu0 0.0
    %3415 = vmatprep.subr.mxu0 0.0
    %3416 = vmatpush1.msra.mxu0 0.0
    %3417 = vmatprep.subr.mxu0 0.0
    %3418 = vmatpush1.msra.mxu0 0.0
    %3419 = vmatprep.subr.mxu0 0.0
    %3420 = vmatpush1.msra.mxu0 0.0
    %3421 = vmatprep.subr.mxu0 0.0
    %3422 = vmatpush1.msra.mxu0 0.0
    %3423 = vmatprep.subr.mxu0 0.0
    %3424 = vmatpush1.msra.mxu0 0.0
    %3425 = vmatprep.subr.mxu0 0.0
    %3426 = vmatpush1.msra.mxu0 0.0
    %3427 = vmatprep.subr.mxu0 0.0
    %3428 = vmatpush1.msra.mxu0 0.0
    %3429 = vmatprep.subr.mxu0 0.0
    %3430 = vmatpush1.msra.mxu0 0.0
    %3431 = vmatprep.subr.mxu0 0.0
    %3432 = vmatpush1.msra.mxu0 0.0
    %3433 = vmatprep.subr.mxu0 0.0
    %3434 = vmatpush1.msra.mxu0 0.0
    %3435 = vmatprep.subr.mxu0 0.0
    %3436 = vmatpush1.msra.mxu0 0.0
    %3437 = vmatprep.subr.mxu0 0.0
    %3438 = vmatpush1.msra.mxu0 0.0
    %3439 = vmatprep.subr.mxu0 0.0
    %3440 = vmatpush1.msra.mxu0 0.0
    %3441 = vmatprep.subr.mxu0 0.0
    %3442 = vmatpush1.msra.mxu0 0.0
    %3443 = vmatprep.subr.mxu0 0.0
    %3444 = vmatpush1.msra.mxu0 0.0
    %3445 = vmatprep.subr.mxu0 0.0
    %3446 = vmatpush1.msra.mxu0 0.0
    %3447 = vmatprep.subr.mxu0 0.0
    %3448 = vmatpush1.msra.mxu0 0.0
    %3449 = vmatprep.subr.mxu0 0.0
    %3450 = vmatpush1.msra.mxu0 0.0
    %3451 = vmatprep.subr.mxu0 0.0
    %3452 = vmatpush1.msra.mxu0 0.0
    %3453 = vmatprep.subr.mxu0 0.0
    %3454 = vmatpush1.msra.mxu0 0.0
    %3455 = vmatprep.subr.mxu0 0.0
    %3456 = vmatpush1.msra.mxu0 0.0
    %3457 = vmatprep.mubr.f32.mxu0 0.0
    %3458 = vmatmul.mubr.f32.gmra.mrb[0].mxu0 %v3389
    %v3459 = vpop.f32.mrb[0].mxu0
    %v3460 = vadd.f32 0.0, %v3459
    %v3461 = vpop.f32.mrb[0].mxu0
    %3462 = vdwg.mxu0
    %3463 = vrot.lane.b32.xlu0 %v2963, 104
    %v3464 = vpop.permute.xlu0 %3463
    %3465 = vrot.lane.b32.xlu0 %v2963, 72
    %v3466 = vpop.permute.xlu0 %3465
    %v3467 = vsel %vm426, %v3464, 0
    %v3469 = vsel %vm426, %v3466, 0
    %3471 = vmatprep.subr.mxu0 0.0
    %3472 = vmatpush1.xpose.msra.mxu0 %v3469
    %3473 = vmatprep.subr.mxu0 0.0
    %3474 = vmatpush1.xpose.msra.mxu0 0.0
    %3475 = vmatprep.subr.mxu0 0.0
    %3476 = vmatpush1.xpose.msra.mxu0 0.0
    %3477 = vmatprep.subr.mxu0 0.0
    %3478 = vmatpush1.xpose.msra.mxu0 0.0
    %3479 = vmatprep.subr.mxu0 0.0
    %3480 = vmatpush1.xpose.msra.mxu0 0.0
    %3481 = vmatprep.subr.mxu0 0.0
    %3482 = vmatpush1.xpose.msra.mxu0 0.0
    %3483 = vmatprep.subr.mxu0 0.0
    %3484 = vmatpush1.xpose.msra.mxu0 0.0
    %3485 = vmatprep.subr.mxu0 0.0
    %3486 = vmatpush1.xpose.msra.mxu0 0.0
    %3487 = vmatprep.subr.mxu0 0.0
    %3488 = vmatpush1.xpose.msra.mxu0 0.0
    %3489 = vmatprep.subr.mxu0 0.0
    %3490 = vmatpush1.xpose.msra.mxu0 0.0
    %3491 = vmatprep.subr.mxu0 0.0
    %3492 = vmatpush1.xpose.msra.mxu0 0.0
    %3493 = vmatprep.subr.mxu0 0.0
    %3494 = vmatpush1.xpose.msra.mxu0 0.0
    %3495 = vmatprep.subr.mxu0 0.0
    %3496 = vmatpush1.xpose.msra.mxu0 0.0
    %3497 = vmatprep.subr.mxu0 0.0
    %3498 = vmatpush1.xpose.msra.mxu0 0.0
    %3499 = vmatprep.subr.mxu0 0.0
    %3500 = vmatpush1.xpose.msra.mxu0 0.0
    %3501 = vmatprep.subr.mxu0 0.0
    %3502 = vmatpush1.xpose.msra.mxu0 0.0
    %3503 = vmatprep.subr.mxu0 0.0
    %3504 = vmatpush1.xpose.msra.mxu0 0.0
    %3505 = vmatprep.subr.mxu0 0.0
    %3506 = vmatpush1.xpose.msra.mxu0 0.0
    %3507 = vmatprep.subr.mxu0 0.0
    %3508 = vmatpush1.xpose.msra.mxu0 0.0
    %3509 = vmatprep.subr.mxu0 0.0
    %3510 = vmatpush1.xpose.msra.mxu0 0.0
    %3511 = vmatprep.subr.mxu0 0.0
    %3512 = vmatpush1.xpose.msra.mxu0 0.0
    %3513 = vmatprep.subr.mxu0 0.0
    %3514 = vmatpush1.xpose.msra.mxu0 0.0
    %3515 = vmatprep.subr.mxu0 0.0
    %3516 = vmatpush1.xpose.msra.mxu0 0.0
    %3517 = vmatprep.subr.mxu0 0.0
    %3518 = vmatpush1.xpose.msra.mxu0 0.0
    %3519 = vmatprep.subr.mxu0 0.0
    %3520 = vmatpush1.xpose.msra.mxu0 0.0
    %3521 = vmatprep.subr.mxu0 0.0
    %3522 = vmatpush1.xpose.msra.mxu0 0.0
    %3523 = vmatprep.subr.mxu0 0.0
    %3524 = vmatpush1.xpose.msra.mxu0 0.0
    %3525 = vmatprep.subr.mxu0 0.0
    %3526 = vmatpush1.xpose.msra.mxu0 0.0
    %3527 = vmatprep.subr.mxu0 0.0
    %3528 = vmatpush1.xpose.msra.mxu0 0.0
    %3529 = vmatprep.subr.mxu0 0.0
    %3530 = vmatpush1.xpose.msra.mxu0 0.0
    %3531 = vmatprep.subr.mxu0 0.0
    %3532 = vmatpush1.xpose.msra.mxu0 0.0
    %3533 = vmatprep.subr.mxu0 0.0
    %3534 = vmatpush1.xpose.msra.mxu0 0.0
    %3535 = vmatprep.mubr.f32.mxu0 0.0
    %3536 = vmatmul.mubr.f32.gmra.mrb[0].mxu0 %v3467
    %v3537 = vpop.f32.mrb[0].mxu0
    %v3538 = vadd.f32 0.0, %v3537
    %v3539 = vpop.f32.mrb[0].mxu0
    %3540 = vdwg.mxu0
    %v3541 = vmul.f32 %v3538, 0.35355338
    %v3542 = vsel %vm502, %v3541, -inf
    %3543 = vmax.xlane.f32.xlu0 %v3542
    %v3544 = vpop.xlane.xlu0 %3543
    %v3545 = vsub.f32 %v3541, %v3544
    %v3546 = vmul.f32 %v3545, 1.442695
    %v3547 = vpow.pop %v3546
    %v3548 = vsel %vm502, %v3547, 0.0
    %3549 = vadd.xlane.f32.xlu0 %v3548
    %v3550 = vpop.xlane.xlu0 %3549
    %v3551 = vrcp.pop %v3550
    %v3552 = vmul.f32 %v3547, %v3551
    %3553 = vrot.lane.b32.xlu0 %v2963, 40
    %v3554 = vpop.permute.xlu0 %3553
    %v3556 = vsel %vm516, %v3552, 0
    %v3558 = vsel %vm280, %v3554, 0
    %3560 = vmatprep.subr.mxu0 0.0
    %3561 = vmatpush1.msra.mxu0 %v3558
    %3562 = vmatprep.subr.mxu0 0.0
    %3563 = vmatpush1.msra.mxu0 0.0
    %3564 = vmatprep.subr.mxu0 0.0
    %3565 = vmatpush1.msra.mxu0 0.0
    %3566 = vmatprep.subr.mxu0 0.0
    %3567 = vmatpush1.msra.mxu0 0.0
    %3568 = vmatprep.subr.mxu0 0.0
    %3569 = vmatpush1.msra.mxu0 0.0
    %3570 = vmatprep.subr.mxu0 0.0
    %3571 = vmatpush1.msra.mxu0 0.0
    %3572 = vmatprep.subr.mxu0 0.0
    %3573 = vmatpush1.msra.mxu0 0.0
    %3574 = vmatprep.subr.mxu0 0.0
    %3575 = vmatpush1.msra.mxu0 0.0
    %3576 = vmatprep.subr.mxu0 0.0
    %3577 = vmatpush1.msra.mxu0 0.0
    %3578 = vmatprep.subr.mxu0 0.0
    %3579 = vmatpush1.msra.mxu0 0.0
    %3580 = vmatprep.subr.mxu0 0.0
    %3581 = vmatpush1.msra.mxu0 0.0
    %3582 = vmatprep.subr.mxu0 0.0
    %3583 = vmatpush1.msra.mxu0 0.0
    %3584 = vmatprep.subr.mxu0 0.0
    %3585 = vmatpush1.msra.mxu0 0.0
    %3586 = vmatprep.subr.mxu0 0.0
    %3587 = vmatpush1.msra.mxu0 0.0
    %3588 = vmatprep.subr.mxu0 0.0
    %3589 = vmatpush1.msra.mxu0 0.0
    %3590 = vmatprep.subr.mxu0 0.0
    %3591 = vmatpush1.msra.mxu0 0.0
    %3592 = vmatprep.subr.mxu0 0.0
    %3593 = vmatpush1.msra.mxu0 0.0
    %3594 = vmatprep.subr.mxu0 0.0
    %3595 = vmatpush1.msra.mxu0 0.0
    %3596 = vmatprep.subr.mxu0 0.0
    %3597 = vmatpush1.msra.mxu0 0.0
    %3598 = vmatprep.subr.mxu0 0.0
    %3599 = vmatpush1.msra.mxu0 0.0
    %3600 = vmatprep.subr.mxu0 0.0
    %3601 = vmatpush1.msra.mxu0 0.0
    %3602 = vmatprep.subr.mxu0 0.0
    %3603 = vmatpush1.msra.mxu0 0.0
    %3604 = vmatprep.subr.mxu0 0.0
    %3605 = vmatpush1.msra.mxu0 0.0
    %3606 = vmatprep.subr.mxu0 0.0
    %3607 = vmatpush1.msra.mxu0 0.0
    %3608 = vmatprep.subr.mxu0 0.0
    %3609 = vmatpush1.msra.mxu0 0.0
    %3610 = vmatprep.subr.mxu0 0.0
    %3611 = vmatpush1.msra.mxu0 0.0
    %3612 = vmatprep.subr.mxu0 0.0
    %3613 = vmatpush1.msra.mxu0 0.0
    %3614 = vmatprep.subr.mxu0 0.0
    %3615 = vmatpush1.msra.mxu0 0.0
    %3616 = vmatprep.subr.mxu0 0.0
    %3617 = vmatpush1.msra.mxu0 0.0
    %3618 = vmatprep.subr.mxu0 0.0
    %3619 = vmatpush1.msra.mxu0 0.0
    %3620 = vmatprep.subr.mxu0 0.0
    %3621 = vmatpush1.msra.mxu0 0.0
    %3622 = vmatprep.subr.mxu0 0.0
    %3623 = vmatpush1.msra.mxu0 0.0
    %3624 = vmatprep.mubr.f32.mxu0 0.0
    %3625 = vmatmul.mubr.f32.gmra.mrb[0].mxu0 %v3556
    %v3626 = vpop.f32.mrb[0].mxu0
    %v3627 = vadd.f32 0.0, %v3626
    %v3628 = vpop.f32.mrb[0].mxu0
    %3629 = vdwg.mxu0
    %3631 = vrot.lane.b32.xlu0 %v3293, 8
    %v3632 = vpop.permute.xlu0 %3631
    %3635 = vrot.lane.b32.xlu0 %v3460, 16
    %v3636 = vpop.permute.xlu0 %3635
    %3639 = vrot.lane.b32.xlu0 %v3627, 24
    %v3640 = vpop.permute.xlu0 %3639
    %v3642 = vsel %vm426, %v3126, %v3632
    %v3643 = vsel %vm1106, %v3642, %v3636
    %v3644 = vsel %vm1108, %v3643, %v3640
    %v3646 = vrot.slane %v3644, 3
    %v3648 = vsel %vm280, %v2959, %v3646
    %v3649 = vld [vmem:[%s43] sm:$0xff]
    %v3650 = vld [vmem:[%s43 + $0x8] sm:$0xff]
    %v3651 = vld [vmem:[%s43 + $0x10] sm:$0xff]
    %v3652 = vld [vmem:[%s43 + $0x18] sm:$0xff]
    %v3654 = vsel %vm286, %v3648, 0
    %v3656 = vsel %vm286, %v3646, 0
    %3658 = vmatprep.subr.mxu0 0.0
    %3659 = vmatpush1.msra.mxu0 %v3649
    %3660 = vmatprep.subr.mxu0 0.0
    %3661 = vmatpush1.msra.mxu0 %v3650
    %3662 = vmatprep.subr.mxu0 0.0
    %3663 = vmatpush1.msra.mxu0 %v3651
    %3664 = vmatprep.subr.mxu0 0.0
    %3665 = vmatpush1.msra.mxu0 %v3652
    %3666 = vmatprep.subr.mxu0 0.0
    %3667 = vmatpush1.msra.mxu0 0.0
    %3668 = vmatprep.subr.mxu0 0.0
    %3669 = vmatpush1.msra.mxu0 0.0
    %3670 = vmatprep.subr.mxu0 0.0
    %3671 = vmatpush1.msra.mxu0 0.0
    %3672 = vmatprep.subr.mxu0 0.0
    %3673 = vmatpush1.msra.mxu0 0.0
    %3674 = vmatprep.subr.mxu0 0.0
    %3675 = vmatpush1.msra.mxu0 0.0
    %3676 = vmatprep.subr.mxu0 0.0
    %3677 = vmatpush1.msra.mxu0 0.0
    %3678 = vmatprep.subr.mxu0 0.0
    %3679 = vmatpush1.msra.mxu0 0.0
    %3680 = vmatprep.subr.mxu0 0.0
    %3681 = vmatpush1.msra.mxu0 0.0
    %3682 = vmatprep.subr.mxu0 0.0
    %3683 = vmatpush1.msra.mxu0 0.0
    %3684 = vmatprep.subr.mxu0 0.0
    %3685 = vmatpush1.msra.mxu0 0.0
    %3686 = vmatprep.subr.mxu0 0.0
    %3687 = vmatpush1.msra.mxu0 0.0
    %3688 = vmatprep.subr.mxu0 0.0
    %3689 = vmatpush1.msra.mxu0 0.0
    %3690 = vmatprep.subr.mxu0 0.0
    %3691 = vmatpush1.msra.mxu0 0.0
    %3692 = vmatprep.subr.mxu0 0.0
    %3693 = vmatpush1.msra.mxu0 0.0
    %3694 = vmatprep.subr.mxu0 0.0
    %3695 = vmatpush1.msra.mxu0 0.0
    %3696 = vmatprep.subr.mxu0 0.0
    %3697 = vmatpush1.msra.mxu0 0.0
    %3698 = vmatprep.subr.mxu0 0.0
    %3699 = vmatpush1.msra.mxu0 0.0
    %3700 = vmatprep.subr.mxu0 0.0
    %3701 = vmatpush1.msra.mxu0 0.0
    %3702 = vmatprep.subr.mxu0 0.0
    %3703 = vmatpush1.msra.mxu0 0.0
    %3704 = vmatprep.subr.mxu0 0.0
    %3705 = vmatpush1.msra.mxu0 0.0
    %3706 = vmatprep.subr.mxu0 0.0
    %3707 = vmatpush1.msra.mxu0 0.0
    %3708 = vmatprep.subr.mxu0 0.0
    %3709 = vmatpush1.msra.mxu0 0.0
    %3710 = vmatprep.subr.mxu0 0.0
    %3711 = vmatpush1.msra.mxu0 0.0
    %3712 = vmatprep.subr.mxu0 0.0
    %3713 = vmatpush1.msra.mxu0 0.0
    %3714 = vmatprep.subr.mxu0 0.0
    %3715 = vmatpush1.msra.mxu0 0.0
    %3716 = vmatprep.subr.mxu0 0.0
    %3717 = vmatpush1.msra.mxu0 0.0
    %3718 = vmatprep.subr.mxu0 0.0
    %3719 = vmatpush1.msra.mxu0 0.0
    %3720 = vmatprep.subr.mxu0 0.0
    %3721 = vmatpush1.msra.mxu0 0.0
    %3722 = vmatprep.mubr.f32.mxu0 0.0
    %3723 = vmatmul.mubr.f32.gmra.mrb[0].mxu0 %v3654
    %v3724 = vpop.f32.mrb[0].mxu0
    %v3725 = vadd.f32 0.0, %v3724
    %v3726 = vpop.f32.mrb[0].mxu0
    %3727 = vmatprep.mubr.f32.mxu0 0.0
    %3728 = vmatmul.mubr.f32.gmra.mrb[0].mxu0 %v3656
    %v3729 = vpop.f32.mrb[0].mxu0
    %v3730 = vadd.f32 0.0, %v3729
    %v3731 = vpop.f32.mrb[0].mxu0
    %3732 = vdwg.mxu0
    %v3733 = vadd.f32 %v2140, %v3725
    %v3734 = vadd.f32 %v2141, %v3730
    %v3735 = vld [vmem:[%s45] sm:$0x1]
    %v3737 = vlaneseq
    %v3738 = vshrl.u32 %v3737, 7
    %v3739 = vsub.s32 0, %v3738
    %v3740 = vrot.slane %v3735, %v3739
    %v3742 = vadd.f32 %v3733, %v3740
    %v3743 = vadd.f32 %v3734, %v3740
    %v3744 = vld [vmem:[%s47] sm:$0x1]
    %v3745 = vld [vmem:[%s49] sm:$0x1]
    %v3746 = vsel %vm286, %v3742, 0.0
    %3747 = vadd.xlane.f32.xlu0 %v3746
    %v3748 = vpop.xlane.xlu0 %3747
    %v3749 = vsel %vm290, %v3743, 0.0
    %3750 = vadd.xlane.f32.xlu0 %v3749
    %v3751 = vpop.xlane.xlu0 %3750
    %v3752 = vmul.f32 %v3748, %v294
    %v3753 = vmul.f32 %v3751, %v294
    %v3754 = vsub.f32 %v3742, %v3752
    %v3755 = vsub.f32 %v3743, %v3753
    %v3756 = vmul.f32 %v3754, %v3754
    %v3757 = vmul.f32 %v3755, %v3755
    %v3758 = vsel %vm286, %v3756, 0.0
    %3759 = vadd.xlane.f32.xlu0 %v3758
    %v3760 = vpop.xlane.xlu0 %3759
    %v3761 = vsel %vm290, %v3757, 0.0
    %3762 = vadd.xlane.f32.xlu0 %v3761
    %v3763 = vpop.xlane.xlu0 %3762
    %v3764 = vmul.f32 %v3760, %v294
    %v3765 = vmul.f32 %v3763, %v294
    %v3766 = vadd.f32 %v3764, 1e-12
    %v3767 = vadd.f32 %v3765, 1e-12
    %v3768 = vrsqrt.pop %v3766
    %v3769 = vrsqrt.pop %v3767
    %v3770 = vmul.f32 %v3754, %v3768
    %v3771 = vmul.f32 %v3755, %v3769
    %v3773 = vlaneseq
    %v3774 = vshrl.u32 %v3773, 7
    %v3775 = vsub.s32 0, %v3774
    %v3776 = vrot.slane %v3744, %v3775
    %v3778 = vmul.f32 %v3770, %v3776
    %v3779 = vmul.f32 %v3771, %v3776
    %v3781 = vlaneseq
    %v3782 = vshrl.u32 %v3781, 7
    %v3783 = vsub.s32 0, %v3782
    %v3784 = vrot.slane %v3745, %v3783
    %v3786 = vadd.f32 %v3778, %v3784
    %v3787 = vadd.f32 %v3779, %v3784
    %v3788 = vld [vmem:[%s51] sm:$0xff]
    %v3789 = vld [vmem:[%s51 + $0x8] sm:$0xff]
    %v3790 = vld [vmem:[%s51 + $0x10] sm:$0xff]
    %v3791 = vld [vmem:[%s51 + $0x18] sm:$0xff]
    %v3792 = vld [vmem:[%s53] sm:$0x1]
    %v3794 = vlaneseq
    %v3795 = vshrl.u32 %v3794, 7
    %v3796 = vsub.s32 0, %v3795
    %v3797 = vrot.slane %v3792, %v3796
    %v3800 = vsel %vm286, %v3786, 0
    %v3803 = vsel %vm286, %v3787, 0
    %3805 = vmatprep.subr.mxu0 0.0
    %3806 = vmatpush1.msra.mxu0 %v3788
    %3807 = vmatprep.subr.mxu0 0.0
    %3808 = vmatpush1.msra.mxu0 %v3789
    %3809 = vmatprep.subr.mxu0 0.0
    %3810 = vmatpush1.msra.mxu0 %v3790
    %3811 = vmatprep.subr.mxu0 0.0
    %3812 = vmatpush1.msra.mxu0 %v3791
    %3813 = vmatprep.subr.mxu0 0.0
    %3814 = vmatpush1.msra.mxu0 0.0
    %3815 = vmatprep.subr.mxu0 0.0
    %3816 = vmatpush1.msra.mxu0 0.0
    %3817 = vmatprep.subr.mxu0 0.0
    %3818 = vmatpush1.msra.mxu0 0.0
    %3819 = vmatprep.subr.mxu0 0.0
    %3820 = vmatpush1.msra.mxu0 0.0
    %3821 = vmatprep.subr.mxu0 0.0
    %3822 = vmatpush1.msra.mxu0 0.0
    %3823 = vmatprep.subr.mxu0 0.0
    %3824 = vmatpush1.msra.mxu0 0.0
    %3825 = vmatprep.subr.mxu0 0.0
    %3826 = vmatpush1.msra.mxu0 0.0
    %3827 = vmatprep.subr.mxu0 0.0
    %3828 = vmatpush1.msra.mxu0 0.0
    %3829 = vmatprep.subr.mxu0 0.0
    %3830 = vmatpush1.msra.mxu0 0.0
    %3831 = vmatprep.subr.mxu0 0.0
    %3832 = vmatpush1.msra.mxu0 0.0
    %3833 = vmatprep.subr.mxu0 0.0
    %3834 = vmatpush1.msra.mxu0 0.0
    %3835 = vmatprep.subr.mxu0 0.0
    %3836 = vmatpush1.msra.mxu0 0.0
    %3837 = vmatprep.subr.mxu0 0.0
    %3838 = vmatpush1.msra.mxu0 0.0
    %3839 = vmatprep.subr.mxu0 0.0
    %3840 = vmatpush1.msra.mxu0 0.0
    %3841 = vmatprep.subr.mxu0 0.0
    %3842 = vmatpush1.msra.mxu0 0.0
    %3843 = vmatprep.subr.mxu0 0.0
    %3844 = vmatpush1.msra.mxu0 0.0
    %3845 = vmatprep.subr.mxu0 0.0
    %3846 = vmatpush1.msra.mxu0 0.0
    %3847 = vmatprep.subr.mxu0 0.0
    %3848 = vmatpush1.msra.mxu0 0.0
    %3849 = vmatprep.subr.mxu0 0.0
    %3850 = vmatpush1.msra.mxu0 0.0
    %3851 = vmatprep.subr.mxu0 0.0
    %3852 = vmatpush1.msra.mxu0 0.0
    %3853 = vmatprep.subr.mxu0 0.0
    %3854 = vmatpush1.msra.mxu0 0.0
    %3855 = vmatprep.subr.mxu0 0.0
    %3856 = vmatpush1.msra.mxu0 0.0
    %3857 = vmatprep.subr.mxu0 0.0
    %3858 = vmatpush1.msra.mxu0 0.0
    %3859 = vmatprep.subr.mxu0 0.0
    %3860 = vmatpush1.msra.mxu0 0.0
    %3861 = vmatprep.subr.mxu0 0.0
    %3862 = vmatpush1.msra.mxu0 0.0
    %3863 = vmatprep.subr.mxu0 0.0
    %3864 = vmatpush1.msra.mxu0 0.0
    %3865 = vmatprep.subr.mxu0 0.0
    %3866 = vmatpush1.msra.mxu0 0.0
    %3867 = vmatprep.subr.mxu0 0.0
    %3868 = vmatpush1.msra.mxu0 0.0
    %3869 = vmatprep.mubr.f32.mxu0 0.0
    %3870 = vmatmul.mubr.f32.gmra.mrb[0].mxu0 %v3800
    %v3871 = vpop.f32.mrb[0].mxu0
    %v3872 = vadd.f32 %v3797, %v3871
    %v3873 = vpop.f32.mrb[0].mxu0
    %3874 = vmatprep.mubr.f32.mxu0 0.0
    %3875 = vmatmul.mubr.f32.gmra.mrb[0].mxu0 %v3803
    %v3876 = vpop.f32.mrb[0].mxu0
    %v3877 = vadd.f32 %v3797, %v3876
    %v3878 = vpop.f32.mrb[0].mxu0
    %3879 = vdwg.mxu0
    %v3880 = vmul.f32 %v3872, 0.5
    %v3881 = vmul.f32 %v3877, 0.5
    %v3882 = vmul.f32 %v3872, 0.70710677
    %v3883 = vmul.f32 %v3877, 0.70710677
    %v3884 = verf.f32.pop %v3882
    %v3885 = verf.f32.pop %v3883
    %v3886 = vadd.f32 %v3884, 1.0
    %v3887 = vadd.f32 %v3885, 1.0
    %v3888 = vmul.f32 %v3880, %v3886
    %v3889 = vmul.f32 %v3881, %v3887
    %v3890 = vld [vmem:[%s55] sm:$0xff]
    %v3891 = vld [vmem:[%s55 + $0x8] sm:$0xff]
    %v3892 = vld [vmem:[%s55 + $0x10] sm:$0xff]
    %v3893 = vld [vmem:[%s55 + $0x18] sm:$0xff]
    %v3894 = vld [vmem:[%s55 + $0x20] sm:$0xff]
    %v3895 = vld [vmem:[%s55 + $0x28] sm:$0xff]
    %v3896 = vld [vmem:[%s55 + $0x30] sm:$0xff]
    %v3897 = vld [vmem:[%s55 + $0x38] sm:$0xff]
    %v3899 = vsel %vm2049, %v3888, 0
    %v3902 = vsel %vm2049, %v3889, 0
    %3904 = vmatprep.subr.mxu0 0.0
    %3905 = vmatpush1.msra.mxu0 %v3890
    %3906 = vmatprep.subr.mxu0 0.0
    %3907 = vmatpush1.msra.mxu0 %v3891
    %3908 = vmatprep.subr.mxu0 0.0
    %3909 = vmatpush1.msra.mxu0 %v3892
    %3910 = vmatprep.subr.mxu0 0.0
    %3911 = vmatpush1.msra.mxu0 %v3893
    %3912 = vmatprep.subr.mxu0 0.0
    %3913 = vmatpush1.msra.mxu0 %v3894
    %3914 = vmatprep.subr.mxu0 0.0
    %3915 = vmatpush1.msra.mxu0 %v3895
    %3916 = vmatprep.subr.mxu0 0.0
    %3917 = vmatpush1.msra.mxu0 %v3896
    %3918 = vmatprep.subr.mxu0 0.0
    %3919 = vmatpush1.msra.mxu0 %v3897
    %3920 = vmatprep.subr.mxu0 0.0
    %3921 = vmatpush1.msra.mxu0 0.0
    %3922 = vmatprep.subr.mxu0 0.0
    %3923 = vmatpush1.msra.mxu0 0.0
    %3924 = vmatprep.subr.mxu0 0.0
    %3925 = vmatpush1.msra.mxu0 0.0
    %3926 = vmatprep.subr.mxu0 0.0
    %3927 = vmatpush1.msra.mxu0 0.0
    %3928 = vmatprep.subr.mxu0 0.0
    %3929 = vmatpush1.msra.mxu0 0.0
    %3930 = vmatprep.subr.mxu0 0.0
    %3931 = vmatpush1.msra.mxu0 0.0
    %3932 = vmatprep.subr.mxu0 0.0
    %3933 = vmatpush1.msra.mxu0 0.0
    %3934 = vmatprep.subr.mxu0 0.0
    %3935 = vmatpush1.msra.mxu0 0.0
    %3936 = vmatprep.subr.mxu0 0.0
    %3937 = vmatpush1.msra.mxu0 0.0
    %3938 = vmatprep.subr.mxu0 0.0
    %3939 = vmatpush1.msra.mxu0 0.0
    %3940 = vmatprep.subr.mxu0 0.0
    %3941 = vmatpush1.msra.mxu0 0.0
    %3942 = vmatprep.subr.mxu0 0.0
    %3943 = vmatpush1.msra.mxu0 0.0
    %3944 = vmatprep.subr.mxu0 0.0
    %3945 = vmatpush1.msra.mxu0 0.0
    %3946 = vmatprep.subr.mxu0 0.0
    %3947 = vmatpush1.msra.mxu0 0.0
    %3948 = vmatprep.subr.mxu0 0.0
    %3949 = vmatpush1.msra.mxu0 0.0
    %3950 = vmatprep.subr.mxu0 0.0
    %3951 = vmatpush1.msra.mxu0 0.0
    %3952 = vmatprep.subr.mxu0 0.0
    %3953 = vmatpush1.msra.mxu0 0.0
    %3954 = vmatprep.subr.mxu0 0.0
    %3955 = vmatpush1.msra.mxu0 0.0
    %3956 = vmatprep.subr.mxu0 0.0
    %3957 = vmatpush1.msra.mxu0 0.0
    %3958 = vmatprep.subr.mxu0 0.0
    %3959 = vmatpush1.msra.mxu0 0.0
    %3960 = vmatprep.subr.mxu0 0.0
    %3961 = vmatpush1.msra.mxu0 0.0
    %3962 = vmatprep.subr.mxu0 0.0
    %3963 = vmatpush1.msra.mxu0 0.0
    %3964 = vmatprep.subr.mxu0 0.0
    %3965 = vmatpush1.msra.mxu0 0.0
    %3966 = vmatprep.subr.mxu0 0.0
    %3967 = vmatpush1.msra.mxu0 0.0
    %3968 = vmatprep.mubr.f32.mxu0 0.0
    %3969 = vmatmul.mubr.f32.gmra.mrb[0].mxu0 %v3899
    %v3970 = vpop.f32.mrb[0].mxu0
    %v3971 = vadd.f32 0.0, %v3970
    %v3972 = vpop.f32.mrb[0].mxu0
    %3973 = vmatprep.mubr.f32.mxu0 0.0
    %3974 = vmatmul.mubr.f32.gmra.mrb[0].mxu0 %v3902
    %v3975 = vpop.f32.mrb[0].mxu0
    %v3976 = vpop.f32.mrb[0].mxu0
    %3977 = vdwg.mxu0
    %v3978 = vadd.f32 %v3742, %v3971
    %v3979 = vld [vmem:[%s57] sm:$0x1]
    %v3981 = vlaneseq
    %v3982 = vshrl.u32 %v3981, 7
    %v3983 = vsub.s32 0, %v3982
    %v3984 = vrot.slane %v3979, %v3983
    %v3986 = vadd.f32 %v3978, %v3984
    %v3987 = vld [vmem:[%s59] sm:$0x1]
    %v3988 = vld [vmem:[%s61] sm:$0x1]
    %v3989 = vsel %vm286, %v3986, 0.0
    %3990 = vadd.xlane.f32.xlu0 %v3989
    %v3991 = vpop.xlane.xlu0 %3990
    %v3992 = vmul.f32 %v3991, %v294
    %v3993 = vsub.f32 %v3986, %v3992
    %v3994 = vmul.f32 %v3993, %v3993
    %v3995 = vsel %vm286, %v3994, 0.0
    %3996 = vadd.xlane.f32.xlu0 %v3995
    %v3997 = vpop.xlane.xlu0 %3996
    %v3998 = vmul.f32 %v3997, %v294
    %v3999 = vadd.f32 %v3998, 1e-12
    %v4000 = vrsqrt.pop %v3999
    %v4001 = vmul.f32 %v3993, %v4000
    %v4003 = vlaneseq
    %v4004 = vshrl.u32 %v4003, 7
    %v4005 = vsub.s32 0, %v4004
    %v4006 = vrot.slane %v3987, %v4005
    %v4008 = vmul.f32 %v4001, %v4006
    %v4010 = vlaneseq
    %v4011 = vshrl.u32 %v4010, 7
    %v4012 = vsub.s32 0, %v4011
    %v4013 = vrot.slane %v3988, %v4012
    %v4015 = vadd.f32 %v4008, %v4013
    %v4017 = vrot.slane %v4015, 4
    %v4019 = vsel %vm278, %v4015, %v4017
    %v4020 = vld [vmem:[%s63] sm:$0xff]
    %v4021 = vld [vmem:[%s63 + $0x8] sm:$0xff]
    %v4022 = vld [vmem:[%s63 + $0x10] sm:$0xff]
    %v4023 = vld [vmem:[%s63 + $0x18] sm:$0xff]
    %v4024 = vld [vmem:[%s65] sm:$0x1]
    %v4026 = vlaneseq
    %v4027 = vshrl.u32 %v4026, 7
    %v4028 = vsub.s32 0, %v4027
    %v4029 = vrot.slane %v4024, %v4028
    %v4032 = vsel %vm286, %v4019, 0
    %4034 = vmatprep.subr.mxu0 0.0
    %4035 = vmatpush1.msra.mxu0 %v4020
    %4036 = vmatprep.subr.mxu0 0.0
    %4037 = vmatpush1.msra.mxu0 %v4021
    %4038 = vmatprep.subr.mxu0 0.0
    %4039 = vmatpush1.msra.mxu0 %v4022
    %4040 = vmatprep.subr.mxu0 0.0
    %4041 = vmatpush1.msra.mxu0 %v4023
    %4042 = vmatprep.subr.mxu0 0.0
    %4043 = vmatpush1.msra.mxu0 0.0
    %4044 = vmatprep.subr.mxu0 0.0
    %4045 = vmatpush1.msra.mxu0 0.0
    %4046 = vmatprep.subr.mxu0 0.0
    %4047 = vmatpush1.msra.mxu0 0.0
    %4048 = vmatprep.subr.mxu0 0.0
    %4049 = vmatpush1.msra.mxu0 0.0
    %4050 = vmatprep.subr.mxu0 0.0
    %4051 = vmatpush1.msra.mxu0 0.0
    %4052 = vmatprep.subr.mxu0 0.0
    %4053 = vmatpush1.msra.mxu0 0.0
    %4054 = vmatprep.subr.mxu0 0.0
    %4055 = vmatpush1.msra.mxu0 0.0
    %4056 = vmatprep.subr.mxu0 0.0
    %4057 = vmatpush1.msra.mxu0 0.0
    %4058 = vmatprep.subr.mxu0 0.0
    %4059 = vmatpush1.msra.mxu0 0.0
    %4060 = vmatprep.subr.mxu0 0.0
    %4061 = vmatpush1.msra.mxu0 0.0
    %4062 = vmatprep.subr.mxu0 0.0
    %4063 = vmatpush1.msra.mxu0 0.0
    %4064 = vmatprep.subr.mxu0 0.0
    %4065 = vmatpush1.msra.mxu0 0.0
    %4066 = vmatprep.subr.mxu0 0.0
    %4067 = vmatpush1.msra.mxu0 0.0
    %4068 = vmatprep.subr.mxu0 0.0
    %4069 = vmatpush1.msra.mxu0 0.0
    %4070 = vmatprep.subr.mxu0 0.0
    %4071 = vmatpush1.msra.mxu0 0.0
    %4072 = vmatprep.subr.mxu0 0.0
    %4073 = vmatpush1.msra.mxu0 0.0
    %4074 = vmatprep.subr.mxu0 0.0
    %4075 = vmatpush1.msra.mxu0 0.0
    %4076 = vmatprep.subr.mxu0 0.0
    %4077 = vmatpush1.msra.mxu0 0.0
    %4078 = vmatprep.subr.mxu0 0.0
    %4079 = vmatpush1.msra.mxu0 0.0
    %4080 = vmatprep.subr.mxu0 0.0
    %4081 = vmatpush1.msra.mxu0 0.0
    %4082 = vmatprep.subr.mxu0 0.0
    %4083 = vmatpush1.msra.mxu0 0.0
    %4084 = vmatprep.subr.mxu0 0.0
    %4085 = vmatpush1.msra.mxu0 0.0
    %4086 = vmatprep.subr.mxu0 0.0
    %4087 = vmatpush1.msra.mxu0 0.0
    %4088 = vmatprep.subr.mxu0 0.0
    %4089 = vmatpush1.msra.mxu0 0.0
    %4090 = vmatprep.subr.mxu0 0.0
    %4091 = vmatpush1.msra.mxu0 0.0
    %4092 = vmatprep.subr.mxu0 0.0
    %4093 = vmatpush1.msra.mxu0 0.0
    %4094 = vmatprep.subr.mxu0 0.0
    %4095 = vmatpush1.msra.mxu0 0.0
    %4096 = vmatprep.subr.mxu0 0.0
    %4097 = vmatpush1.msra.mxu0 0.0
    %4098 = vmatprep.mubr.f32.mxu0 0.0
    %4099 = vmatmul.mubr.f32.gmra.mrb[0].mxu0 %v4032
    %v4100 = vpop.f32.mrb[0].mxu0
    %v4101 = vadd.f32 %v4029, %v4100
    %v4102 = vpop.f32.mrb[0].mxu0
    %4103 = vdwg.mxu0
    %vm4104 = vcmask 156672
    %4105 = vst.msk [vmem:[%s67] sm:$0x3] %vm4104, %v4101
    %vm4106 = vcmask 74752
    %v4107 = vsel %vm4106, %v4101, -inf
    %4108 = vmax.xlane.f32.xlu0 %v4107
    %v4109 = vpop.xlane.xlu0 %4108
    %v4110 = vsub.f32 %v4101, %v4109
    %v4111 = vmul.f32 %v4110, 1.442695
    %v4112 = vpow.pop %v4111
    %v4113 = vsel %vm4106, %v4112, 0.0
    %4114 = vadd.xlane.f32.xlu0 %v4113
    %v4115 = vpop.xlane.xlu0 %4114
    %v4116 = vrcp.pop %v4115
    %v4117 = vmul.f32 %v4112, %v4116
    %v4118 = vsel %vm4106, %v4117, -inf
    %4119 = vmax.xlane.f32.xlu0 %v4118
    %v4120 = vpop.xlane.xlu0 %4119
    %v4121 = vrot.slane %v4120, 4
    %v4122 = vmax.f32 %v4120, %v4121
    %v4123 = vrot.slane %v4122, 2
    %v4124 = vmax.f32 %v4122, %v4123
    %v4125 = vrot.slane %v4124, 1
    %v4126 = vmax.f32 %v4124, %v4125
    %s4127 = vtos %v4126
    %v4128 = vstv %s4127
    %vm4129 = vcmask 0
    %4130 = vst.msk [vmem:[#allocation2] sm:$0x1] %vm4129, %v4128
    %vm4131 = vcmask 156752
    %v4132 = vsel %vm4131, %v4101, -inf
    %4133 = vmax.xlane.f32.xlu0 %v4132
    %v4134 = vpop.xlane.xlu0 %4133
    %v4135 = vsub.f32 %v4101, %v4134
    %v4136 = vmul.f32 %v4135, 1.442695
    %v4137 = vpow.pop %v4136
    %4139 = vrot.lane.b32.xlu0 %v4137, 118
    %v4140 = vpop.permute.xlu0 %4139
    %v4142 = vsel %vm4106, %v4140, 0.0
    %4143 = vadd.xlane.f32.xlu0 %v4142
    %v4144 = vpop.xlane.xlu0 %4143
    %v4145 = vrcp.pop %v4144
    %v4146 = vmul.f32 %v4137, %v4145
    %v4147 = vsel %vm4131, %v4146, -inf
    %4148 = vmax.xlane.f32.xlu0 %v4147
    %v4149 = vpop.xlane.xlu0 %4148
    %v4150 = vrot.slane %v4149, 4
    %v4151 = vmax.f32 %v4149, %v4150
    %v4152 = vrot.slane %v4151, 2
    %v4153 = vmax.f32 %v4151, %v4152
    %v4154 = vrot.slane %v4153, 1
    %v4155 = vmax.f32 %v4153, %v4154
    %s4156 = vtos %v4155
    %v4157 = vstv %s4156
    %4158 = vst.msk [vmem:[#allocation4] sm:$0x1] %vm4129, %v4157
    // Predicated region
    $region134: #{forward.1} parent=1 // pred_check
      _
    $region135: #{forward.1} parent=1 // pred_check_branch
      %4160 = sbr.rel (0) target = $region137
    $region136: #{forward.1} parent=1 // pred_region
      _
    $region137: #{forward.1} parent=1 // pred_fallthru
      _
    // Predicated region
    $region138: #{forward.1} parent=1 // pred_check
      _
    $region139: #{forward.1} parent=1 // pred_check_branch
      %4162 = sbr.rel (0) target = $region141
    $region140: #{forward.1} parent=1 // pred_region
      %s4164 = ssub.s32 16, 16
      %4165 = vsyncadd [#allocation3], %s4164
      %s4167 = sshll.u32 [#allocation2], 4
      %s4168 = int_to_ptr.vmem [resolvable:$true] %s4167
      %4170 = dma.vmem_to_hbm [thread:$0]  %s4168, 16, %s69, [#allocation3]
    $region141: #{forward.1} parent=1 // pred_fallthru
      _
    // Predicated region
    $region142: #{forward.1} parent=1 // pred_check
      _
    $region143: #{forward.1} parent=1 // pred_check_branch
      %4172 = sbr.rel (0) target = $region145
    $region144: #{forward.1} parent=1 // pred_region
      %s4174 = ssub.s32 16, 16
      %4175 = vsyncadd [#allocation5], %s4174
      %s4177 = sshll.u32 [#allocation4], 4
      %s4178 = int_to_ptr.vmem [resolvable:$true] %s4177
      %4180 = dma.vmem_to_hbm [thread:$0]  %s4178, 16, %s71, [#allocation5]
    $region145: #{forward.1} parent=1 // pred_fallthru
      _
    // Predicated region
    $region146: #{forward.1} parent=1 // pred_check
      _
    $region147: #{forward.1} parent=1 // pred_check_branch
      %4182 = sbr.rel (0) target = $region149
    $region148: #{forward.1} parent=1 // pred_region
      _
    $region149: #{forward.1} parent=1 // pred_fallthru
      _
    // Predicated region
    $region150: #{forward.1} parent=1 // pred_check
      _
    $region151: #{forward.1} parent=1 // pred_check_branch
      %4184 = sbr.rel (0) target = $region153
    $region152: #{forward.1} parent=1 // pred_region
      %4185 = dma.done [#allocation3], 16
    $region153: #{forward.1} parent=1 // pred_fallthru
      _
    // Predicated region
    $region154: #{forward.1} parent=1 // pred_check
      _
    $region155: #{forward.1} parent=1 // pred_check_branch
      %4187 = sbr.rel (0) target = $region157
    $region156: #{forward.1} parent=1 // pred_region
      %4188 = dma.done [#allocation5], 16
    $region157: #{forward.1} parent=1 // pred_fallthru
      _
    %4189 = vsyncpa [#allocation3], 1
    %4190 = vsyncpa [#allocation5], 1

</llo_original>
